<compile_context>
chip_gen: v5e
topology: v5e:2x2
jax: 0.10.0
libtpu: 0.0.40
codegen_flags: <defaults>
</compile_context>

<pallas_src>
import functools

import jax
import jax.numpy as jnp
from jax.experimental import pallas as pl
from jax.experimental.pallas import tpu as pltpu

# ----- small BERT-like config -----
VOCAB = 100
HIDDEN = 128            # config.hidden_size (768 for bert-base; kept small here)
INTERMEDIATE = 256
NUM_HEADS = 2
HEAD_DIM = HIDDEN // NUM_HEADS
NUM_LAYERS = 2
MAX_SEQ = 16
PRED_NUM = 4            # predicate2id_num
HEAD_PAD = 128          # lane-dense padded width of the fused subject+object head output
DH_PAD = ((HEAD_DIM + 127) // 128) * 128   # per-head q/k/v padded to full 128-lane blocks
QKV_W = NUM_HEADS * 3 * DH_PAD             # fused, head-major, lane-padded QKV width


# ---------------- fused Pallas kernel (whole model, one batch block per grid step) ------

def _fused_object_model_kernel(
        x_ref, mask_ref, embg_ref, embb_ref,
        wqkv_ref, bqkv_ref, wo_ref, bo_ref,
        ln1g_ref, ln1b_ref, wff1_ref, bff1_ref, wff2_ref, bff2_ref,
        ln2g_ref, ln2b_ref,
        whead_ref, bhead_ref, sp_ref,
        out_ref, *, num_layers, num_heads, head_dim, dh_pad, bblk, seq):
    add_mask = mask_ref[...]                       # (Bblk, 1, S) additive key mask
    scale = 1.0 / (head_dim ** 0.5)                # exact power of two for head_dim=64

    def layer_norm(v, g, b):                       # stats in f32
        mu = jnp.mean(v, axis=-1, keepdims=True)
        var = jnp.mean(jnp.square(v - mu), axis=-1, keepdims=True)
        return (v - mu) * jax.lax.rsqrt(var + 1e-12) * g + b

    H = x_ref.shape[-1]
    M = bblk * seq                                 # filled MXU M dimension

    # embedding LayerNorm on the flattened (Bblk*S, H) block
    x = layer_norm(x_ref[...].reshape(M, H), embg_ref[...], embb_ref[...])

    for l in range(num_layers):                    # static unroll; weights stay in VMEM
        # ---- fused QKV projection: one (M,H) @ (H, nh*3*128) matmul ----
        qkv = jnp.dot(x, wqkv_ref[l], preferred_element_type=jnp.float32) + bqkv_ref[l]

        wo_l = wo_ref[l]                           # (nh, dh_pad, H)
        attn = None
        for h in range(num_heads):
            base = h * 3 * dh_pad                  # all slices on 128-lane boundaries
            q = qkv[:, base:base + dh_pad] * scale             # scale folded into q
            k = qkv[:, base + dh_pad:base + 2 * dh_pad]
            v = qkv[:, base + 2 * dh_pad:base + 3 * dh_pad]
            qb = q.reshape(bblk, seq, dh_pad)
            kb = k.reshape(bblk, seq, dh_pad)
            vb = v.reshape(bblk, seq, dh_pad)
            s = jnp.einsum("bqd,bkd->bqk", qb, kb,
                           preferred_element_type=jnp.float32)  # (Bblk, S, S)
            s = s + add_mask                                     # broadcast over queries
            m = jnp.max(s, axis=-1, keepdims=True)               # explicit softmax
            p = jnp.exp(s - m)
            p = p / jnp.sum(p, axis=-1, keepdims=True)           # exact recip (see review)
            ctx = jnp.einsum("bqk,bkd->bqd", p, vb,
                             preferred_element_type=jnp.float32).reshape(M, dh_pad)
            # per-head partial output projection, accumulated on the MXU (no concat)
            part = jnp.dot(ctx, wo_l[h], preferred_element_type=jnp.float32)
            attn = part if attn is None else attn + part
        attn = attn + bo_ref[l]

        # ---- fused residual + LayerNorm ----
        x = layer_norm(attn + x, ln1g_ref[l], ln1b_ref[l])

        # ---- FFN + fused residual + LayerNorm ----
        ffn = jnp.dot(x, wff1_ref[l], preferred_element_type=jnp.float32) + bff1_ref[l]
        ffn = jax.nn.gelu(ffn, approximate=True)
        ffn = jnp.dot(ffn, wff2_ref[l], preferred_element_type=jnp.float32) + bff2_ref[l]
        x = layer_norm(ffn + x, ln2g_ref[l], ln2b_ref[l])

    # ---- fused subject + object heads, lane-dense (Bblk, S, 128) output ----
    # cols 0:2  -> sigmoid(x @ W_sub + b_sub)
    # cols 2:10 -> pow(sigmoid(x @ W_obj + b_obj + sp @ W_obj), 4)   (sp term in sp_ref)
    # cols 10:  -> 0 (explicitly zeroed)
    y = jnp.dot(x, whead_ref[...], preferred_element_type=jnp.float32) + bhead_ref[...]
    y = y.reshape(bblk, seq, y.shape[-1]) + sp_ref[...]   # (Bblk,1,128) broadcasts over S
    y = jax.nn.sigmoid(y)
    y2 = y * y
    y4 = y2 * y2                                    # pow(., 4) as two VPU multiplies
    lane = jax.lax.broadcasted_iota(jnp.int32, y.shape, dimension=2)
    out_ref[...] = jnp.where(lane < 2, y,
                             jnp.where(lane < 2 + 2 * PRED_NUM, y4, 0.0))


# ---------------- parameter packing (once, outside jit) ----------------

def pack_params(params):
    H, I, L = HIDDEN, INTERMEDIATE, NUM_LAYERS
    nh, dh, dhp = NUM_HEADS, HEAD_DIM, DH_PAD
    lay = params["layers"]

    # head-major, 128-lane-padded fused QKV weight / bias; per-head zero-padded Wo
    wqkv = jnp.zeros((L, H, QKV_W), jnp.float32)
    bqkv = jnp.zeros((L, 1, QKV_W), jnp.float32)
    wo = jnp.zeros((L, nh, dhp, H), jnp.float32)
    for l, p in enumerate(lay):
        for h in range(nh):
            base = h * 3 * dhp
            cs, ce = h * dh, (h + 1) * dh
            wqkv = wqkv.at[l, :, base:base + dh].set(p["wq"][:, cs:ce])
            wqkv = wqkv.at[l, :, base + dhp:base + dhp + dh].set(p["wk"][:, cs:ce])
            wqkv = wqkv.at[l, :, base + 2 * dhp:base + 2 * dhp + dh].set(p["wv"][:, cs:ce])
            bqkv = bqkv.at[l, 0, base:base + dh].set(p["bq"][cs:ce])
            bqkv = bqkv.at[l, 0, base + dhp:base + dhp + dh].set(p["bk"][cs:ce])
            bqkv = bqkv.at[l, 0, base + 2 * dhp:base + 2 * dhp + dh].set(p["bv"][cs:ce])
            wo = wo.at[l, h, :dh, :].set(p["wo"][cs:ce, :])

    packed = dict(
        emb_word=params["emb_word"], emb_pos=params["emb_pos"], emb_tok=params["emb_tok"],
        emb_ln_g=params["emb_ln_g"].reshape(1, H),
        emb_ln_b=params["emb_ln_b"].reshape(1, H),
        wqkv=wqkv, bqkv=bqkv, wo=wo,
        bo=jnp.stack([p["bo"].reshape(1, H) for p in lay]),
        ln1_g=jnp.stack([p["ln1_g"].reshape(1, H) for p in lay]),
        ln1_b=jnp.stack([p["ln1_b"].reshape(1, H) for p in lay]),
        w1=jnp.stack([p["w1"] for p in lay]),
        b1=jnp.stack([p["b1"].reshape(1, I) for p in lay]),
        w2=jnp.stack([p["w2"] for p in lay]),
        b2=jnp.stack([p["b2"].reshape(1, H) for p in lay]),
        ln2_g=jnp.stack([p["ln2_g"].reshape(1, H) for p in lay]),
        ln2_b=jnp.stack([p["ln2_b"].reshape(1, H) for p in lay]),
        w_sp=params["w_sp"], b_sp=params["b_sp"], w_obj=params["w_obj"],
    )
    # subject (H,2) and object (H,2P) head weights packed into one lane-dense (H,128) slab
    w_head = jnp.zeros((H, HEAD_PAD), jnp.float32)
    w_head = w_head.at[:, 0:2].set(params["w_sub"])
    w_head = w_head.at[:, 2:2 + 2 * PRED_NUM].set(params["w_obj"])
    b_head = jnp.zeros((1, HEAD_PAD), jnp.float32)
    b_head = b_head.at[0, 0:2].set(params["b_sub"])
    b_head = b_head.at[0, 2:2 + 2 * PRED_NUM].set(params["b_obj"])
    packed["w_head"] = w_head
    packed["b_head"] = b_head
    return packed


# ---------------- model forward (one pallas_call) ----------------

def _nbytes(a):
    return int(a.size) * int(jnp.dtype(a.dtype).itemsize)


def object_model_forward(packed, input_ids, subject_position, attention_mask):
    B, S = input_ids.shape
    H, I = HIDDEN, INTERMEDIATE
    L = packed["wqkv"].shape[0]

    # TODO(synk): embedding-table gather (data-dependent indexing) is kept as plain-JAX
    # glue; at bert-base scale fold it into the kernel via scalar-prefetched ids.
    x = (packed["emb_word"][input_ids]
         + packed["emb_pos"][None, :S, :]
         + packed["emb_tok"][0][None, None, :])                    # (B, S, H)
    add_mask = ((1.0 - attention_mask.astype(jnp.float32)) * -1e9).reshape(B, 1, S)

    # dense_subject_position and its contribution to the object logits: tiny (B,2) matmuls
    # kept in plain JAX and folded distributively:
    # (hidden + sp) @ W_obj == hidden @ W_obj + sp @ W_obj.
    sp = subject_position @ packed["w_sp"] + packed["b_sp"]        # (B, H)
    sp_obj = sp @ packed["w_obj"]                                  # (B, 2P)
    sp_contrib = jnp.zeros((B, 1, HEAD_PAD), jnp.float32)
    sp_contrib = sp_contrib.at[:, 0, 2:2 + 2 * PRED_NUM].set(sp_obj)

    # Batch blocking: fill the MXU M dimension with Bblk*S rows per grid step.
    # Keep 2 grid steps when possible so ("parallel",) shards across v7x's 2 TCs;
    # on v5e/v6e the extra step costs ~0.35 us.
    n_steps = 2 if (B >= 2 and B % 2 == 0) else 1
    bblk = B // n_steps

    kernel = functools.partial(_fused_object_model_kernel,
                               num_layers=L, num_heads=NUM_HEADS, head_dim=HEAD_DIM,
                               dh_pad=DH_PAD, bblk=bblk, seq=S)

    def resident(shape):
        # constant block index -> nothing to prefetch -> single-buffer (halves weight VMEM)
        zeros = (0,) * len(shape)
        return pl.BlockSpec(shape, lambda b, _z=zeros: _z, pipeline_mode=pl.Buffered(1))

    weight_ops = (packed["emb_ln_g"], packed["emb_ln_b"],
                  packed["wqkv"], packed["bqkv"], packed["wo"], packed["bo"],
                  packed["ln1_g"], packed["ln1_b"], packed["w1"], packed["b1"],
                  packed["w2"], packed["b2"], packed["ln2_g"], packed["ln2_b"],
                  packed["w_head"], packed["b_head"])

    # VMEM budget derived from actual buffers: resident weights x1 (Buffered(1)),
    # streamed activation tiles x2 (double-buffered), 2x headroom + 4 MiB for temporaries.
    # Never assumes 128 MiB (v7x has 64 MiB per TC).
    resident_bytes = sum(_nbytes(a) for a in weight_ops)
    streamed_bytes = 4 * (bblk * S * H + bblk * S + bblk * HEAD_PAD + bblk * S * HEAD_PAD)
    vmem_limit = min(64 * 1024 * 1024,
                     2 * (resident_bytes + 2 * streamed_bytes) + 4 * 1024 * 1024)

    head_out = pl.pallas_call(
        kernel,
        out_shape=jax.ShapeDtypeStruct((B, S, HEAD_PAD), jnp.float32),
        grid=(n_steps,),
        in_specs=[
            pl.BlockSpec((bblk, S, H), lambda b: (b, 0, 0)),         # x (batch block)
            pl.BlockSpec((bblk, 1, S), lambda b: (b, 0, 0)),         # additive mask
            resident((1, H)), resident((1, H)),                      # emb LN
            resident((L, H, QKV_W)), resident((L, 1, QKV_W)),        # fused padded QKV
            resident((L, NUM_HEADS, DH_PAD, H)), resident((L, 1, H)),  # per-head Wo / bo
            resident((L, 1, H)), resident((L, 1, H)),                # LN1
            resident((L, H, I)), resident((L, 1, I)),                # FFN in
            resident((L, I, H)), resident((L, 1, H)),                # FFN out
            resident((L, 1, H)), resident((L, 1, H)),                # LN2
            resident((H, HEAD_PAD)), resident((1, HEAD_PAD)),        # fused head W / b
            pl.BlockSpec((bblk, 1, HEAD_PAD), lambda b: (b, 0, 0)),  # sp contribution
        ],
        out_specs=pl.BlockSpec((bblk, S, HEAD_PAD), lambda b: (b, 0, 0)),
        compiler_params=pltpu.CompilerParams(
            dimension_semantics=("parallel",),       # shards batch blocks over v7x's 2 TCs
            vmem_limit_bytes=int(vmem_limit)),
    )(x, add_mask,
      packed["emb_ln_g"], packed["emb_ln_b"],
      packed["wqkv"], packed["bqkv"], packed["wo"], packed["bo"],
      packed["ln1_g"], packed["ln1_b"], packed["w1"], packed["b1"],
      packed["w2"], packed["b2"], packed["ln2_g"], packed["ln2_b"],
      packed["w_head"], packed["b_head"], sp_contrib)

    subject_out = head_out[:, :, 0:2]
    object_out = head_out[:, :, 2:2 + 2 * PRED_NUM].reshape(B, S, PRED_NUM, 2)
    return subject_out, object_out


# ---------------- pure-JAX reference (for correctness check) ----------------

def _ref_ln(x, g, b):
    mu = jnp.mean(x, axis=-1, keepdims=True)
    var = jnp.mean(jnp.square(x - mu), axis=-1, keepdims=True)
    return (x - mu) * jax.lax.rsqrt(var + 1e-12) * g + b


def _ref_forward(params, input_ids, subject_position, attention_mask):
    B, S = input_ids.shape
    H, nh, dh = HIDDEN, NUM_HEADS, HEAD_DIM
    x = (params["emb_word"][input_ids]
         + params["emb_pos"][None, :S, :]
         + params["emb_tok"][0][None, None, :])
    x = _ref_ln(x, params["emb_ln_g"], params["emb_ln_b"])
    add_mask = (1.0 - attention_mask.astype(jnp.float32)) * -1e9
    for p in params["layers"]:
        q = (x @ p["wq"] + p["bq"]).reshape(B, S, nh, dh).transpose(0, 2, 1, 3)
        k = (x @ p["wk"] + p["bk"]).reshape(B, S, nh, dh).transpose(0, 2, 1, 3)
        v = (x @ p["wv"] + p["bv"]).reshape(B, S, nh, dh).transpose(0, 2, 1, 3)
        s = jnp.einsum("bhqd,bhkd->bhqk", q, k) / (dh ** 0.5)
        s = s + add_mask[:, None, None, :]
        ctx = jnp.einsum("bhqk,bhkd->bhqd", jax.nn.softmax(s, axis=-1), v)
        ctx = ctx.transpose(0, 2, 1, 3).reshape(B, S, H)
        x = _ref_ln(ctx @ p["wo"] + p["bo"] + x, p["ln1_g"], p["ln1_b"])
        ffn = jax.nn.gelu(x @ p["w1"] + p["b1"], approximate=True)
        x = _ref_ln(ffn @ p["w2"] + p["b2"] + x, p["ln2_g"], p["ln2_b"])
    subject_out = jax.nn.sigmoid(x @ params["w_sub"] + params["b_sub"])
    sp = subject_position @ params["w_sp"] + params["b_sp"]
    obj = jax.nn.sigmoid((x + sp[:, None, :]) @ params["w_obj"] + params["b_obj"])
    obj = jnp.power(obj, 4).reshape(B, S, PRED_NUM, 2)
    return subject_out, obj


# ---------------- deterministic parameter init ----------------

def init_params(key):
    keys = iter(jax.random.split(key, 64))

    def nrm(shape, scale=0.02):
        return jax.random.normal(next(keys), shape, jnp.float32) * scale

    params = {
        "emb_word": nrm((VOCAB, HIDDEN)),
        "emb_pos": nrm((MAX_SEQ, HIDDEN)),
        "emb_tok": nrm((2, HIDDEN)),
        "emb_ln_g": jnp.ones((HIDDEN,), jnp.float32),
        "emb_ln_b": jnp.zeros((HIDDEN,), jnp.float32),
        "layers": [],
        # SubjectModel.dense = Linear(hidden, 2)
        "w_sub": nrm((HIDDEN, 2)), "b_sub": jnp.zeros((2,), jnp.float32),
        # ObjectModel.dense_subject_position = Linear(2, hidden)
        "w_sp": nrm((2, HIDDEN)), "b_sp": jnp.zeros((HIDDEN,), jnp.float32),
        # ObjectModel.dense_object = Linear(hidden, predicate2id_num * 2)
        "w_obj": nrm((HIDDEN, PRED_NUM * 2)),
        "b_obj": jnp.zeros((PRED_NUM * 2,), jnp.float32),
    }
    for _ in range(NUM_LAYERS):
        params["layers"].append({
            "wq": nrm((HIDDEN, HIDDEN)), "bq": jnp.zeros((HIDDEN,), jnp.float32),
            "wk": nrm((HIDDEN, HIDDEN)), "bk": jnp.zeros((HIDDEN,), jnp.float32),
            "wv": nrm((HIDDEN, HIDDEN)), "bv": jnp.zeros((HIDDEN,), jnp.float32),
            "wo": nrm((HIDDEN, HIDDEN)), "bo": jnp.zeros((HIDDEN,), jnp.float32),
            "ln1_g": jnp.ones((HIDDEN,), jnp.float32),
            "ln1_b": jnp.zeros((HIDDEN,), jnp.float32),
            "w1": nrm((HIDDEN, INTERMEDIATE)),
            "b1": jnp.zeros((INTERMEDIATE,), jnp.float32),
            "w2": nrm((INTERMEDIATE, HIDDEN)),
            "b2": jnp.zeros((HIDDEN,), jnp.float32),
            "ln2_g": jnp.ones((HIDDEN,), jnp.float32),
            "ln2_b": jnp.zeros((HIDDEN,), jnp.float32),
        })
    return params


if __name__ == "__main__":
    key = jax.random.PRNGKey(0)
    pkey, dkey = jax.random.split(key)
    params = init_params(pkey)
    packed = pack_params(params)          # one-time fusion/stacking of weights

    B, S = 4, 8                           # B=4 -> 2 grid steps of Bblk=2 (M=16 per matmul)
    input_ids = jax.random.randint(dkey, (B, S), 0, VOCAB)
    subject_position = jax.random.uniform(jax.random.fold_in(dkey, 1), (B, 2),
                                          dtype=jnp.float32)
    attention_mask = jnp.ones((B, S), jnp.float32)

    fwd = jax.jit(object_model_forward)
    subject_out, object_out = fwd(packed, input_ids, subject_position, attention_mask)
    jax.block_until_ready((subject_out, object_out))

    assert subject_out.shape == (B, S, 2)
    assert object_out.shape == (B, S, PRED_NUM, 2)

    ref_sub, ref_obj = _ref_forward(params, input_ids, subject_position, attention_mask)
    assert jnp.allclose(subject_out, ref_sub, atol=1e-4, rtol=1e-4)
    assert jnp.allclose(object_out, ref_obj, atol=1e-4, rtol=1e-4)

    print("KERNEL_OK")
</pallas_src>

<mosaic_0001>
module attributes {stable_mosaic.version = 11 : i64} {
  func.func @_fused_object_model_kernel(%arg0: i32, %arg1: memref<2x8x128xf32, #tpu.memory_space<vmem>>, %arg2: memref<2x1x8xf32, #tpu.memory_space<vmem>>, %arg3: memref<1x128xf32, #tpu.memory_space<vmem>>, %arg4: memref<1x128xf32, #tpu.memory_space<vmem>>, %arg5: memref<2x128x768xf32, #tpu.memory_space<vmem>>, %arg6: memref<2x1x768xf32, #tpu.memory_space<vmem>>, %arg7: memref<2x2x128x128xf32, #tpu.memory_space<vmem>>, %arg8: memref<2x1x128xf32, #tpu.memory_space<vmem>>, %arg9: memref<2x1x128xf32, #tpu.memory_space<vmem>>, %arg10: memref<2x1x128xf32, #tpu.memory_space<vmem>>, %arg11: memref<2x128x256xf32, #tpu.memory_space<vmem>>, %arg12: memref<2x1x256xf32, #tpu.memory_space<vmem>>, %arg13: memref<2x256x128xf32, #tpu.memory_space<vmem>>, %arg14: memref<2x1x128xf32, #tpu.memory_space<vmem>>, %arg15: memref<2x1x128xf32, #tpu.memory_space<vmem>>, %arg16: memref<2x1x128xf32, #tpu.memory_space<vmem>>, %arg17: memref<128x128xf32, #tpu.memory_space<vmem>>, %arg18: memref<1x128xf32, #tpu.memory_space<vmem>>, %arg19: memref<2x1x128xf32, #tpu.memory_space<vmem>>, %arg20: memref<2x8x128xf32, #tpu.memory_space<vmem>>) attributes {dimension_semantics = [#tpu.dimension_semantics<parallel>], iteration_bounds = array<i64: 2>, scalar_prefetch = 0 : i64, scratch_operands = 0 : i64, tpu.core_type = #tpu.core_type<tc>, window_params = [{transform_indices = @transform_0, window_bounds = array<i64: 2, 8, 128>}, {transform_indices = @transform_1, window_bounds = array<i64: 2, 1, 8>}, {pipeline_mode = #tpu.pipeline_mode<synchronous>, transform_indices = @transform_2, window_bounds = array<i64: 1, 128>}, {pipeline_mode = #tpu.pipeline_mode<synchronous>, transform_indices = @transform_3, window_bounds = array<i64: 1, 128>}, {pipeline_mode = #tpu.pipeline_mode<synchronous>, transform_indices = @transform_4, window_bounds = array<i64: 2, 128, 768>}, {pipeline_mode = #tpu.pipeline_mode<synchronous>, transform_indices = @transform_5, window_bounds = array<i64: 2, 1, 768>}, {pipeline_mode = #tpu.pipeline_mode<synchronous>, transform_indices = @transform_6, window_bounds = array<i64: 2, 2, 128, 128>}, {pipeline_mode = #tpu.pipeline_mode<synchronous>, transform_indices = @transform_7, window_bounds = array<i64: 2, 1, 128>}, {pipeline_mode = #tpu.pipeline_mode<synchronous>, transform_indices = @transform_8, window_bounds = array<i64: 2, 1, 128>}, {pipeline_mode = #tpu.pipeline_mode<synchronous>, transform_indices = @transform_9, window_bounds = array<i64: 2, 1, 128>}, {pipeline_mode = #tpu.pipeline_mode<synchronous>, transform_indices = @transform_10, window_bounds = array<i64: 2, 128, 256>}, {pipeline_mode = #tpu.pipeline_mode<synchronous>, transform_indices = @transform_11, window_bounds = array<i64: 2, 1, 256>}, {pipeline_mode = #tpu.pipeline_mode<synchronous>, transform_indices = @transform_12, window_bounds = array<i64: 2, 256, 128>}, {pipeline_mode = #tpu.pipeline_mode<synchronous>, transform_indices = @transform_13, window_bounds = array<i64: 2, 1, 128>}, {pipeline_mode = #tpu.pipeline_mode<synchronous>, transform_indices = @transform_14, window_bounds = array<i64: 2, 1, 128>}, {pipeline_mode = #tpu.pipeline_mode<synchronous>, transform_indices = @transform_15, window_bounds = array<i64: 2, 1, 128>}, {pipeline_mode = #tpu.pipeline_mode<synchronous>, transform_indices = @transform_16, window_bounds = array<i64: 128, 128>}, {pipeline_mode = #tpu.pipeline_mode<synchronous>, transform_indices = @transform_17, window_bounds = array<i64: 1, 128>}, {transform_indices = @transform_18, window_bounds = array<i64: 2, 1, 128>}, {transform_indices = @transform_19, window_bounds = array<i64: 2, 8, 128>}]} {
    %c0 = arith.constant 0 : index
    %c0_0 = arith.constant 0 : index
    %c0_1 = arith.constant 0 : index
    %0 = vector.load %arg2[%c0, %c0_0, %c0_1] : memref<2x1x8xf32, #tpu.memory_space<vmem>>, vector<2x1x8xf32>
    %c0_2 = arith.constant 0 : index
    %c0_3 = arith.constant 0 : index
    %c0_4 = arith.constant 0 : index
    %1 = vector.load %arg1[%c0_2, %c0_3, %c0_4] : memref<2x8x128xf32, #tpu.memory_space<vmem>>, vector<2x8x128xf32>
    %2 = vector.shape_cast %1 : vector<2x8x128xf32> to vector<16x128xf32>
    %c0_5 = arith.constant 0 : index
    %c0_6 = arith.constant 0 : index
    %3 = vector.load %arg3[%c0_5, %c0_6] : memref<1x128xf32, #tpu.memory_space<vmem>>, vector<1x128xf32>
    %c0_7 = arith.constant 0 : index
    %c0_8 = arith.constant 0 : index
    %4 = vector.load %arg4[%c0_7, %c0_8] : memref<1x128xf32, #tpu.memory_space<vmem>>, vector<1x128xf32>
    %cst = arith.constant dense<0.000000e+00> : vector<16xf32>
    %5 = vector.multi_reduction <add>, %2, %cst [1] : vector<16x128xf32> to vector<16xf32>
    %6 = vector.shape_cast %5 : vector<16xf32> to vector<16x1xf32>
    %cst_9 = arith.constant 1.280000e+02 : f32
    %7 = vector.broadcast %cst_9 : f32 to vector<16x1xf32>
    %8 = arith.divf %6, %7 : vector<16x1xf32>
    %9 = vector.broadcast %8 : vector<16x1xf32> to vector<16x128xf32>
    %10 = arith.subf %2, %9 : vector<16x128xf32>
    %11 = arith.mulf %10, %10 : vector<16x128xf32>
    %cst_10 = arith.constant dense<0.000000e+00> : vector<16xf32>
    %12 = vector.multi_reduction <add>, %11, %cst_10 [1] : vector<16x128xf32> to vector<16xf32>
    %13 = vector.shape_cast %12 : vector<16xf32> to vector<16x1xf32>
    %cst_11 = arith.constant 1.280000e+02 : f32
    %14 = vector.broadcast %cst_11 : f32 to vector<16x1xf32>
    %15 = arith.divf %13, %14 : vector<16x1xf32>
    %16 = vector.broadcast %8 : vector<16x1xf32> to vector<16x128xf32>
    %17 = arith.subf %2, %16 : vector<16x128xf32>
    %cst_12 = arith.constant 9.99999996E-13 : f32
    %18 = vector.broadcast %cst_12 : f32 to vector<16x1xf32>
    %19 = arith.addf %15, %18 : vector<16x1xf32>
    %20 = math.rsqrt %19 : vector<16x1xf32>
    %21 = vector.broadcast %20 : vector<16x1xf32> to vector<16x128xf32>
    %22 = arith.mulf %17, %21 : vector<16x128xf32>
    %23 = vector.broadcast %3 : vector<1x128xf32> to vector<16x128xf32>
    %24 = arith.mulf %22, %23 : vector<16x128xf32>
    %25 = vector.broadcast %4 : vector<1x128xf32> to vector<16x128xf32>
    %26 = arith.addf %24, %25 : vector<16x128xf32>
    %c0_13 = arith.constant 0 : index
    %c0_14 = arith.constant 0 : index
    %c0_15 = arith.constant 0 : index
    %27 = vector.load %arg5[%c0_13, %c0_14, %c0_15] : memref<2x128x768xf32, #tpu.memory_space<vmem>>, vector<1x128x768xf32>
    %28 = vector.shape_cast %27 : vector<1x128x768xf32> to vector<128x768xf32>
    %cst_16 = arith.constant dense<0.000000e+00> : vector<16x768xf32>
    %29 = tpu.matmul %26, %28, %cst_16 {dimension_numbers = #tpu.dot_dimension_numbers<[1], [0], [0], [1], [0, 0, 1, 1], [], []>} : vector<16x128xf32>, vector<128x768xf32>, vector<16x768xf32> -> vector<16x768xf32>
    %c0_17 = arith.constant 0 : index
    %c0_18 = arith.constant 0 : index
    %c0_19 = arith.constant 0 : index
    %30 = vector.load %arg6[%c0_17, %c0_18, %c0_19] : memref<2x1x768xf32, #tpu.memory_space<vmem>>, vector<1x1x768xf32>
    %31 = vector.shape_cast %30 : vector<1x1x768xf32> to vector<1x768xf32>
    %32 = vector.broadcast %31 : vector<1x768xf32> to vector<16x768xf32>
    %33 = arith.addf %29, %32 : vector<16x768xf32>
    %c0_20 = arith.constant 0 : index
    %c0_21 = arith.constant 0 : index
    %c0_22 = arith.constant 0 : index
    %c0_23 = arith.constant 0 : index
    %34 = vector.load %arg7[%c0_20, %c0_21, %c0_22, %c0_23] : memref<2x2x128x128xf32, #tpu.memory_space<vmem>>, vector<1x2x128x128xf32>
    %35 = vector.shape_cast %34 : vector<1x2x128x128xf32> to vector<2x128x128xf32>
    %36 = vector.extract_strided_slice %33 {offsets = [0, 0], sizes = [16, 128], strides = [1, 1]} : vector<16x768xf32> to vector<16x128xf32>
    %cst_24 = arith.constant 1.250000e-01 : f32
    %37 = vector.broadcast %cst_24 : f32 to vector<16x128xf32>
    %38 = arith.mulf %36, %37 : vector<16x128xf32>
    %39 = vector.extract_strided_slice %33 {offsets = [0, 128], sizes = [16, 128], strides = [1, 1]} : vector<16x768xf32> to vector<16x128xf32>
    %40 = vector.extract_strided_slice %33 {offsets = [0, 256], sizes = [16, 128], strides = [1, 1]} : vector<16x768xf32> to vector<16x128xf32>
    %41 = vector.shape_cast %38 : vector<16x128xf32> to vector<2x8x128xf32>
    %42 = vector.shape_cast %39 : vector<16x128xf32> to vector<2x8x128xf32>
    %43 = vector.shape_cast %40 : vector<16x128xf32> to vector<2x8x128xf32>
    "tpu.trace_start"() <{level = 10 : i32, message = "bqd,bkd->bqk"}> : () -> ()
    %cst_25 = arith.constant dense<0.000000e+00> : vector<2x8x8xf32>
    %44 = tpu.matmul %41, %42, %cst_25 {dimension_numbers = #tpu.dot_dimension_numbers<[2], [2], [1], [1], [0, 0, 0, 1, 1, 1], [0], [0]>} : vector<2x8x128xf32>, vector<2x8x128xf32>, vector<2x8x8xf32> -> vector<2x8x8xf32>
    "tpu.trace_stop"() : () -> ()
    %45 = vector.broadcast %0 : vector<2x1x8xf32> to vector<2x8x8xf32>
    %46 = arith.addf %44, %45 : vector<2x8x8xf32>
    %cst_26 = arith.constant dense<0xFF800000> : vector<2x8xf32>
    %47 = vector.multi_reduction <maximumf>, %46, %cst_26 [2] : vector<2x8x8xf32> to vector<2x8xf32>
    %48 = vector.shape_cast %47 : vector<2x8xf32> to vector<2x8x1xf32>
    %49 = vector.broadcast %48 : vector<2x8x1xf32> to vector<2x8x8xf32>
    %50 = arith.subf %46, %49 : vector<2x8x8xf32>
    %51 = math.exp %50 : vector<2x8x8xf32>
    %cst_27 = arith.constant dense<0.000000e+00> : vector<2x8xf32>
    %52 = vector.multi_reduction <add>, %51, %cst_27 [2] : vector<2x8x8xf32> to vector<2x8xf32>
    %53 = vector.shape_cast %52 : vector<2x8xf32> to vector<2x8x1xf32>
    %54 = vector.broadcast %53 : vector<2x8x1xf32> to vector<2x8x8xf32>
    %55 = arith.divf %51, %54 : vector<2x8x8xf32>
    "tpu.trace_start"() <{level = 10 : i32, message = "bqk,bkd->bqd"}> : () -> ()
    %cst_28 = arith.constant dense<0.000000e+00> : vector<2x8x128xf32>
    %56 = tpu.matmul %55, %43, %cst_28 {dimension_numbers = #tpu.dot_dimension_numbers<[2], [1], [1], [2], [0, 0, 0, 1, 1, 2], [0], [0]>} : vector<2x8x8xf32>, vector<2x8x128xf32>, vector<2x8x128xf32> -> vector<2x8x128xf32>
    "tpu.trace_stop"() : () -> ()
    %57 = vector.shape_cast %56 : vector<2x8x128xf32> to vector<16x128xf32>
    %58 = vector.extract_strided_slice %35 {offsets = [0, 0, 0], sizes = [1, 128, 128], strides = [1, 1, 1]} : vector<2x128x128xf32> to vector<1x128x128xf32>
    %59 = vector.shape_cast %58 : vector<1x128x128xf32> to vector<128x128xf32>
    %cst_29 = arith.constant dense<0.000000e+00> : vector<16x128xf32>
    %60 = tpu.matmul %57, %59, %cst_29 {dimension_numbers = #tpu.dot_dimension_numbers<[1], [0], [0], [1], [0, 0, 1, 1], [], []>} : vector<16x128xf32>, vector<128x128xf32>, vector<16x128xf32> -> vector<16x128xf32>
    %61 = vector.extract_strided_slice %33 {offsets = [0, 384], sizes = [16, 128], strides = [1, 1]} : vector<16x768xf32> to vector<16x128xf32>
    %cst_30 = arith.constant 1.250000e-01 : f32
    %62 = vector.broadcast %cst_30 : f32 to vector<16x128xf32>
    %63 = arith.mulf %61, %62 : vector<16x128xf32>
    %64 = vector.extract_strided_slice %33 {offsets = [0, 512], sizes = [16, 128], strides = [1, 1]} : vector<16x768xf32> to vector<16x128xf32>
    %65 = vector.extract_strided_slice %33 {offsets = [0, 640], sizes = [16, 128], strides = [1, 1]} : vector<16x768xf32> to vector<16x128xf32>
    %66 = vector.shape_cast %63 : vector<16x128xf32> to vector<2x8x128xf32>
    %67 = vector.shape_cast %64 : vector<16x128xf32> to vector<2x8x128xf32>
    %68 = vector.shape_cast %65 : vector<16x128xf32> to vector<2x8x128xf32>
    "tpu.trace_start"() <{level = 10 : i32, message = "bqd,bkd->bqk"}> : () -> ()
    %cst_31 = arith.constant dense<0.000000e+00> : vector<2x8x8xf32>
    %69 = tpu.matmul %66, %67, %cst_31 {dimension_numbers = #tpu.dot_dimension_numbers<[2], [2], [1], [1], [0, 0, 0, 1, 1, 1], [0], [0]>} : vector<2x8x128xf32>, vector<2x8x128xf32>, vector<2x8x8xf32> -> vector<2x8x8xf32>
    "tpu.trace_stop"() : () -> ()
    %70 = vector.broadcast %0 : vector<2x1x8xf32> to vector<2x8x8xf32>
    %71 = arith.addf %69, %70 : vector<2x8x8xf32>
    %cst_32 = arith.constant dense<0xFF800000> : vector<2x8xf32>
    %72 = vector.multi_reduction <maximumf>, %71, %cst_32 [2] : vector<2x8x8xf32> to vector<2x8xf32>
    %73 = vector.shape_cast %72 : vector<2x8xf32> to vector<2x8x1xf32>
    %74 = vector.broadcast %73 : vector<2x8x1xf32> to vector<2x8x8xf32>
    %75 = arith.subf %71, %74 : vector<2x8x8xf32>
    %76 = math.exp %75 : vector<2x8x8xf32>
    %cst_33 = arith.constant dense<0.000000e+00> : vector<2x8xf32>
    %77 = vector.multi_reduction <add>, %76, %cst_33 [2] : vector<2x8x8xf32> to vector<2x8xf32>
    %78 = vector.shape_cast %77 : vector<2x8xf32> to vector<2x8x1xf32>
    %79 = vector.broadcast %78 : vector<2x8x1xf32> to vector<2x8x8xf32>
    %80 = arith.divf %76, %79 : vector<2x8x8xf32>
    "tpu.trace_start"() <{level = 10 : i32, message = "bqk,bkd->bqd"}> : () -> ()
    %cst_34 = arith.constant dense<0.000000e+00> : vector<2x8x128xf32>
    %81 = tpu.matmul %80, %68, %cst_34 {dimension_numbers = #tpu.dot_dimension_numbers<[2], [1], [1], [2], [0, 0, 0, 1, 1, 2], [0], [0]>} : vector<2x8x8xf32>, vector<2x8x128xf32>, vector<2x8x128xf32> -> vector<2x8x128xf32>
    "tpu.trace_stop"() : () -> ()
    %82 = vector.shape_cast %81 : vector<2x8x128xf32> to vector<16x128xf32>
    %83 = vector.extract_strided_slice %35 {offsets = [1, 0, 0], sizes = [1, 128, 128], strides = [1, 1, 1]} : vector<2x128x128xf32> to vector<1x128x128xf32>
    %84 = vector.shape_cast %83 : vector<1x128x128xf32> to vector<128x128xf32>
    %cst_35 = arith.constant dense<0.000000e+00> : vector<16x128xf32>
    %85 = tpu.matmul %82, %84, %cst_35 {dimension_numbers = #tpu.dot_dimension_numbers<[1], [0], [0], [1], [0, 0, 1, 1], [], []>} : vector<16x128xf32>, vector<128x128xf32>, vector<16x128xf32> -> vector<16x128xf32>
    %86 = arith.addf %60, %85 : vector<16x128xf32>
    %c0_36 = arith.constant 0 : index
    %c0_37 = arith.constant 0 : index
    %c0_38 = arith.constant 0 : index
    %87 = vector.load %arg8[%c0_36, %c0_37, %c0_38] : memref<2x1x128xf32, #tpu.memory_space<vmem>>, vector<1x1x128xf32>
    %88 = vector.shape_cast %87 : vector<1x1x128xf32> to vector<1x128xf32>
    %89 = vector.broadcast %88 : vector<1x128xf32> to vector<16x128xf32>
    %90 = arith.addf %86, %89 : vector<16x128xf32>
    %91 = arith.addf %90, %26 : vector<16x128xf32>
    %c0_39 = arith.constant 0 : index
    %c0_40 = arith.constant 0 : index
    %c0_41 = arith.constant 0 : index
    %92 = vector.load %arg9[%c0_39, %c0_40, %c0_41] : memref<2x1x128xf32, #tpu.memory_space<vmem>>, vector<1x1x128xf32>
    %93 = vector.shape_cast %92 : vector<1x1x128xf32> to vector<1x128xf32>
    %c0_42 = arith.constant 0 : index
    %c0_43 = arith.constant 0 : index
    %c0_44 = arith.constant 0 : index
    %94 = vector.load %arg10[%c0_42, %c0_43, %c0_44] : memref<2x1x128xf32, #tpu.memory_space<vmem>>, vector<1x1x128xf32>
    %95 = vector.shape_cast %94 : vector<1x1x128xf32> to vector<1x128xf32>
    %cst_45 = arith.constant dense<0.000000e+00> : vector<16xf32>
    %96 = vector.multi_reduction <add>, %91, %cst_45 [1] : vector<16x128xf32> to vector<16xf32>
    %97 = vector.shape_cast %96 : vector<16xf32> to vector<16x1xf32>
    %cst_46 = arith.constant 1.280000e+02 : f32
    %98 = vector.broadcast %cst_46 : f32 to vector<16x1xf32>
    %99 = arith.divf %97, %98 : vector<16x1xf32>
    %100 = vector.broadcast %99 : vector<16x1xf32> to vector<16x128xf32>
    %101 = arith.subf %91, %100 : vector<16x128xf32>
    %102 = arith.mulf %101, %101 : vector<16x128xf32>
    %cst_47 = arith.constant dense<0.000000e+00> : vector<16xf32>
    %103 = vector.multi_reduction <add>, %102, %cst_47 [1] : vector<16x128xf32> to vector<16xf32>
    %104 = vector.shape_cast %103 : vector<16xf32> to vector<16x1xf32>
    %cst_48 = arith.constant 1.280000e+02 : f32
    %105 = vector.broadcast %cst_48 : f32 to vector<16x1xf32>
    %106 = arith.divf %104, %105 : vector<16x1xf32>
    %107 = vector.broadcast %99 : vector<16x1xf32> to vector<16x128xf32>
    %108 = arith.subf %91, %107 : vector<16x128xf32>
    %cst_49 = arith.constant 9.99999996E-13 : f32
    %109 = vector.broadcast %cst_49 : f32 to vector<16x1xf32>
    %110 = arith.addf %106, %109 : vector<16x1xf32>
    %111 = math.rsqrt %110 : vector<16x1xf32>
    %112 = vector.broadcast %111 : vector<16x1xf32> to vector<16x128xf32>
    %113 = arith.mulf %108, %112 : vector<16x128xf32>
    %114 = vector.broadcast %93 : vector<1x128xf32> to vector<16x128xf32>
    %115 = arith.mulf %113, %114 : vector<16x128xf32>
    %116 = vector.broadcast %95 : vector<1x128xf32> to vector<16x128xf32>
    %117 = arith.addf %115, %116 : vector<16x128xf32>
    %c0_50 = arith.constant 0 : index
    %c0_51 = arith.constant 0 : index
    %c0_52 = arith.constant 0 : index
    %118 = vector.load %arg11[%c0_50, %c0_51, %c0_52] : memref<2x128x256xf32, #tpu.memory_space<vmem>>, vector<1x128x256xf32>
    %119 = vector.shape_cast %118 : vector<1x128x256xf32> to vector<128x256xf32>
    %cst_53 = arith.constant dense<0.000000e+00> : vector<16x256xf32>
    %120 = tpu.matmul %117, %119, %cst_53 {dimension_numbers = #tpu.dot_dimension_numbers<[1], [0], [0], [1], [0, 0, 1, 1], [], []>} : vector<16x128xf32>, vector<128x256xf32>, vector<16x256xf32> -> vector<16x256xf32>
    %c0_54 = arith.constant 0 : index
    %c0_55 = arith.constant 0 : index
    %c0_56 = arith.constant 0 : index
    %121 = vector.load %arg12[%c0_54, %c0_55, %c0_56] : memref<2x1x256xf32, #tpu.memory_space<vmem>>, vector<1x1x256xf32>
    %122 = vector.shape_cast %121 : vector<1x1x256xf32> to vector<1x256xf32>
    %123 = vector.broadcast %122 : vector<1x256xf32> to vector<16x256xf32>
    %124 = arith.addf %120, %123 : vector<16x256xf32>
    %125 = arith.mulf %124, %124 : vector<16x256xf32>
    %126 = arith.mulf %124, %125 : vector<16x256xf32>
    %cst_57 = arith.constant 4.471500e-02 : f32
    %127 = vector.broadcast %cst_57 : f32 to vector<16x256xf32>
    %128 = arith.mulf %127, %126 : vector<16x256xf32>
    %129 = arith.addf %124, %128 : vector<16x256xf32>
    %cst_58 = arith.constant 0.797884583 : f32
    %130 = vector.broadcast %cst_58 : f32 to vector<16x256xf32>
    %131 = arith.mulf %130, %129 : vector<16x256xf32>
    %132 = math.tanh %131 : vector<16x256xf32>
    %cst_59 = arith.constant 1.000000e+00 : f32
    %133 = vector.broadcast %cst_59 : f32 to vector<16x256xf32>
    %134 = arith.addf %133, %132 : vector<16x256xf32>
    %cst_60 = arith.constant 5.000000e-01 : f32
    %135 = vector.broadcast %cst_60 : f32 to vector<16x256xf32>
    %136 = arith.mulf %135, %134 : vector<16x256xf32>
    %137 = arith.mulf %124, %136 : vector<16x256xf32>
    %c0_61 = arith.constant 0 : index
    %c0_62 = arith.constant 0 : index
    %c0_63 = arith.constant 0 : index
    %138 = vector.load %arg13[%c0_61, %c0_62, %c0_63] : memref<2x256x128xf32, #tpu.memory_space<vmem>>, vector<1x256x128xf32>
    %139 = vector.shape_cast %138 : vector<1x256x128xf32> to vector<256x128xf32>
    %cst_64 = arith.constant dense<0.000000e+00> : vector<16x128xf32>
    %140 = tpu.matmul %137, %139, %cst_64 {dimension_numbers = #tpu.dot_dimension_numbers<[1], [0], [0], [1], [0, 0, 1, 1], [], []>} : vector<16x256xf32>, vector<256x128xf32>, vector<16x128xf32> -> vector<16x128xf32>
    %c0_65 = arith.constant 0 : index
    %c0_66 = arith.constant 0 : index
    %c0_67 = arith.constant 0 : index
    %141 = vector.load %arg14[%c0_65, %c0_66, %c0_67] : memref<2x1x128xf32, #tpu.memory_space<vmem>>, vector<1x1x128xf32>
    %142 = vector.shape_cast %141 : vector<1x1x128xf32> to vector<1x128xf32>
    %143 = vector.broadcast %142 : vector<1x128xf32> to vector<16x128xf32>
    %144 = arith.addf %140, %143 : vector<16x128xf32>
    %145 = arith.addf %144, %117 : vector<16x128xf32>
    %c0_68 = arith.constant 0 : index
    %c0_69 = arith.constant 0 : index
    %c0_70 = arith.constant 0 : index
    %146 = vector.load %arg15[%c0_68, %c0_69, %c0_70] : memref<2x1x128xf32, #tpu.memory_space<vmem>>, vector<1x1x128xf32>
    %147 = vector.shape_cast %146 : vector<1x1x128xf32> to vector<1x128xf32>
    %c0_71 = arith.constant 0 : index
    %c0_72 = arith.constant 0 : index
    %c0_73 = arith.constant 0 : index
    %148 = vector.load %arg16[%c0_71, %c0_72, %c0_73] : memref<2x1x128xf32, #tpu.memory_space<vmem>>, vector<1x1x128xf32>
    %149 = vector.shape_cast %148 : vector<1x1x128xf32> to vector<1x128xf32>
    %cst_74 = arith.constant dense<0.000000e+00> : vector<16xf32>
    %150 = vector.multi_reduction <add>, %145, %cst_74 [1] : vector<16x128xf32> to vector<16xf32>
    %151 = vector.shape_cast %150 : vector<16xf32> to vector<16x1xf32>
    %cst_75 = arith.constant 1.280000e+02 : f32
    %152 = vector.broadcast %cst_75 : f32 to vector<16x1xf32>
    %153 = arith.divf %151, %152 : vector<16x1xf32>
    %154 = vector.broadcast %153 : vector<16x1xf32> to vector<16x128xf32>
    %155 = arith.subf %145, %154 : vector<16x128xf32>
    %156 = arith.mulf %155, %155 : vector<16x128xf32>
    %cst_76 = arith.constant dense<0.000000e+00> : vector<16xf32>
    %157 = vector.multi_reduction <add>, %156, %cst_76 [1] : vector<16x128xf32> to vector<16xf32>
    %158 = vector.shape_cast %157 : vector<16xf32> to vector<16x1xf32>
    %cst_77 = arith.constant 1.280000e+02 : f32
    %159 = vector.broadcast %cst_77 : f32 to vector<16x1xf32>
    %160 = arith.divf %158, %159 : vector<16x1xf32>
    %161 = vector.broadcast %153 : vector<16x1xf32> to vector<16x128xf32>
    %162 = arith.subf %145, %161 : vector<16x128xf32>
    %cst_78 = arith.constant 9.99999996E-13 : f32
    %163 = vector.broadcast %cst_78 : f32 to vector<16x1xf32>
    %164 = arith.addf %160, %163 : vector<16x1xf32>
    %165 = math.rsqrt %164 : vector<16x1xf32>
    %166 = vector.broadcast %165 : vector<16x1xf32> to vector<16x128xf32>
    %167 = arith.mulf %162, %166 : vector<16x128xf32>
    %168 = vector.broadcast %147 : vector<1x128xf32> to vector<16x128xf32>
    %169 = arith.mulf %167, %168 : vector<16x128xf32>
    %170 = vector.broadcast %149 : vector<1x128xf32> to vector<16x128xf32>
    %171 = arith.addf %169, %170 : vector<16x128xf32>
    %c1 = arith.constant 1 : index
    %c0_79 = arith.constant 0 : index
    %c0_80 = arith.constant 0 : index
    %172 = vector.load %arg5[%c1, %c0_79, %c0_80] : memref<2x128x768xf32, #tpu.memory_space<vmem>>, vector<1x128x768xf32>
    %173 = vector.shape_cast %172 : vector<1x128x768xf32> to vector<128x768xf32>
    %cst_81 = arith.constant dense<0.000000e+00> : vector<16x768xf32>
    %174 = tpu.matmul %171, %173, %cst_81 {dimension_numbers = #tpu.dot_dimension_numbers<[1], [0], [0], [1], [0, 0, 1, 1], [], []>} : vector<16x128xf32>, vector<128x768xf32>, vector<16x768xf32> -> vector<16x768xf32>
    %c1_82 = arith.constant 1 : index
    %c0_83 = arith.constant 0 : index
    %c0_84 = arith.constant 0 : index
    %175 = vector.load %arg6[%c1_82, %c0_83, %c0_84] : memref<2x1x768xf32, #tpu.memory_space<vmem>>, vector<1x1x768xf32>
    %176 = vector.shape_cast %175 : vector<1x1x768xf32> to vector<1x768xf32>
    %177 = vector.broadcast %176 : vector<1x768xf32> to vector<16x768xf32>
    %178 = arith.addf %174, %177 : vector<16x768xf32>
    %c1_85 = arith.constant 1 : index
    %c0_86 = arith.constant 0 : index
    %c0_87 = arith.constant 0 : index
    %c0_88 = arith.constant 0 : index
    %179 = vector.load %arg7[%c1_85, %c0_86, %c0_87, %c0_88] : memref<2x2x128x128xf32, #tpu.memory_space<vmem>>, vector<1x2x128x128xf32>
    %180 = vector.shape_cast %179 : vector<1x2x128x128xf32> to vector<2x128x128xf32>
    %181 = vector.extract_strided_slice %178 {offsets = [0, 0], sizes = [16, 128], strides = [1, 1]} : vector<16x768xf32> to vector<16x128xf32>
    %cst_89 = arith.constant 1.250000e-01 : f32
    %182 = vector.broadcast %cst_89 : f32 to vector<16x128xf32>
    %183 = arith.mulf %181, %182 : vector<16x128xf32>
    %184 = vector.extract_strided_slice %178 {offsets = [0, 128], sizes = [16, 128], strides = [1, 1]} : vector<16x768xf32> to vector<16x128xf32>
    %185 = vector.extract_strided_slice %178 {offsets = [0, 256], sizes = [16, 128], strides = [1, 1]} : vector<16x768xf32> to vector<16x128xf32>
    %186 = vector.shape_cast %183 : vector<16x128xf32> to vector<2x8x128xf32>
    %187 = vector.shape_cast %184 : vector<16x128xf32> to vector<2x8x128xf32>
    %188 = vector.shape_cast %185 : vector<16x128xf32> to vector<2x8x128xf32>
    "tpu.trace_start"() <{level = 10 : i32, message = "bqd,bkd->bqk"}> : () -> ()
    %cst_90 = arith.constant dense<0.000000e+00> : vector<2x8x8xf32>
    %189 = tpu.matmul %186, %187, %cst_90 {dimension_numbers = #tpu.dot_dimension_numbers<[2], [2], [1], [1], [0, 0, 0, 1, 1, 1], [0], [0]>} : vector<2x8x128xf32>, vector<2x8x128xf32>, vector<2x8x8xf32> -> vector<2x8x8xf32>
    "tpu.trace_stop"() : () -> ()
    %190 = vector.broadcast %0 : vector<2x1x8xf32> to vector<2x8x8xf32>
    %191 = arith.addf %189, %190 : vector<2x8x8xf32>
    %cst_91 = arith.constant dense<0xFF800000> : vector<2x8xf32>
    %192 = vector.multi_reduction <maximumf>, %191, %cst_91 [2] : vector<2x8x8xf32> to vector<2x8xf32>
    %193 = vector.shape_cast %192 : vector<2x8xf32> to vector<2x8x1xf32>
    %194 = vector.broadcast %193 : vector<2x8x1xf32> to vector<2x8x8xf32>
    %195 = arith.subf %191, %194 : vector<2x8x8xf32>
    %196 = math.exp %195 : vector<2x8x8xf32>
    %cst_92 = arith.constant dense<0.000000e+00> : vector<2x8xf32>
    %197 = vector.multi_reduction <add>, %196, %cst_92 [2] : vector<2x8x8xf32> to vector<2x8xf32>
    %198 = vector.shape_cast %197 : vector<2x8xf32> to vector<2x8x1xf32>
    %199 = vector.broadcast %198 : vector<2x8x1xf32> to vector<2x8x8xf32>
    %200 = arith.divf %196, %199 : vector<2x8x8xf32>
    "tpu.trace_start"() <{level = 10 : i32, message = "bqk,bkd->bqd"}> : () -> ()
    %cst_93 = arith.constant dense<0.000000e+00> : vector<2x8x128xf32>
    %201 = tpu.matmul %200, %188, %cst_93 {dimension_numbers = #tpu.dot_dimension_numbers<[2], [1], [1], [2], [0, 0, 0, 1, 1, 2], [0], [0]>} : vector<2x8x8xf32>, vector<2x8x128xf32>, vector<2x8x128xf32> -> vector<2x8x128xf32>
    "tpu.trace_stop"() : () -> ()
    %202 = vector.shape_cast %201 : vector<2x8x128xf32> to vector<16x128xf32>
    %203 = vector.extract_strided_slice %180 {offsets = [0, 0, 0], sizes = [1, 128, 128], strides = [1, 1, 1]} : vector<2x128x128xf32> to vector<1x128x128xf32>
    %204 = vector.shape_cast %203 : vector<1x128x128xf32> to vector<128x128xf32>
    %cst_94 = arith.constant dense<0.000000e+00> : vector<16x128xf32>
    %205 = tpu.matmul %202, %204, %cst_94 {dimension_numbers = #tpu.dot_dimension_numbers<[1], [0], [0], [1], [0, 0, 1, 1], [], []>} : vector<16x128xf32>, vector<128x128xf32>, vector<16x128xf32> -> vector<16x128xf32>
    %206 = vector.extract_strided_slice %178 {offsets = [0, 384], sizes = [16, 128], strides = [1, 1]} : vector<16x768xf32> to vector<16x128xf32>
    %cst_95 = arith.constant 1.250000e-01 : f32
    %207 = vector.broadcast %cst_95 : f32 to vector<16x128xf32>
    %208 = arith.mulf %206, %207 : vector<16x128xf32>
    %209 = vector.extract_strided_slice %178 {offsets = [0, 512], sizes = [16, 128], strides = [1, 1]} : vector<16x768xf32> to vector<16x128xf32>
    %210 = vector.extract_strided_slice %178 {offsets = [0, 640], sizes = [16, 128], strides = [1, 1]} : vector<16x768xf32> to vector<16x128xf32>
    %211 = vector.shape_cast %208 : vector<16x128xf32> to vector<2x8x128xf32>
    %212 = vector.shape_cast %209 : vector<16x128xf32> to vector<2x8x128xf32>
    %213 = vector.shape_cast %210 : vector<16x128xf32> to vector<2x8x128xf32>
    "tpu.trace_start"() <{level = 10 : i32, message = "bqd,bkd->bqk"}> : () -> ()
    %cst_96 = arith.constant dense<0.000000e+00> : vector<2x8x8xf32>
    %214 = tpu.matmul %211, %212, %cst_96 {dimension_numbers = #tpu.dot_dimension_numbers<[2], [2], [1], [1], [0, 0, 0, 1, 1, 1], [0], [0]>} : vector<2x8x128xf32>, vector<2x8x128xf32>, vector<2x8x8xf32> -> vector<2x8x8xf32>
    "tpu.trace_stop"() : () -> ()
    %215 = vector.broadcast %0 : vector<2x1x8xf32> to vector<2x8x8xf32>
    %216 = arith.addf %214, %215 : vector<2x8x8xf32>
    %cst_97 = arith.constant dense<0xFF800000> : vector<2x8xf32>
    %217 = vector.multi_reduction <maximumf>, %216, %cst_97 [2] : vector<2x8x8xf32> to vector<2x8xf32>
    %218 = vector.shape_cast %217 : vector<2x8xf32> to vector<2x8x1xf32>
    %219 = vector.broadcast %218 : vector<2x8x1xf32> to vector<2x8x8xf32>
    %220 = arith.subf %216, %219 : vector<2x8x8xf32>
    %221 = math.exp %220 : vector<2x8x8xf32>
    %cst_98 = arith.constant dense<0.000000e+00> : vector<2x8xf32>
    %222 = vector.multi_reduction <add>, %221, %cst_98 [2] : vector<2x8x8xf32> to vector<2x8xf32>
    %223 = vector.shape_cast %222 : vector<2x8xf32> to vector<2x8x1xf32>
    %224 = vector.broadcast %223 : vector<2x8x1xf32> to vector<2x8x8xf32>
    %225 = arith.divf %221, %224 : vector<2x8x8xf32>
    "tpu.trace_start"() <{level = 10 : i32, message = "bqk,bkd->bqd"}> : () -> ()
    %cst_99 = arith.constant dense<0.000000e+00> : vector<2x8x128xf32>
    %226 = tpu.matmul %225, %213, %cst_99 {dimension_numbers = #tpu.dot_dimension_numbers<[2], [1], [1], [2], [0, 0, 0, 1, 1, 2], [0], [0]>} : vector<2x8x8xf32>, vector<2x8x128xf32>, vector<2x8x128xf32> -> vector<2x8x128xf32>
    "tpu.trace_stop"() : () -> ()
    %227 = vector.shape_cast %226 : vector<2x8x128xf32> to vector<16x128xf32>
    %228 = vector.extract_strided_slice %180 {offsets = [1, 0, 0], sizes = [1, 128, 128], strides = [1, 1, 1]} : vector<2x128x128xf32> to vector<1x128x128xf32>
    %229 = vector.shape_cast %228 : vector<1x128x128xf32> to vector<128x128xf32>
    %cst_100 = arith.constant dense<0.000000e+00> : vector<16x128xf32>
    %230 = tpu.matmul %227, %229, %cst_100 {dimension_numbers = #tpu.dot_dimension_numbers<[1], [0], [0], [1], [0, 0, 1, 1], [], []>} : vector<16x128xf32>, vector<128x128xf32>, vector<16x128xf32> -> vector<16x128xf32>
    %231 = arith.addf %205, %230 : vector<16x128xf32>
    %c1_101 = arith.constant 1 : index
    %c0_102 = arith.constant 0 : index
    %c0_103 = arith.constant 0 : index
    %232 = vector.load %arg8[%c1_101, %c0_102, %c0_103] : memref<2x1x128xf32, #tpu.memory_space<vmem>>, vector<1x1x128xf32>
    %233 = vector.shape_cast %232 : vector<1x1x128xf32> to vector<1x128xf32>
    %234 = vector.broadcast %233 : vector<1x128xf32> to vector<16x128xf32>
    %235 = arith.addf %231, %234 : vector<16x128xf32>
    %236 = arith.addf %235, %171 : vector<16x128xf32>
    %c1_104 = arith.constant 1 : index
    %c0_105 = arith.constant 0 : index
    %c0_106 = arith.constant 0 : index
    %237 = vector.load %arg9[%c1_104, %c0_105, %c0_106] : memref<2x1x128xf32, #tpu.memory_space<vmem>>, vector<1x1x128xf32>
    %238 = vector.shape_cast %237 : vector<1x1x128xf32> to vector<1x128xf32>
    %c1_107 = arith.constant 1 : index
    %c0_108 = arith.constant 0 : index
    %c0_109 = arith.constant 0 : index
    %239 = vector.load %arg10[%c1_107, %c0_108, %c0_109] : memref<2x1x128xf32, #tpu.memory_space<vmem>>, vector<1x1x128xf32>
    %240 = vector.shape_cast %239 : vector<1x1x128xf32> to vector<1x128xf32>
    %cst_110 = arith.constant dense<0.000000e+00> : vector<16xf32>
    %241 = vector.multi_reduction <add>, %236, %cst_110 [1] : vector<16x128xf32> to vector<16xf32>
    %242 = vector.shape_cast %241 : vector<16xf32> to vector<16x1xf32>
    %cst_111 = arith.constant 1.280000e+02 : f32
    %243 = vector.broadcast %cst_111 : f32 to vector<16x1xf32>
    %244 = arith.divf %242, %243 : vector<16x1xf32>
    %245 = vector.broadcast %244 : vector<16x1xf32> to vector<16x128xf32>
    %246 = arith.subf %236, %245 : vector<16x128xf32>
    %247 = arith.mulf %246, %246 : vector<16x128xf32>
    %cst_112 = arith.constant dense<0.000000e+00> : vector<16xf32>
    %248 = vector.multi_reduction <add>, %247, %cst_112 [1] : vector<16x128xf32> to vector<16xf32>
    %249 = vector.shape_cast %248 : vector<16xf32> to vector<16x1xf32>
    %cst_113 = arith.constant 1.280000e+02 : f32
    %250 = vector.broadcast %cst_113 : f32 to vector<16x1xf32>
    %251 = arith.divf %249, %250 : vector<16x1xf32>
    %252 = vector.broadcast %244 : vector<16x1xf32> to vector<16x128xf32>
    %253 = arith.subf %236, %252 : vector<16x128xf32>
    %cst_114 = arith.constant 9.99999996E-13 : f32
    %254 = vector.broadcast %cst_114 : f32 to vector<16x1xf32>
    %255 = arith.addf %251, %254 : vector<16x1xf32>
    %256 = math.rsqrt %255 : vector<16x1xf32>
    %257 = vector.broadcast %256 : vector<16x1xf32> to vector<16x128xf32>
    %258 = arith.mulf %253, %257 : vector<16x128xf32>
    %259 = vector.broadcast %238 : vector<1x128xf32> to vector<16x128xf32>
    %260 = arith.mulf %258, %259 : vector<16x128xf32>
    %261 = vector.broadcast %240 : vector<1x128xf32> to vector<16x128xf32>
    %262 = arith.addf %260, %261 : vector<16x128xf32>
    %c1_115 = arith.constant 1 : index
    %c0_116 = arith.constant 0 : index
    %c0_117 = arith.constant 0 : index
    %263 = vector.load %arg11[%c1_115, %c0_116, %c0_117] : memref<2x128x256xf32, #tpu.memory_space<vmem>>, vector<1x128x256xf32>
    %264 = vector.shape_cast %263 : vector<1x128x256xf32> to vector<128x256xf32>
    %cst_118 = arith.constant dense<0.000000e+00> : vector<16x256xf32>
    %265 = tpu.matmul %262, %264, %cst_118 {dimension_numbers = #tpu.dot_dimension_numbers<[1], [0], [0], [1], [0, 0, 1, 1], [], []>} : vector<16x128xf32>, vector<128x256xf32>, vector<16x256xf32> -> vector<16x256xf32>
    %c1_119 = arith.constant 1 : index
    %c0_120 = arith.constant 0 : index
    %c0_121 = arith.constant 0 : index
    %266 = vector.load %arg12[%c1_119, %c0_120, %c0_121] : memref<2x1x256xf32, #tpu.memory_space<vmem>>, vector<1x1x256xf32>
    %267 = vector.shape_cast %266 : vector<1x1x256xf32> to vector<1x256xf32>
    %268 = vector.broadcast %267 : vector<1x256xf32> to vector<16x256xf32>
    %269 = arith.addf %265, %268 : vector<16x256xf32>
    %270 = arith.mulf %269, %269 : vector<16x256xf32>
    %271 = arith.mulf %269, %270 : vector<16x256xf32>
    %cst_122 = arith.constant 4.471500e-02 : f32
    %272 = vector.broadcast %cst_122 : f32 to vector<16x256xf32>
    %273 = arith.mulf %272, %271 : vector<16x256xf32>
    %274 = arith.addf %269, %273 : vector<16x256xf32>
    %cst_123 = arith.constant 0.797884583 : f32
    %275 = vector.broadcast %cst_123 : f32 to vector<16x256xf32>
    %276 = arith.mulf %275, %274 : vector<16x256xf32>
    %277 = math.tanh %276 : vector<16x256xf32>
    %cst_124 = arith.constant 1.000000e+00 : f32
    %278 = vector.broadcast %cst_124 : f32 to vector<16x256xf32>
    %279 = arith.addf %278, %277 : vector<16x256xf32>
    %cst_125 = arith.constant 5.000000e-01 : f32
    %280 = vector.broadcast %cst_125 : f32 to vector<16x256xf32>
    %281 = arith.mulf %280, %279 : vector<16x256xf32>
    %282 = arith.mulf %269, %281 : vector<16x256xf32>
    %c1_126 = arith.constant 1 : index
    %c0_127 = arith.constant 0 : index
    %c0_128 = arith.constant 0 : index
    %283 = vector.load %arg13[%c1_126, %c0_127, %c0_128] : memref<2x256x128xf32, #tpu.memory_space<vmem>>, vector<1x256x128xf32>
    %284 = vector.shape_cast %283 : vector<1x256x128xf32> to vector<256x128xf32>
    %cst_129 = arith.constant dense<0.000000e+00> : vector<16x128xf32>
    %285 = tpu.matmul %282, %284, %cst_129 {dimension_numbers = #tpu.dot_dimension_numbers<[1], [0], [0], [1], [0, 0, 1, 1], [], []>} : vector<16x256xf32>, vector<256x128xf32>, vector<16x128xf32> -> vector<16x128xf32>
    %c1_130 = arith.constant 1 : index
    %c0_131 = arith.constant 0 : index
    %c0_132 = arith.constant 0 : index
    %286 = vector.load %arg14[%c1_130, %c0_131, %c0_132] : memref<2x1x128xf32, #tpu.memory_space<vmem>>, vector<1x1x128xf32>
    %287 = vector.shape_cast %286 : vector<1x1x128xf32> to vector<1x128xf32>
    %288 = vector.broadcast %287 : vector<1x128xf32> to vector<16x128xf32>
    %289 = arith.addf %285, %288 : vector<16x128xf32>
    %290 = arith.addf %289, %262 : vector<16x128xf32>
    %c1_133 = arith.constant 1 : index
    %c0_134 = arith.constant 0 : index
    %c0_135 = arith.constant 0 : index
    %291 = vector.load %arg15[%c1_133, %c0_134, %c0_135] : memref<2x1x128xf32, #tpu.memory_space<vmem>>, vector<1x1x128xf32>
    %292 = vector.shape_cast %291 : vector<1x1x128xf32> to vector<1x128xf32>
    %c1_136 = arith.constant 1 : index
    %c0_137 = arith.constant 0 : index
    %c0_138 = arith.constant 0 : index
    %293 = vector.load %arg16[%c1_136, %c0_137, %c0_138] : memref<2x1x128xf32, #tpu.memory_space<vmem>>, vector<1x1x128xf32>
    %294 = vector.shape_cast %293 : vector<1x1x128xf32> to vector<1x128xf32>
    %cst_139 = arith.constant dense<0.000000e+00> : vector<16xf32>
    %295 = vector.multi_reduction <add>, %290, %cst_139 [1] : vector<16x128xf32> to vector<16xf32>
    %296 = vector.shape_cast %295 : vector<16xf32> to vector<16x1xf32>
    %cst_140 = arith.constant 1.280000e+02 : f32
    %297 = vector.broadcast %cst_140 : f32 to vector<16x1xf32>
    %298 = arith.divf %296, %297 : vector<16x1xf32>
    %299 = vector.broadcast %298 : vector<16x1xf32> to vector<16x128xf32>
    %300 = arith.subf %290, %299 : vector<16x128xf32>
    %301 = arith.mulf %300, %300 : vector<16x128xf32>
    %cst_141 = arith.constant dense<0.000000e+00> : vector<16xf32>
    %302 = vector.multi_reduction <add>, %301, %cst_141 [1] : vector<16x128xf32> to vector<16xf32>
    %303 = vector.shape_cast %302 : vector<16xf32> to vector<16x1xf32>
    %cst_142 = arith.constant 1.280000e+02 : f32
    %304 = vector.broadcast %cst_142 : f32 to vector<16x1xf32>
    %305 = arith.divf %303, %304 : vector<16x1xf32>
    %306 = vector.broadcast %298 : vector<16x1xf32> to vector<16x128xf32>
    %307 = arith.subf %290, %306 : vector<16x128xf32>
    %cst_143 = arith.constant 9.99999996E-13 : f32
    %308 = vector.broadcast %cst_143 : f32 to vector<16x1xf32>
    %309 = arith.addf %305, %308 : vector<16x1xf32>
    %310 = math.rsqrt %309 : vector<16x1xf32>
    %311 = vector.broadcast %310 : vector<16x1xf32> to vector<16x128xf32>
    %312 = arith.mulf %307, %311 : vector<16x128xf32>
    %313 = vector.broadcast %292 : vector<1x128xf32> to vector<16x128xf32>
    %314 = arith.mulf %312, %313 : vector<16x128xf32>
    %315 = vector.broadcast %294 : vector<1x128xf32> to vector<16x128xf32>
    %316 = arith.addf %314, %315 : vector<16x128xf32>
    %c0_144 = arith.constant 0 : index
    %c0_145 = arith.constant 0 : index
    %317 = vector.load %arg17[%c0_144, %c0_145] : memref<128x128xf32, #tpu.memory_space<vmem>>, vector<128x128xf32>
    %cst_146 = arith.constant dense<0.000000e+00> : vector<16x128xf32>
    %318 = tpu.matmul %316, %317, %cst_146 {dimension_numbers = #tpu.dot_dimension_numbers<[1], [0], [0], [1], [0, 0, 1, 1], [], []>} : vector<16x128xf32>, vector<128x128xf32>, vector<16x128xf32> -> vector<16x128xf32>
    %c0_147 = arith.constant 0 : index
    %c0_148 = arith.constant 0 : index
    %319 = vector.load %arg18[%c0_147, %c0_148] : memref<1x128xf32, #tpu.memory_space<vmem>>, vector<1x128xf32>
    %320 = vector.broadcast %319 : vector<1x128xf32> to vector<16x128xf32>
    %321 = arith.addf %318, %320 : vector<16x128xf32>
    %322 = vector.shape_cast %321 : vector<16x128xf32> to vector<2x8x128xf32>
    %c0_149 = arith.constant 0 : index
    %c0_150 = arith.constant 0 : index
    %c0_151 = arith.constant 0 : index
    %323 = vector.load %arg19[%c0_149, %c0_150, %c0_151] : memref<2x1x128xf32, #tpu.memory_space<vmem>>, vector<2x1x128xf32>
    %324 = vector.broadcast %323 : vector<2x1x128xf32> to vector<2x8x128xf32>
    %325 = arith.addf %322, %324 : vector<2x8x128xf32>
    %326 = arith.negf %325 : vector<2x8x128xf32>
    %327 = math.exp %326 : vector<2x8x128xf32>
    %cst_152 = arith.constant 1.000000e+00 : f32
    %328 = vector.broadcast %cst_152 : f32 to vector<2x8x128xf32>
    %329 = arith.addf %328, %327 : vector<2x8x128xf32>
    %330 = arith.divf %328, %329 : vector<2x8x128xf32>
    %331 = arith.mulf %330, %330 : vector<2x8x128xf32>
    %332 = arith.mulf %331, %331 : vector<2x8x128xf32>
    %333 = tpu.iota {dimensions = array<i32: 2>} : vector<2x8x128xi32>
    %c2_i32 = arith.constant 2 : i32
    %334 = vector.broadcast %c2_i32 : i32 to vector<2x8x128xi32>
    %335 = arith.cmpi slt, %333, %334 : vector<2x8x128xi32>
    %c10_i32 = arith.constant 10 : i32
    %336 = vector.broadcast %c10_i32 : i32 to vector<2x8x128xi32>
    %337 = arith.cmpi slt, %333, %336 : vector<2x8x128xi32>
    %cst_153 = arith.constant 0.000000e+00 : f32
    %338 = vector.broadcast %cst_153 : f32 to vector<2x8x128xf32>
    %339 = arith.select %337, %332, %338 : vector<2x8x128xi1>, vector<2x8x128xf32>
    %340 = arith.select %335, %330, %339 : vector<2x8x128xi1>, vector<2x8x128xf32>
    %c0_154 = arith.constant 0 : index
    %c0_155 = arith.constant 0 : index
    %c0_156 = arith.constant 0 : index
    %341 = vector.load %arg20[%c0_154, %c0_155, %c0_156] : memref<2x8x128xf32, #tpu.memory_space<vmem>>, vector<2x8x128xf32>
    tpu.vector_store %arg20[%c0_154, %c0_155, %c0_156], %340 {strides = array<i32>} : memref<2x8x128xf32, #tpu.memory_space<vmem>>, vector<2x8x128xf32>,
    return
  }
  func.func @transform_0(%arg0: i32) -> (i32, i32, i32) {
    %c0_i32 = arith.constant 0 : i32
    %c0_i32_0 = arith.constant 0 : i32
    %c0_i32_1 = arith.constant 0 : i32
    return %arg0, %c0_i32, %c0_i32_0 : i32, i32, i32
  }
  func.func @transform_1(%arg0: i32) -> (i32, i32, i32) {
    %c0_i32 = arith.constant 0 : i32
    %c0_i32_0 = arith.constant 0 : i32
    %c0_i32_1 = arith.constant 0 : i32
    return %arg0, %c0_i32, %c0_i32_0 : i32, i32, i32
  }
  func.func @transform_2(%arg0: i32) -> (i32, i32) {
    %c0_i32 = arith.constant 0 : i32
    %c0_i32_0 = arith.constant 0 : i32
    %c0_i32_1 = arith.constant 0 : i32
    return %c0_i32, %c0_i32_0 : i32, i32
  }
  func.func @transform_3(%arg0: i32) -> (i32, i32) {
    %c0_i32 = arith.constant 0 : i32
    %c0_i32_0 = arith.constant 0 : i32
    %c0_i32_1 = arith.constant 0 : i32
    return %c0_i32, %c0_i32_0 : i32, i32
  }
  func.func @transform_4(%arg0: i32) -> (i32, i32, i32) {
    %c0_i32 = arith.constant 0 : i32
    %c0_i32_0 = arith.constant 0 : i32
    %c0_i32_1 = arith.constant 0 : i32
    %c0_i32_2 = arith.constant 0 : i32
    return %c0_i32, %c0_i32_0, %c0_i32_1 : i32, i32, i32
  }
  func.func @transform_5(%arg0: i32) -> (i32, i32, i32) {
    %c0_i32 = arith.constant 0 : i32
    %c0_i32_0 = arith.constant 0 : i32
    %c0_i32_1 = arith.constant 0 : i32
    %c0_i32_2 = arith.constant 0 : i32
    return %c0_i32, %c0_i32_0, %c0_i32_1 : i32, i32, i32
  }
  func.func @transform_6(%arg0: i32) -> (i32, i32, i32, i32) {
    %c0_i32 = arith.constant 0 : i32
    %c0_i32_0 = arith.constant 0 : i32
    %c0_i32_1 = arith.constant 0 : i32
    %c0_i32_2 = arith.constant 0 : i32
    %c0_i32_3 = arith.constant 0 : i32
    return %c0_i32, %c0_i32_0, %c0_i32_1, %c0_i32_2 : i32, i32, i32, i32
  }
  func.func @transform_7(%arg0: i32) -> (i32, i32, i32) {
    %c0_i32 = arith.constant 0 : i32
    %c0_i32_0 = arith.constant 0 : i32
    %c0_i32_1 = arith.constant 0 : i32
    %c0_i32_2 = arith.constant 0 : i32
    return %c0_i32, %c0_i32_0, %c0_i32_1 : i32, i32, i32
  }
  func.func @transform_8(%arg0: i32) -> (i32, i32, i32) {
    %c0_i32 = arith.constant 0 : i32
    %c0_i32_0 = arith.constant 0 : i32
    %c0_i32_1 = arith.constant 0 : i32
    %c0_i32_2 = arith.constant 0 : i32
    return %c0_i32, %c0_i32_0, %c0_i32_1 : i32, i32, i32
  }
  func.func @transform_9(%arg0: i32) -> (i32, i32, i32) {
    %c0_i32 = arith.constant 0 : i32
    %c0_i32_0 = arith.constant 0 : i32
    %c0_i32_1 = arith.constant 0 : i32
    %c0_i32_2 = arith.constant 0 : i32
    return %c0_i32, %c0_i32_0, %c0_i32_1 : i32, i32, i32
  }
  func.func @transform_10(%arg0: i32) -> (i32, i32, i32) {
    %c0_i32 = arith.constant 0 : i32
    %c0_i32_0 = arith.constant 0 : i32
    %c0_i32_1 = arith.constant 0 : i32
    %c0_i32_2 = arith.constant 0 : i32
    return %c0_i32, %c0_i32_0, %c0_i32_1 : i32, i32, i32
  }
  func.func @transform_11(%arg0: i32) -> (i32, i32, i32) {
    %c0_i32 = arith.constant 0 : i32
    %c0_i32_0 = arith.constant 0 : i32
    %c0_i32_1 = arith.constant 0 : i32
    %c0_i32_2 = arith.constant 0 : i32
    return %c0_i32, %c0_i32_0, %c0_i32_1 : i32, i32, i32
  }
  func.func @transform_12(%arg0: i32) -> (i32, i32, i32) {
    %c0_i32 = arith.constant 0 : i32
    %c0_i32_0 = arith.constant 0 : i32
    %c0_i32_1 = arith.constant 0 : i32
    %c0_i32_2 = arith.constant 0 : i32
    return %c0_i32, %c0_i32_0, %c0_i32_1 : i32, i32, i32
  }
  func.func @transform_13(%arg0: i32) -> (i32, i32, i32) {
    %c0_i32 = arith.constant 0 : i32
    %c0_i32_0 = arith.constant 0 : i32
    %c0_i32_1 = arith.constant 0 : i32
    %c0_i32_2 = arith.constant 0 : i32
    return %c0_i32, %c0_i32_0, %c0_i32_1 : i32, i32, i32
  }
  func.func @transform_14(%arg0: i32) -> (i32, i32, i32) {
    %c0_i32 = arith.constant 0 : i32
    %c0_i32_0 = arith.constant 0 : i32
    %c0_i32_1 = arith.constant 0 : i32
    %c0_i32_2 = arith.constant 0 : i32
    return %c0_i32, %c0_i32_0, %c0_i32_1 : i32, i32, i32
  }
  func.func @transform_15(%arg0: i32) -> (i32, i32, i32) {
    %c0_i32 = arith.constant 0 : i32
    %c0_i32_0 = arith.constant 0 : i32
    %c0_i32_1 = arith.constant 0 : i32
    %c0_i32_2 = arith.constant 0 : i32
    return %c0_i32, %c0_i32_0, %c0_i32_1 : i32, i32, i32
  }
  func.func @transform_16(%arg0: i32) -> (i32, i32) {
    %c0_i32 = arith.constant 0 : i32
    %c0_i32_0 = arith.constant 0 : i32
    %c0_i32_1 = arith.constant 0 : i32
    return %c0_i32, %c0_i32_0 : i32, i32
  }
  func.func @transform_17(%arg0: i32) -> (i32, i32) {
    %c0_i32 = arith.constant 0 : i32
    %c0_i32_0 = arith.constant 0 : i32
    %c0_i32_1 = arith.constant 0 : i32
    return %c0_i32, %c0_i32_0 : i32, i32
  }
  func.func @transform_18(%arg0: i32) -> (i32, i32, i32) {
    %c0_i32 = arith.constant 0 : i32
    %c0_i32_0 = arith.constant 0 : i32
    %c0_i32_1 = arith.constant 0 : i32
    return %arg0, %c0_i32, %c0_i32_0 : i32, i32, i32
  }
  func.func @transform_19(%arg0: i32) -> (i32, i32, i32) {
    %c0_i32 = arith.constant 0 : i32
    %c0_i32_0 = arith.constant 0 : i32
    %c0_i32_1 = arith.constant 0 : i32
    return %arg0, %c0_i32, %c0_i32_0 : i32, i32, i32
  }
}

</mosaic_0001>

<llo_original>
// kernel: object_model_forward.1
$region0: #{object_model_forward.1}
  #allocation0 [shape = 'u32[]', space=smem, size = 0x4, offset = 0x4, fixed_abs, tag = 'smem constant byte address 0x4 - core index']
  #allocation1 [shape = 'u32[72,128]{1,0:T(1,128)}', space=vmem, size = 0x9000, scoped, tag = 'internal scratch']
  %s0 = inlined_call_operand.vmem [shape: f32[4,8,128], index: 0, kind: input, shape index: {}]
  %s1 = inlined_call_operand.vmem [shape: f32[4,1,8], index: 1, kind: input, shape index: {}]
  %s2 = inlined_call_operand.vmem [shape: f32[1,128], index: 2, kind: input, shape index: {}]
  %s3 = inlined_call_operand.vmem [shape: f32[1,128], index: 3, kind: input, shape index: {}]
  %s4 = inlined_call_operand.hbm [shape: f32[2,128,768], index: 4, kind: input, shape index: {}]
  %s5 = inlined_call_operand.vmem [shape: f32[2,1,768], index: 5, kind: input, shape index: {}]
  %s6 = inlined_call_operand.hbm [shape: f32[2,2,128,128], index: 6, kind: input, shape index: {}]
  %s7 = inlined_call_operand.vmem [shape: f32[2,1,128], index: 7, kind: input, shape index: {}]
  %s8 = inlined_call_operand.vmem [shape: f32[2,1,128], index: 8, kind: input, shape index: {}]
  %s9 = inlined_call_operand.vmem [shape: f32[2,1,128], index: 9, kind: input, shape index: {}]
  %s10 = inlined_call_operand.hbm [shape: f32[2,128,256], index: 10, kind: input, shape index: {}]
  %s11 = inlined_call_operand.vmem [shape: f32[2,1,256], index: 11, kind: input, shape index: {}]
  %s12 = inlined_call_operand.hbm [shape: f32[2,256,128], index: 12, kind: input, shape index: {}]
  %s13 = inlined_call_operand.vmem [shape: f32[2,1,128], index: 13, kind: input, shape index: {}]
  %s14 = inlined_call_operand.vmem [shape: f32[2,1,128], index: 14, kind: input, shape index: {}]
  %s15 = inlined_call_operand.vmem [shape: f32[2,1,128], index: 15, kind: input, shape index: {}]
  %s16 = inlined_call_operand.vmem [shape: f32[128,128], index: 16, kind: input, shape index: {}]
  %s17 = inlined_call_operand.vmem [shape: f32[1,128], index: 17, kind: input, shape index: {}]
  %s18 = inlined_call_operand.vmem [shape: f32[4,1,128], index: 18, kind: input, shape index: {}]
  %s19 = inlined_call_operand.vmem [shape: f32[4,8,128], index: 19, kind: output, shape index: {}]
  %s20 = sld [smem:[#allocation0]]
  $region125: #{object_model_forward.1} parent=0
    _
  %s22 = ssub.s32 1, %s20
  %s23 = scalar_select 0, %s22, %s20
  $region1: #{object_model_forward.1} parent=0
    #allocation2 [shape = 'u8[786432]{0}', space=vmem, size = 0xc0000, scoped, tag = 'input window, operand 4, single buffered']
    #allocation3 [shape = 's32[2]{0}', space=sflag, size = 0x8, scoped, tag = 'scoped memory for object_model_forward.1']
    #allocation4 [shape = 'u8[262144]{0}', space=vmem, size = 0x40000, scoped, tag = 'input window, operand 6, single buffered']
    #allocation5 [shape = 's32[1]{0}', space=sflag, size = 0x4, scoped, tag = 'scoped memory for object_model_forward.1']
    #allocation6 [shape = 'u8[262144]{0}', space=vmem, size = 0x40000, scoped, tag = 'input window, operand 10, single buffered']
    #allocation7 [shape = 'u8[262144]{0}', space=vmem, size = 0x40000, scoped, tag = 'input window, operand 12, single buffered']
    #allocation8 [shape = 's32[1]{0}', space=sflag, size = 0x4, scoped, tag = 'scoped memory for object_model_forward.1']
    %24 = vsyncpa [#allocation3], 0
    %25 = vsyncpa [#allocation5], 0
    %26 = vsyncpa [#allocation8], 0
    loop: start=0, step=1, limit=4
    $region2: #{object_model_forward.1} parent=1 // loop_pre_header
      _
    $region3: #{object_model_forward.1} parent=1 // loop_header
      %s28 = sphi 0, %s32
      %p29 = scmp.ge.s32.totalorder %s28, 4
      %s38 = sphi 0, %s40
      %s41 = sphi 0, %s38
      %s42 = sphi 0, %s41
      %s58 = sphi 0, %s42
      %s64 = sphi 0, %s66
      %s67 = sphi 0, %s64
      %s68 = sphi 0, %s67
      %s84 = sphi 0, %s68
      %s88 = sphi 0, %s88
      %s90 = sphi 0, %s88
      %s91 = sphi 0, %s90
      %s105 = sphi 0, %s91
      %s109 = sphi 0, %s109
      %s111 = sphi 0, %s109
      %s112 = sphi 0, %s111
      %s126 = sphi 0, %s112
      %s130 = sphi 0, %s130
      %s132 = sphi 0, %s130
      %s133 = sphi 0, %s132
      %s147 = sphi 0, %s133
      %s151 = sphi 0, %s151
      %s153 = sphi 0, %s151
      %s154 = sphi 0, %s153
      %s168 = sphi 0, %s154
      %s172 = sphi 0, %s172
      %s174 = sphi 0, %s172
      %s175 = sphi 0, %s174
      %s189 = sphi 0, %s175
      %s193 = sphi 0, %s193
      %s195 = sphi 0, %s193
      %s196 = sphi 0, %s195
      %s210 = sphi 0, %s196
      %s214 = sphi 0, %s214
      %s216 = sphi 0, %s214
      %s217 = sphi 0, %s216
      %s231 = sphi 0, %s217
      %s235 = sphi 0, %s235
      %s237 = sphi 0, %s235
      %s238 = sphi 0, %s237
      %s252 = sphi 0, %s238
      %s256 = sphi 0, %s256
      %s258 = sphi 0, %s256
      %s259 = sphi 0, %s258
      %s273 = sphi 0, %s259
      %s277 = sphi 0, %s277
      %s279 = sphi 0, %s277
      %s280 = sphi 0, %s279
      %s294 = sphi 0, %s280
      %s298 = sphi 0, %s298
      %s300 = sphi 0, %s298
      %s301 = sphi 0, %s300
      %s315 = sphi 0, %s301
      %s319 = sphi 0, %s319
      %s321 = sphi 0, %s319
      %s322 = sphi 0, %s321
      %s336 = sphi 0, %s322
      %s340 = sphi 0, %s340
      %s342 = sphi 0, %s340
      %s343 = sphi 0, %s342
      %s357 = sphi 0, %s343
      %s361 = sphi 0, %s361
      %s363 = sphi 0, %s361
      %s364 = sphi 0, %s363
      %s378 = sphi 0, %s364
      %s382 = sphi 0, %s382
      %s384 = sphi 0, %s382
      %s385 = sphi 0, %s384
      %s399 = sphi 0, %s385
      %s403 = sphi 0, %s403
      %s405 = sphi 0, %s403
      %s406 = sphi 0, %s405
      %s420 = sphi 0, %s406
      %s426 = sphi 0, %s428
      %s429 = sphi 0, %s426
      %s430 = sphi 0, %s429
      %s446 = sphi 0, %s430
      %s452 = sphi 0, %s454
      %s455 = sphi 0, %s452
      %s456 = sphi 0, %s455
      %s472 = sphi 0, %s456
    $region4: #{object_model_forward.1} parent=1 // loop_header_branch
      %31 = sbr.rel (%p29) target = $region8
    $region5: #{object_model_forward.1} parent=1 // loop_body
      %s33 = ssub.s32 %s28, 1
      %s34 = ssub.s32 %s28, 2
      %s35 = sadd.s32 %s28, 1
      %s36 = ssub.s32 %s28, %s35
      %p37 = scmp.eq.s32.totalorder %s36, 0
      %s39 = sadd.s32 %s38, 1
      %s40 = scalar_select %p37, %s38, %s39
      %p43 = pneg %p37
      %p44 = scmp.eq.s32.totalorder %s28, 1
      %p45 = por %p43, %p44
      %p46 = scmp.ne.s32.totalorder %s38, %s41
      %p47 = scmp.eq.s32.totalorder %s28, 0
      %p48 = por %p46, %p47
      %p49 = scmp.ne.s32.totalorder %s38, %s41
      %p50 = scmp.eq.s32.totalorder %s33, 1
      %p51 = por %p49, %p50
      %p52 = scmp.ne.s32.totalorder %s41, %s42
      %p53 = scmp.eq.s32.totalorder %s33, 0
      %p54 = por %p52, %p53
      %p55 = scmp.ne.s32.totalorder %s41, %s42
      %p56 = scmp.eq.s32.totalorder %s34, 1
      %p57 = por %p55, %p56
      %p59 = scmp.ne.s32.totalorder %s42, %s58
      %p60 = scmp.eq.s32.totalorder %s34, 0
      %p61 = por %p59, %p60
      %s62 = ssub.s32 %s28, %s35
      %p63 = scmp.eq.s32.totalorder %s62, 0
      %s65 = sadd.s32 %s64, 1
      %s66 = scalar_select %p63, %s64, %s65
      %p69 = pneg %p63
      %p70 = scmp.eq.s32.totalorder %s28, 1
      %p71 = por %p69, %p70
      %p72 = scmp.ne.s32.totalorder %s64, %s67
      %p73 = scmp.eq.s32.totalorder %s28, 0
      %p74 = por %p72, %p73
      %p75 = scmp.ne.s32.totalorder %s64, %s67
      %p76 = scmp.eq.s32.totalorder %s33, 1
      %p77 = por %p75, %p76
      %p78 = scmp.ne.s32.totalorder %s67, %s68
      %p79 = scmp.eq.s32.totalorder %s33, 0
      %p80 = por %p78, %p79
      %p81 = scmp.ne.s32.totalorder %s67, %s68
      %p82 = scmp.eq.s32.totalorder %s34, 1
      %p83 = por %p81, %p82
      %p85 = scmp.ne.s32.totalorder %s68, %s84
      %p86 = scmp.eq.s32.totalorder %s34, 0
      %p87 = por %p85, %p86
      %s89 = sadd.s32 %s88, 1
      %p92 = scmp.eq.s32.totalorder %s28, 1
      %p93 = scmp.ne.s32.totalorder %s88, %s90
      %p94 = scmp.eq.s32.totalorder %s28, 0
      %p95 = por %p93, %p94
      %p96 = scmp.ne.s32.totalorder %s88, %s90
      %p97 = scmp.eq.s32.totalorder %s33, 1
      %p98 = por %p96, %p97
      %p99 = scmp.ne.s32.totalorder %s90, %s91
      %p100 = scmp.eq.s32.totalorder %s33, 0
      %p101 = por %p99, %p100
      %p102 = scmp.ne.s32.totalorder %s90, %s91
      %p103 = scmp.eq.s32.totalorder %s34, 1
      %p104 = por %p102, %p103
      %p106 = scmp.ne.s32.totalorder %s91, %s105
      %p107 = scmp.eq.s32.totalorder %s34, 0
      %p108 = por %p106, %p107
      %s110 = sadd.s32 %s109, 1
      %p113 = scmp.eq.s32.totalorder %s28, 1
      %p114 = scmp.ne.s32.totalorder %s109, %s111
      %p115 = scmp.eq.s32.totalorder %s28, 0
      %p116 = por %p114, %p115
      %p117 = scmp.ne.s32.totalorder %s109, %s111
      %p118 = scmp.eq.s32.totalorder %s33, 1
      %p119 = por %p117, %p118
      %p120 = scmp.ne.s32.totalorder %s111, %s112
      %p121 = scmp.eq.s32.totalorder %s33, 0
      %p122 = por %p120, %p121
      %p123 = scmp.ne.s32.totalorder %s111, %s112
      %p124 = scmp.eq.s32.totalorder %s34, 1
      %p125 = por %p123, %p124
      %p127 = scmp.ne.s32.totalorder %s112, %s126
      %p128 = scmp.eq.s32.totalorder %s34, 0
      %p129 = por %p127, %p128
      %s131 = sadd.s32 %s130, 1
      %p134 = scmp.eq.s32.totalorder %s28, 1
      %p135 = scmp.ne.s32.totalorder %s130, %s132
      %p136 = scmp.eq.s32.totalorder %s28, 0
      %p137 = por %p135, %p136
      %p138 = scmp.ne.s32.totalorder %s130, %s132
      %p139 = scmp.eq.s32.totalorder %s33, 1
      %p140 = por %p138, %p139
      %p141 = scmp.ne.s32.totalorder %s132, %s133
      %p142 = scmp.eq.s32.totalorder %s33, 0
      %p143 = por %p141, %p142
      %p144 = scmp.ne.s32.totalorder %s132, %s133
      %p145 = scmp.eq.s32.totalorder %s34, 1
      %p146 = por %p144, %p145
      %p148 = scmp.ne.s32.totalorder %s133, %s147
      %p149 = scmp.eq.s32.totalorder %s34, 0
      %p150 = por %p148, %p149
      %s152 = sadd.s32 %s151, 1
      %p155 = scmp.eq.s32.totalorder %s28, 1
      %p156 = scmp.ne.s32.totalorder %s151, %s153
      %p157 = scmp.eq.s32.totalorder %s28, 0
      %p158 = por %p156, %p157
      %p159 = scmp.ne.s32.totalorder %s151, %s153
      %p160 = scmp.eq.s32.totalorder %s33, 1
      %p161 = por %p159, %p160
      %p162 = scmp.ne.s32.totalorder %s153, %s154
      %p163 = scmp.eq.s32.totalorder %s33, 0
      %p164 = por %p162, %p163
      %p165 = scmp.ne.s32.totalorder %s153, %s154
      %p166 = scmp.eq.s32.totalorder %s34, 1
      %p167 = por %p165, %p166
      %p169 = scmp.ne.s32.totalorder %s154, %s168
      %p170 = scmp.eq.s32.totalorder %s34, 0
      %p171 = por %p169, %p170
      %s173 = sadd.s32 %s172, 1
      %p176 = scmp.eq.s32.totalorder %s28, 1
      %p177 = scmp.ne.s32.totalorder %s172, %s174
      %p178 = scmp.eq.s32.totalorder %s28, 0
      %p179 = por %p177, %p178
      %p180 = scmp.ne.s32.totalorder %s172, %s174
      %p181 = scmp.eq.s32.totalorder %s33, 1
      %p182 = por %p180, %p181
      %p183 = scmp.ne.s32.totalorder %s174, %s175
      %p184 = scmp.eq.s32.totalorder %s33, 0
      %p185 = por %p183, %p184
      %p186 = scmp.ne.s32.totalorder %s174, %s175
      %p187 = scmp.eq.s32.totalorder %s34, 1
      %p188 = por %p186, %p187
      %p190 = scmp.ne.s32.totalorder %s175, %s189
      %p191 = scmp.eq.s32.totalorder %s34, 0
      %p192 = por %p190, %p191
      %s194 = sadd.s32 %s193, 1
      %p197 = scmp.eq.s32.totalorder %s28, 1
      %p198 = scmp.ne.s32.totalorder %s193, %s195
      %p199 = scmp.eq.s32.totalorder %s28, 0
      %p200 = por %p198, %p199
      %p201 = scmp.ne.s32.totalorder %s193, %s195
      %p202 = scmp.eq.s32.totalorder %s33, 1
      %p203 = por %p201, %p202
      %p204 = scmp.ne.s32.totalorder %s195, %s196
      %p205 = scmp.eq.s32.totalorder %s33, 0
      %p206 = por %p204, %p205
      %p207 = scmp.ne.s32.totalorder %s195, %s196
      %p208 = scmp.eq.s32.totalorder %s34, 1
      %p209 = por %p207, %p208
      %p211 = scmp.ne.s32.totalorder %s196, %s210
      %p212 = scmp.eq.s32.totalorder %s34, 0
      %p213 = por %p211, %p212
      %s215 = sadd.s32 %s214, 1
      %p218 = scmp.eq.s32.totalorder %s28, 1
      %p219 = scmp.ne.s32.totalorder %s214, %s216
      %p220 = scmp.eq.s32.totalorder %s28, 0
      %p221 = por %p219, %p220
      %p222 = scmp.ne.s32.totalorder %s214, %s216
      %p223 = scmp.eq.s32.totalorder %s33, 1
      %p224 = por %p222, %p223
      %p225 = scmp.ne.s32.totalorder %s216, %s217
      %p226 = scmp.eq.s32.totalorder %s33, 0
      %p227 = por %p225, %p226
      %p228 = scmp.ne.s32.totalorder %s216, %s217
      %p229 = scmp.eq.s32.totalorder %s34, 1
      %p230 = por %p228, %p229
      %p232 = scmp.ne.s32.totalorder %s217, %s231
      %p233 = scmp.eq.s32.totalorder %s34, 0
      %p234 = por %p232, %p233
      %s236 = sadd.s32 %s235, 1
      %p239 = scmp.eq.s32.totalorder %s28, 1
      %p240 = scmp.ne.s32.totalorder %s235, %s237
      %p241 = scmp.eq.s32.totalorder %s28, 0
      %p242 = por %p240, %p241
      %p243 = scmp.ne.s32.totalorder %s235, %s237
      %p244 = scmp.eq.s32.totalorder %s33, 1
      %p245 = por %p243, %p244
      %p246 = scmp.ne.s32.totalorder %s237, %s238
      %p247 = scmp.eq.s32.totalorder %s33, 0
      %p248 = por %p246, %p247
      %p249 = scmp.ne.s32.totalorder %s237, %s238
      %p250 = scmp.eq.s32.totalorder %s34, 1
      %p251 = por %p249, %p250
      %p253 = scmp.ne.s32.totalorder %s238, %s252
      %p254 = scmp.eq.s32.totalorder %s34, 0
      %p255 = por %p253, %p254
      %s257 = sadd.s32 %s256, 1
      %p260 = scmp.eq.s32.totalorder %s28, 1
      %p261 = scmp.ne.s32.totalorder %s256, %s258
      %p262 = scmp.eq.s32.totalorder %s28, 0
      %p263 = por %p261, %p262
      %p264 = scmp.ne.s32.totalorder %s256, %s258
      %p265 = scmp.eq.s32.totalorder %s33, 1
      %p266 = por %p264, %p265
      %p267 = scmp.ne.s32.totalorder %s258, %s259
      %p268 = scmp.eq.s32.totalorder %s33, 0
      %p269 = por %p267, %p268
      %p270 = scmp.ne.s32.totalorder %s258, %s259
      %p271 = scmp.eq.s32.totalorder %s34, 1
      %p272 = por %p270, %p271
      %p274 = scmp.ne.s32.totalorder %s259, %s273
      %p275 = scmp.eq.s32.totalorder %s34, 0
      %p276 = por %p274, %p275
      %s278 = sadd.s32 %s277, 1
      %p281 = scmp.eq.s32.totalorder %s28, 1
      %p282 = scmp.ne.s32.totalorder %s277, %s279
      %p283 = scmp.eq.s32.totalorder %s28, 0
      %p284 = por %p282, %p283
      %p285 = scmp.ne.s32.totalorder %s277, %s279
      %p286 = scmp.eq.s32.totalorder %s33, 1
      %p287 = por %p285, %p286
      %p288 = scmp.ne.s32.totalorder %s279, %s280
      %p289 = scmp.eq.s32.totalorder %s33, 0
      %p290 = por %p288, %p289
      %p291 = scmp.ne.s32.totalorder %s279, %s280
      %p292 = scmp.eq.s32.totalorder %s34, 1
      %p293 = por %p291, %p292
      %p295 = scmp.ne.s32.totalorder %s280, %s294
      %p296 = scmp.eq.s32.totalorder %s34, 0
      %p297 = por %p295, %p296
      %s299 = sadd.s32 %s298, 1
      %p302 = scmp.eq.s32.totalorder %s28, 1
      %p303 = scmp.ne.s32.totalorder %s298, %s300
      %p304 = scmp.eq.s32.totalorder %s28, 0
      %p305 = por %p303, %p304
      %p306 = scmp.ne.s32.totalorder %s298, %s300
      %p307 = scmp.eq.s32.totalorder %s33, 1
      %p308 = por %p306, %p307
      %p309 = scmp.ne.s32.totalorder %s300, %s301
      %p310 = scmp.eq.s32.totalorder %s33, 0
      %p311 = por %p309, %p310
      %p312 = scmp.ne.s32.totalorder %s300, %s301
      %p313 = scmp.eq.s32.totalorder %s34, 1
      %p314 = por %p312, %p313
      %p316 = scmp.ne.s32.totalorder %s301, %s315
      %p317 = scmp.eq.s32.totalorder %s34, 0
      %p318 = por %p316, %p317
      %s320 = sadd.s32 %s319, 1
      %p323 = scmp.eq.s32.totalorder %s28, 1
      %p324 = scmp.ne.s32.totalorder %s319, %s321
      %p325 = scmp.eq.s32.totalorder %s28, 0
      %p326 = por %p324, %p325
      %p327 = scmp.ne.s32.totalorder %s319, %s321
      %p328 = scmp.eq.s32.totalorder %s33, 1
      %p329 = por %p327, %p328
      %p330 = scmp.ne.s32.totalorder %s321, %s322
      %p331 = scmp.eq.s32.totalorder %s33, 0
      %p332 = por %p330, %p331
      %p333 = scmp.ne.s32.totalorder %s321, %s322
      %p334 = scmp.eq.s32.totalorder %s34, 1
      %p335 = por %p333, %p334
      %p337 = scmp.ne.s32.totalorder %s322, %s336
      %p338 = scmp.eq.s32.totalorder %s34, 0
      %p339 = por %p337, %p338
      %s341 = sadd.s32 %s340, 1
      %p344 = scmp.eq.s32.totalorder %s28, 1
      %p345 = scmp.ne.s32.totalorder %s340, %s342
      %p346 = scmp.eq.s32.totalorder %s28, 0
      %p347 = por %p345, %p346
      %p348 = scmp.ne.s32.totalorder %s340, %s342
      %p349 = scmp.eq.s32.totalorder %s33, 1
      %p350 = por %p348, %p349
      %p351 = scmp.ne.s32.totalorder %s342, %s343
      %p352 = scmp.eq.s32.totalorder %s33, 0
      %p353 = por %p351, %p352
      %p354 = scmp.ne.s32.totalorder %s342, %s343
      %p355 = scmp.eq.s32.totalorder %s34, 1
      %p356 = por %p354, %p355
      %p358 = scmp.ne.s32.totalorder %s343, %s357
      %p359 = scmp.eq.s32.totalorder %s34, 0
      %p360 = por %p358, %p359
      %s362 = sadd.s32 %s361, 1
      %p365 = scmp.eq.s32.totalorder %s28, 1
      %p366 = scmp.ne.s32.totalorder %s361, %s363
      %p367 = scmp.eq.s32.totalorder %s28, 0
      %p368 = por %p366, %p367
      %p369 = scmp.ne.s32.totalorder %s361, %s363
      %p370 = scmp.eq.s32.totalorder %s33, 1
      %p371 = por %p369, %p370
      %p372 = scmp.ne.s32.totalorder %s363, %s364
      %p373 = scmp.eq.s32.totalorder %s33, 0
      %p374 = por %p372, %p373
      %p375 = scmp.ne.s32.totalorder %s363, %s364
      %p376 = scmp.eq.s32.totalorder %s34, 1
      %p377 = por %p375, %p376
      %p379 = scmp.ne.s32.totalorder %s364, %s378
      %p380 = scmp.eq.s32.totalorder %s34, 0
      %p381 = por %p379, %p380
      %s383 = sadd.s32 %s382, 1
      %p386 = scmp.eq.s32.totalorder %s28, 1
      %p387 = scmp.ne.s32.totalorder %s382, %s384
      %p388 = scmp.eq.s32.totalorder %s28, 0
      %p389 = por %p387, %p388
      %p390 = scmp.ne.s32.totalorder %s382, %s384
      %p391 = scmp.eq.s32.totalorder %s33, 1
      %p392 = por %p390, %p391
      %p393 = scmp.ne.s32.totalorder %s384, %s385
      %p394 = scmp.eq.s32.totalorder %s33, 0
      %p395 = por %p393, %p394
      %p396 = scmp.ne.s32.totalorder %s384, %s385
      %p397 = scmp.eq.s32.totalorder %s34, 1
      %p398 = por %p396, %p397
      %p400 = scmp.ne.s32.totalorder %s385, %s399
      %p401 = scmp.eq.s32.totalorder %s34, 0
      %p402 = por %p400, %p401
      %s404 = sadd.s32 %s403, 1
      %p407 = scmp.eq.s32.totalorder %s28, 1
      %p408 = scmp.ne.s32.totalorder %s403, %s405
      %p409 = scmp.eq.s32.totalorder %s28, 0
      %p410 = por %p408, %p409
      %p411 = scmp.ne.s32.totalorder %s403, %s405
      %p412 = scmp.eq.s32.totalorder %s33, 1
      %p413 = por %p411, %p412
      %p414 = scmp.ne.s32.totalorder %s405, %s406
      %p415 = scmp.eq.s32.totalorder %s33, 0
      %p416 = por %p414, %p415
      %p417 = scmp.ne.s32.totalorder %s405, %s406
      %p418 = scmp.eq.s32.totalorder %s34, 1
      %p419 = por %p417, %p418
      %p421 = scmp.ne.s32.totalorder %s406, %s420
      %p422 = scmp.eq.s32.totalorder %s34, 0
      %p423 = por %p421, %p422
      %s424 = ssub.s32 %s28, %s35
      %p425 = scmp.eq.s32.totalorder %s424, 0
      %s427 = sadd.s32 %s426, 1
      %s428 = scalar_select %p425, %s426, %s427
      %p431 = pneg %p425
      %p432 = scmp.eq.s32.totalorder %s28, 1
      %p433 = por %p431, %p432
      %p434 = scmp.ne.s32.totalorder %s426, %s429
      %p435 = scmp.eq.s32.totalorder %s28, 0
      %p436 = por %p434, %p435
      %p437 = scmp.ne.s32.totalorder %s426, %s429
      %p438 = scmp.eq.s32.totalorder %s33, 1
      %p439 = por %p437, %p438
      %p440 = scmp.ne.s32.totalorder %s429, %s430
      %p441 = scmp.eq.s32.totalorder %s33, 0
      %p442 = por %p440, %p441
      %p443 = scmp.ne.s32.totalorder %s429, %s430
      %p444 = scmp.eq.s32.totalorder %s34, 1
      %p445 = por %p443, %p444
      %p447 = scmp.ne.s32.totalorder %s430, %s446
      %p448 = scmp.eq.s32.totalorder %s34, 0
      %p449 = por %p447, %p448
      %s450 = ssub.s32 %s28, %s35
      %p451 = scmp.eq.s32.totalorder %s450, 0
      %s453 = sadd.s32 %s452, 1
      %s454 = scalar_select %p451, %s452, %s453
      %p457 = pneg %p451
      %p458 = scmp.eq.s32.totalorder %s28, 1
      %p459 = por %p457, %p458
      %p460 = scmp.ne.s32.totalorder %s452, %s455
      %p461 = scmp.eq.s32.totalorder %s28, 0
      %p462 = por %p460, %p461
      %p463 = scmp.ne.s32.totalorder %s452, %s455
      %p464 = scmp.eq.s32.totalorder %s33, 1
      %p465 = por %p463, %p464
      %p466 = scmp.ne.s32.totalorder %s455, %s456
      %p467 = scmp.eq.s32.totalorder %s33, 0
      %p468 = por %p466, %p467
      %p469 = scmp.ne.s32.totalorder %s455, %s456
      %p470 = scmp.eq.s32.totalorder %s34, 1
      %p471 = por %p469, %p470
      %p473 = scmp.ne.s32.totalorder %s456, %s472
      %p474 = scmp.eq.s32.totalorder %s34, 0
      %p475 = por %p473, %p474
      %p476 = scmp.le.s32.totalorder 1, %s28
      %p477 = scmp.lt.s32.totalorder %s28, 3
      %p478 = pnand %p476, %p477
      %p479 = pneg %p478
      // Predicated region
      $region9: #{object_model_forward.1} parent=5 // pred_check
        _
      $region10: #{object_model_forward.1} parent=5 // pred_check_branch
        %481 = sbr.rel (%p478) target = $region12
      $region11: #{object_model_forward.1} parent=5 // pred_region
        %s482 = ssub.s32 %s28, 1
        // Predicated region
        $region13: #{object_model_forward.1} parent=11 // pred_check
          %p483 = pneg %p101
        $region14: #{object_model_forward.1} parent=11 // pred_check_branch
          %485 = sbr.rel (%p483) target = $region16
        $region15: #{object_model_forward.1} parent=11 // pred_region
          _
        $region16: #{object_model_forward.1} parent=11 // pred_fallthru
          _
        // Predicated region
        $region17: #{object_model_forward.1} parent=11 // pred_check
          %p486 = pneg %p122
        $region18: #{object_model_forward.1} parent=11 // pred_check_branch
          %488 = sbr.rel (%p486) target = $region20
        $region19: #{object_model_forward.1} parent=11 // pred_region
          _
        $region20: #{object_model_forward.1} parent=11 // pred_fallthru
          _
        // Predicated region
        $region21: #{object_model_forward.1} parent=11 // pred_check
          %p489 = pneg %p143
        $region22: #{object_model_forward.1} parent=11 // pred_check_branch
          %491 = sbr.rel (%p489) target = $region24
        $region23: #{object_model_forward.1} parent=11 // pred_region
          %493 = vsyncadd [#allocation3], 0
          %s494 = sshll.u32 %s4, 4
          %s495 = int_to_ptr.hbm [resolvable:$true] %s494
          %s496 = sshll.u32 [#allocation2], 4
          %s497 = int_to_ptr.vmem [resolvable:$true] %s496
          %502 = dma.hbm_to_vmem [thread:$0]  %s495, 24576, %s497, [#allocation3], 768, 768, 48
        $region24: #{object_model_forward.1} parent=11 // pred_fallthru
          _
        // Predicated region
        $region25: #{object_model_forward.1} parent=11 // pred_check
          %p503 = pneg %p164
        $region26: #{object_model_forward.1} parent=11 // pred_check_branch
          %505 = sbr.rel (%p503) target = $region28
        $region27: #{object_model_forward.1} parent=11 // pred_region
          _
        $region28: #{object_model_forward.1} parent=11 // pred_fallthru
          _
        // Predicated region
        $region29: #{object_model_forward.1} parent=11 // pred_check
          %p506 = pneg %p185
        $region30: #{object_model_forward.1} parent=11 // pred_check_branch
          %508 = sbr.rel (%p506) target = $region32
        $region31: #{object_model_forward.1} parent=11 // pred_region
          %510 = vsyncadd [#allocation5], 0
          %s511 = sshll.u32 %s6, 4
          %s512 = int_to_ptr.hbm [resolvable:$true] %s511
          %s513 = sshll.u32 [#allocation4], 4
          %s514 = int_to_ptr.vmem [resolvable:$true] %s513
          %519 = dma.hbm_to_vmem [thread:$0]  %s512, 8192, %s514, [#allocation5], 128, 128, 8
        $region32: #{object_model_forward.1} parent=11 // pred_fallthru
          _
        // Predicated region
        $region33: #{object_model_forward.1} parent=11 // pred_check
          %p520 = pneg %p206
        $region34: #{object_model_forward.1} parent=11 // pred_check_branch
          %522 = sbr.rel (%p520) target = $region36
        $region35: #{object_model_forward.1} parent=11 // pred_region
          _
        $region36: #{object_model_forward.1} parent=11 // pred_fallthru
          _
        // Predicated region
        $region37: #{object_model_forward.1} parent=11 // pred_check
          %p523 = pneg %p227
        $region38: #{object_model_forward.1} parent=11 // pred_check_branch
          %525 = sbr.rel (%p523) target = $region40
        $region39: #{object_model_forward.1} parent=11 // pred_region
          _
        $region40: #{object_model_forward.1} parent=11 // pred_fallthru
          _
        // Predicated region
        $region41: #{object_model_forward.1} parent=11 // pred_check
          %p526 = pneg %p248
        $region42: #{object_model_forward.1} parent=11 // pred_check_branch
          %528 = sbr.rel (%p526) target = $region44
        $region43: #{object_model_forward.1} parent=11 // pred_region
          _
        $region44: #{object_model_forward.1} parent=11 // pred_fallthru
          _
        // Predicated region
        $region45: #{object_model_forward.1} parent=11 // pred_check
          %p529 = pneg %p269
        $region46: #{object_model_forward.1} parent=11 // pred_check_branch
          %531 = sbr.rel (%p529) target = $region48
        $region47: #{object_model_forward.1} parent=11 // pred_region
          %533 = vsyncadd [#allocation5], 0
          %s534 = sshll.u32 %s10, 4
          %s535 = int_to_ptr.hbm [resolvable:$true] %s534
          %s536 = sshll.u32 [#allocation6], 4
          %s537 = int_to_ptr.vmem [resolvable:$true] %s536
          %542 = dma.hbm_to_vmem [thread:$0]  %s535, 8192, %s537, [#allocation5], 256, 256, 16
        $region48: #{object_model_forward.1} parent=11 // pred_fallthru
          _
        // Predicated region
        $region49: #{object_model_forward.1} parent=11 // pred_check
          %p543 = pneg %p290
        $region50: #{object_model_forward.1} parent=11 // pred_check_branch
          %545 = sbr.rel (%p543) target = $region52
        $region51: #{object_model_forward.1} parent=11 // pred_region
          _
        $region52: #{object_model_forward.1} parent=11 // pred_fallthru
          _
        // Predicated region
        $region53: #{object_model_forward.1} parent=11 // pred_check
          %p546 = pneg %p311
        $region54: #{object_model_forward.1} parent=11 // pred_check_branch
          %548 = sbr.rel (%p546) target = $region56
        $region55: #{object_model_forward.1} parent=11 // pred_region
          %550 = vsyncadd [#allocation8], 0
          %s551 = sshll.u32 %s12, 4
          %s552 = int_to_ptr.hbm [resolvable:$true] %s551
          %s553 = sshll.u32 [#allocation7], 4
          %s554 = int_to_ptr.vmem [resolvable:$true] %s553
          %559 = dma.hbm_to_vmem [thread:$0]  %s552, 8192, %s554, [#allocation8], 128, 128, 8
        $region56: #{object_model_forward.1} parent=11 // pred_fallthru
          _
        // Predicated region
        $region57: #{object_model_forward.1} parent=11 // pred_check
          %p560 = pneg %p332
        $region58: #{object_model_forward.1} parent=11 // pred_check_branch
          %562 = sbr.rel (%p560) target = $region60
        $region59: #{object_model_forward.1} parent=11 // pred_region
          _
        $region60: #{object_model_forward.1} parent=11 // pred_fallthru
          _
        // Predicated region
        $region61: #{object_model_forward.1} parent=11 // pred_check
          %p563 = pneg %p353
        $region62: #{object_model_forward.1} parent=11 // pred_check_branch
          %565 = sbr.rel (%p563) target = $region64
        $region63: #{object_model_forward.1} parent=11 // pred_region
          _
        $region64: #{object_model_forward.1} parent=11 // pred_fallthru
          _
        // Predicated region
        $region65: #{object_model_forward.1} parent=11 // pred_check
          %p566 = pneg %p374
        $region66: #{object_model_forward.1} parent=11 // pred_check_branch
          %568 = sbr.rel (%p566) target = $region68
        $region67: #{object_model_forward.1} parent=11 // pred_region
          _
        $region68: #{object_model_forward.1} parent=11 // pred_fallthru
          _
        // Predicated region
        $region69: #{object_model_forward.1} parent=11 // pred_check
          %p569 = pneg %p395
        $region70: #{object_model_forward.1} parent=11 // pred_check_branch
          %571 = sbr.rel (%p569) target = $region72
        $region71: #{object_model_forward.1} parent=11 // pred_region
          _
        $region72: #{object_model_forward.1} parent=11 // pred_fallthru
          _
        // Predicated region
        $region73: #{object_model_forward.1} parent=11 // pred_check
          %p572 = pneg %p416
        $region74: #{object_model_forward.1} parent=11 // pred_check_branch
          %574 = sbr.rel (%p572) target = $region76
        $region75: #{object_model_forward.1} parent=11 // pred_region
          _
        $region76: #{object_model_forward.1} parent=11 // pred_fallthru
          _
      $region12: #{object_model_forward.1} parent=5 // pred_fallthru
        _
      %p575 = scmp.lt.s32.totalorder %s28, 2
      // Predicated region
      $region77: #{object_model_forward.1} parent=5 // pred_check
        %p576 = pneg %p575
      $region78: #{object_model_forward.1} parent=5 // pred_check_branch
        %578 = sbr.rel (%p576) target = $region80
      $region79: #{object_model_forward.1} parent=5 // pred_region
        // Predicated region
        $region81: #{object_model_forward.1} parent=79 // pred_check
          %p579 = pneg %p48
        $region82: #{object_model_forward.1} parent=79 // pred_check_branch
          %581 = sbr.rel (%p579) target = $region84
        $region83: #{object_model_forward.1} parent=79 // pred_region
          %s582 = smul.u32 2, %s28
          %p583 = scmp.lt.s32.totalorder %s582, 3
          %s584 = scalar_select %p583, %s582, 3
          %s585 = smul.addr %s584, 8
          %s586 = scalar_lea.vmem %s0, %s585
          %s587 = smul.u32 2, %s28
        $region84: #{object_model_forward.1} parent=79 // pred_fallthru
          _
        // Predicated region
        $region85: #{object_model_forward.1} parent=79 // pred_check
          %p588 = pneg %p74
        $region86: #{object_model_forward.1} parent=79 // pred_check_branch
          %590 = sbr.rel (%p588) target = $region88
        $region87: #{object_model_forward.1} parent=79 // pred_region
          %s591 = smul.u32 2, %s28
          %p592 = scmp.lt.s32.totalorder %s591, 3
          %s593 = scalar_select %p592, %s591, 3
          %s594 = scalar_lea.vmem %s1, %s593
          %s595 = smul.u32 2, %s28
        $region88: #{object_model_forward.1} parent=79 // pred_fallthru
          _
        // Predicated region
        $region89: #{object_model_forward.1} parent=79 // pred_check
          %p596 = pneg %p436
        $region90: #{object_model_forward.1} parent=79 // pred_check_branch
          %598 = sbr.rel (%p596) target = $region92
        $region91: #{object_model_forward.1} parent=79 // pred_region
          %s599 = smul.u32 2, %s28
          %p600 = scmp.lt.s32.totalorder %s599, 3
          %s601 = scalar_select %p600, %s599, 3
          %s602 = scalar_lea.vmem %s18, %s601
          %s603 = smul.u32 2, %s28
        $region92: #{object_model_forward.1} parent=79 // pred_fallthru
          _
      $region80: #{object_model_forward.1} parent=5 // pred_fallthru
        _
      %p604 = scmp.le.s32.totalorder 1, %s28
      %p605 = scmp.lt.s32.totalorder %s28, 3
      %p606 = pnand %p604, %p605
      %p607 = pneg %p606
      // Predicated region
      $region93: #{object_model_forward.1} parent=5 // pred_check
        _
      $region94: #{object_model_forward.1} parent=5 // pred_check_branch
        %609 = sbr.rel (%p606) target = $region96
      $region95: #{object_model_forward.1} parent=5 // pred_region
        %s610 = ssub.s32 %s28, 1
        // Predicated region
        $region97: #{object_model_forward.1} parent=95 // pred_check
          %p611 = pneg %p143
        $region98: #{object_model_forward.1} parent=95 // pred_check_branch
          %613 = sbr.rel (%p611) target = $region100
        $region99: #{object_model_forward.1} parent=95 // pred_region
          %615 = dma.done [#allocation3], 24576
        $region100: #{object_model_forward.1} parent=95 // pred_fallthru
          _
        // Predicated region
        $region101: #{object_model_forward.1} parent=95 // pred_check
          %p616 = pneg %p185
        $region102: #{object_model_forward.1} parent=95 // pred_check_branch
          %618 = sbr.rel (%p616) target = $region104
        $region103: #{object_model_forward.1} parent=95 // pred_region
          %620 = dma.done [#allocation5], 8192
        $region104: #{object_model_forward.1} parent=95 // pred_fallthru
          _
        // Predicated region
        $region105: #{object_model_forward.1} parent=95 // pred_check
          %p621 = pneg %p269
        $region106: #{object_model_forward.1} parent=95 // pred_check_branch
          %623 = sbr.rel (%p621) target = $region108
        $region107: #{object_model_forward.1} parent=95 // pred_region
          %625 = dma.done [#allocation5], 8192
        $region108: #{object_model_forward.1} parent=95 // pred_fallthru
          _
        // Predicated region
        $region109: #{object_model_forward.1} parent=95 // pred_check
          %p626 = pneg %p311
        $region110: #{object_model_forward.1} parent=95 // pred_check_branch
          %628 = sbr.rel (%p626) target = $region112
        $region111: #{object_model_forward.1} parent=95 // pred_region
          %630 = dma.done [#allocation8], 8192
        $region112: #{object_model_forward.1} parent=95 // pred_fallthru
          _
        %s631 = smul.u32 2, %s33
        %p632 = scmp.lt.s32.totalorder %s631, 3
        %s633 = scalar_select %p632, %s631, 3
        %s634 = smul.addr %s633, 8
        %s635 = scalar_lea.vmem %s0, %s634
        %p636 = pneg %p54
        %p637 = pneg %p51
        %s638 = smul.u32 2, %s33
        %p639 = scmp.lt.s32.totalorder %s638, 3
        %s640 = scalar_select %p639, %s638, 3
        %s641 = scalar_lea.vmem %s1, %s640
        %p642 = pneg %p80
        %p643 = pneg %p77
        %p644 = pneg %p101
        %p645 = pneg %p98
        %p646 = pneg %p122
        %p647 = pneg %p119
        %p648 = pneg %p143
        %p649 = pneg %p140
        %p650 = pneg %p164
        %p651 = pneg %p161
        %p652 = pneg %p185
        %p653 = pneg %p182
        %p654 = pneg %p206
        %p655 = pneg %p203
        %p656 = pneg %p227
        %p657 = pneg %p224
        %p658 = pneg %p248
        %p659 = pneg %p245
        %p660 = pneg %p269
        %p661 = pneg %p266
        %p662 = pneg %p290
        %p663 = pneg %p287
        %p664 = pneg %p311
        %p665 = pneg %p308
        %p666 = pneg %p332
        %p667 = pneg %p329
        %p668 = pneg %p353
        %p669 = pneg %p350
        %p670 = pneg %p374
        %p671 = pneg %p371
        %p672 = pneg %p395
        %p673 = pneg %p392
        %p674 = pneg %p416
        %p675 = pneg %p413
        %s676 = smul.u32 2, %s33
        %p677 = scmp.lt.s32.totalorder %s676, 3
        %s678 = scalar_select %p677, %s676, 3
        %s679 = scalar_lea.vmem %s18, %s678
        %p680 = pneg %p442
        %p681 = pneg %p439
        %p682 = pneg %p468
        %p683 = pneg %p465
        %s684 = smul.u32 2, %s33
        %p685 = scmp.lt.s32.totalorder %s684, 3
        %s686 = scalar_select %p685, %s684, 3
        %s687 = smul.addr %s686, 8
        %s688 = scalar_lea.vmem %s19, %s687
        %s689 = smul.u32 2, %s33
        %p690 = scmp.lt.s32.totalorder %s689, 3
        %s691 = scalar_select %p690, %s689, 3
        %s692 = smul.addr %s691, 8
        %s693 = scalar_lea.vmem %s0, %s692
        %s694 = smul.u32 2, %s33
        %s695 = smul.u32 2, %s33
        %p696 = scmp.lt.s32.totalorder %s695, 3
        %s697 = scalar_select %p696, %s695, 3
        %s698 = scalar_lea.vmem %s1, %s697
        %s699 = smul.u32 2, %s33
        %s700 = smul.u32 2, %s33
        %p701 = scmp.lt.s32.totalorder %s700, 3
        %s702 = scalar_select %p701, %s700, 3
        %s703 = scalar_lea.vmem %s18, %s702
        %s704 = smul.u32 2, %s33
        %s705 = smul.u32 2, %s33
        %p706 = scmp.lt.s32.totalorder %s705, 3
        %s707 = scalar_select %p706, %s705, 3
        %s708 = smul.addr %s707, 8
        %s709 = scalar_lea.vmem %s19, %s708
        %s710 = smul.u32 2, %s33
        %v711 = vld [vmem:[%s698] sm:$0x1]
        %v712 = vld [vmem:[%s698 + $0x1] sm:$0x1]
        %v713 = vld [vmem:[%s693] sm:$0xff]
        %v714 = vld [vmem:[%s693 + $0x8] sm:$0xff]
        %v715 = vld [vmem:[%s2] sm:$0x1]
        %v716 = vld [vmem:[%s3] sm:$0x1]
        %717 = vadd.xlane.f32.xlu0 %v713
        %v718 = vpop.xlane.xlu0 %717
        %719 = vadd.xlane.f32.xlu0 %v714
        %v720 = vpop.xlane.xlu0 %719
        %v721 = vrcp.pop 128.0
        %v722 = vmul.f32 128.0, %v721
        %v723 = vsub.f32 1.0, %v722
        %v724 = vmul.f32 %v721, %v723
        %v725 = vadd.f32 %v721, %v724
        %vm726 = vweird.f32 %v721
        %v727 = vsel %vm726, %v721, %v725
        %v728 = vmul.f32 %v718, %v727
        %v729 = vmul.f32 %v720, %v727
        %v730 = vsub.f32 %v713, %v728
        %v731 = vsub.f32 %v714, %v729
        %v732 = vmul.f32 %v730, %v730
        %v733 = vmul.f32 %v731, %v731
        %734 = vadd.xlane.f32.xlu0 %v732
        %v735 = vpop.xlane.xlu0 %734
        %736 = vadd.xlane.f32.xlu0 %v733
        %v737 = vpop.xlane.xlu0 %736
        %v738 = vmul.f32 %v735, %v727
        %v739 = vmul.f32 %v737, %v727
        %v740 = vadd.f32 %v738, 1e-12
        %v741 = vadd.f32 %v739, 1e-12
        %v742 = vrsqrt.pop %v740
        %v743 = vmul.f32 %v742, %v740
        %v744 = vmul.f32 %v743, %v742
        %v745 = vmul.f32 0.5, %v744
        %v746 = vsub.f32 1.5, %v745
        %v747 = vmul.f32 %v742, %v746
        %vm748 = vweird.f32 %v740
        %vm749 = vweird.f32 %v742
        %vm750 = vmor %vm748, %vm749
        %v751 = vsel %vm750, %v742, %v747
        %v752 = vrsqrt.pop %v741
        %v753 = vmul.f32 %v752, %v741
        %v754 = vmul.f32 %v753, %v752
        %v755 = vmul.f32 0.5, %v754
        %v756 = vsub.f32 1.5, %v755
        %v757 = vmul.f32 %v752, %v756
        %vm758 = vweird.f32 %v741
        %vm759 = vweird.f32 %v752
        %vm760 = vmor %vm758, %vm759
        %v761 = vsel %vm760, %v752, %v757
        %v762 = vmul.f32 %v730, %v751
        %v763 = vmul.f32 %v731, %v761
        %v765 = vperm.slane %v715, 0
        %v767 = vmul.f32 %v762, %v765
        %v768 = vmul.f32 %v763, %v765
        %v770 = vperm.slane %v716, 0
        %v772 = vadd.f32 %v767, %v770
        %v773 = vadd.f32 %v768, %v770
        %v774 = vld [vmem:[#allocation2] sm:$0xff]
        %v775 = vld [vmem:[#allocation2 + $0x8] sm:$0xff]
        %v776 = vld [vmem:[#allocation2 + $0x10] sm:$0xff]
        %v777 = vld [vmem:[#allocation2 + $0x18] sm:$0xff]
        %v778 = vld [vmem:[#allocation2 + $0x20] sm:$0xff]
        %v779 = vld [vmem:[#allocation2 + $0x28] sm:$0xff]
        %v780 = vld [vmem:[#allocation2 + $0x30] sm:$0xff]
        %v781 = vld [vmem:[#allocation2 + $0x38] sm:$0xff]
        %v782 = vld [vmem:[#allocation2 + $0x40] sm:$0xff]
        %v783 = vld [vmem:[#allocation2 + $0x48] sm:$0xff]
        %v784 = vld [vmem:[#allocation2 + $0x50] sm:$0xff]
        %v785 = vld [vmem:[#allocation2 + $0x58] sm:$0xff]
        %v786 = vld [vmem:[#allocation2 + $0x60] sm:$0xff]
        %v787 = vld [vmem:[#allocation2 + $0x68] sm:$0xff]
        %v788 = vld [vmem:[#allocation2 + $0x70] sm:$0xff]
        %v789 = vld [vmem:[#allocation2 + $0x78] sm:$0xff]
        %v790 = vld [vmem:[#allocation2 + $0x80] sm:$0xff]
        %v791 = vld [vmem:[#allocation2 + $0x88] sm:$0xff]
        %v792 = vld [vmem:[#allocation2 + $0x90] sm:$0xff]
        %v793 = vld [vmem:[#allocation2 + $0x98] sm:$0xff]
        %v794 = vld [vmem:[#allocation2 + $0xa0] sm:$0xff]
        %v795 = vld [vmem:[#allocation2 + $0xa8] sm:$0xff]
        %v796 = vld [vmem:[#allocation2 + $0xb0] sm:$0xff]
        %v797 = vld [vmem:[#allocation2 + $0xb8] sm:$0xff]
        %v798 = vld [vmem:[#allocation2 + $0xc0] sm:$0xff]
        %v799 = vld [vmem:[#allocation2 + $0xc8] sm:$0xff]
        %v800 = vld [vmem:[#allocation2 + $0xd0] sm:$0xff]
        %v801 = vld [vmem:[#allocation2 + $0xd8] sm:$0xff]
        %v802 = vld [vmem:[#allocation2 + $0xe0] sm:$0xff]
        %v803 = vld [vmem:[#allocation2 + $0xe8] sm:$0xff]
        %v804 = vld [vmem:[#allocation2 + $0xf0] sm:$0xff]
        %v805 = vld [vmem:[#allocation2 + $0xf8] sm:$0xff]
        %v806 = vld [vmem:[#allocation2 + $0x100] sm:$0xff]
        %v807 = vld [vmem:[#allocation2 + $0x108] sm:$0xff]
        %v808 = vld [vmem:[#allocation2 + $0x110] sm:$0xff]
        %v809 = vld [vmem:[#allocation2 + $0x118] sm:$0xff]
        %v810 = vld [vmem:[#allocation2 + $0x120] sm:$0xff]
        %v811 = vld [vmem:[#allocation2 + $0x128] sm:$0xff]
        %v812 = vld [vmem:[#allocation2 + $0x130] sm:$0xff]
        %v813 = vld [vmem:[#allocation2 + $0x138] sm:$0xff]
        %v814 = vld [vmem:[#allocation2 + $0x140] sm:$0xff]
        %v815 = vld [vmem:[#allocation2 + $0x148] sm:$0xff]
        %v816 = vld [vmem:[#allocation2 + $0x150] sm:$0xff]
        %v817 = vld [vmem:[#allocation2 + $0x158] sm:$0xff]
        %v818 = vld [vmem:[#allocation2 + $0x160] sm:$0xff]
        %v819 = vld [vmem:[#allocation2 + $0x168] sm:$0xff]
        %v820 = vld [vmem:[#allocation2 + $0x170] sm:$0xff]
        %v821 = vld [vmem:[#allocation2 + $0x178] sm:$0xff]
        %v822 = vld [vmem:[#allocation2 + $0x180] sm:$0xff]
        %v823 = vld [vmem:[#allocation2 + $0x188] sm:$0xff]
        %v824 = vld [vmem:[#allocation2 + $0x190] sm:$0xff]
        %v825 = vld [vmem:[#allocation2 + $0x198] sm:$0xff]
        %v826 = vld [vmem:[#allocation2 + $0x1a0] sm:$0xff]
        %v827 = vld [vmem:[#allocation2 + $0x1a8] sm:$0xff]
        %v828 = vld [vmem:[#allocation2 + $0x1b0] sm:$0xff]
        %v829 = vld [vmem:[#allocation2 + $0x1b8] sm:$0xff]
        %v830 = vld [vmem:[#allocation2 + $0x1c0] sm:$0xff]
        %v831 = vld [vmem:[#allocation2 + $0x1c8] sm:$0xff]
        %v832 = vld [vmem:[#allocation2 + $0x1d0] sm:$0xff]
        %v833 = vld [vmem:[#allocation2 + $0x1d8] sm:$0xff]
        %v834 = vld [vmem:[#allocation2 + $0x1e0] sm:$0xff]
        %v835 = vld [vmem:[#allocation2 + $0x1e8] sm:$0xff]
        %v836 = vld [vmem:[#allocation2 + $0x1f0] sm:$0xff]
        %v837 = vld [vmem:[#allocation2 + $0x1f8] sm:$0xff]
        %v838 = vld [vmem:[#allocation2 + $0x200] sm:$0xff]
        %v839 = vld [vmem:[#allocation2 + $0x208] sm:$0xff]
        %v840 = vld [vmem:[#allocation2 + $0x210] sm:$0xff]
        %v841 = vld [vmem:[#allocation2 + $0x218] sm:$0xff]
        %v842 = vld [vmem:[#allocation2 + $0x220] sm:$0xff]
        %v843 = vld [vmem:[#allocation2 + $0x228] sm:$0xff]
        %v844 = vld [vmem:[#allocation2 + $0x230] sm:$0xff]
        %v845 = vld [vmem:[#allocation2 + $0x238] sm:$0xff]
        %v846 = vld [vmem:[#allocation2 + $0x240] sm:$0xff]
        %v847 = vld [vmem:[#allocation2 + $0x248] sm:$0xff]
        %v848 = vld [vmem:[#allocation2 + $0x250] sm:$0xff]
        %v849 = vld [vmem:[#allocation2 + $0x258] sm:$0xff]
        %v850 = vld [vmem:[#allocation2 + $0x260] sm:$0xff]
        %v851 = vld [vmem:[#allocation2 + $0x268] sm:$0xff]
        %v852 = vld [vmem:[#allocation2 + $0x270] sm:$0xff]
        %v853 = vld [vmem:[#allocation2 + $0x278] sm:$0xff]
        %v854 = vld [vmem:[#allocation2 + $0x280] sm:$0xff]
        %v855 = vld [vmem:[#allocation2 + $0x288] sm:$0xff]
        %v856 = vld [vmem:[#allocation2 + $0x290] sm:$0xff]
        %v857 = vld [vmem:[#allocation2 + $0x298] sm:$0xff]
        %v858 = vld [vmem:[#allocation2 + $0x2a0] sm:$0xff]
        %v859 = vld [vmem:[#allocation2 + $0x2a8] sm:$0xff]
        %v860 = vld [vmem:[#allocation2 + $0x2b0] sm:$0xff]
        %v861 = vld [vmem:[#allocation2 + $0x2b8] sm:$0xff]
        %v862 = vld [vmem:[#allocation2 + $0x2c0] sm:$0xff]
        %v863 = vld [vmem:[#allocation2 + $0x2c8] sm:$0xff]
        %v864 = vld [vmem:[#allocation2 + $0x2d0] sm:$0xff]
        %v865 = vld [vmem:[#allocation2 + $0x2d8] sm:$0xff]
        %v866 = vld [vmem:[#allocation2 + $0x2e0] sm:$0xff]
        %v867 = vld [vmem:[#allocation2 + $0x2e8] sm:$0xff]
        %v868 = vld [vmem:[#allocation2 + $0x2f0] sm:$0xff]
        %v869 = vld [vmem:[#allocation2 + $0x2f8] sm:$0xff]
        %v870 = vld [vmem:[%s5] sm:$0x3f]
        %v872 = vperm.slane %v870, 0
        %v873 = vperm.slane %v870, 1
        %v874 = vperm.slane %v870, 2
        %v875 = vperm.slane %v870, 3
        %v876 = vperm.slane %v870, 4
        %v877 = vperm.slane %v870, 5
        %884 = vmatpush.msra.mxu0 %v864
        %885 = vmatpush.msra.mxu0 %v858
        %886 = vmatpush.msra.mxu0 %v852
        %887 = vmatpush.msra.mxu0 %v846
        %888 = vmatpush.msra.mxu0 %v840
        %889 = vmatpush.msra.mxu0 %v834
        %890 = vmatpush.msra.mxu0 %v828
        %891 = vmatpush.msra.mxu0 %v822
        %892 = vmatpush.msra.mxu0 %v816
        %893 = vmatpush.msra.mxu0 %v810
        %894 = vmatpush.msra.mxu0 %v804
        %895 = vmatpush.msra.mxu0 %v798
        %896 = vmatpush.msra.mxu0 %v792
        %897 = vmatpush.msra.mxu0 %v786
        %898 = vmatpush.msra.mxu0 %v780
        %899 = vmatpush.msra.mxu0 %v774
        %900 = vmatmul.f32.gmra.mxu0 %v772
        %v901 = vpop.f32.mrf.mxu0
        %v902 = vadd.f32 %v872, %v901
        %903 = vmatmul.f32.gmra.mxu0 %v773
        %v904 = vpop.f32.mrf.mxu0
        %v905 = vadd.f32 %v872, %v904
        %906 = vdwg.mxu0
        %907 = vmatpush.msra.mxu0 %v865
        %908 = vmatpush.msra.mxu0 %v859
        %909 = vmatpush.msra.mxu0 %v853
        %910 = vmatpush.msra.mxu0 %v847
        %911 = vmatpush.msra.mxu0 %v841
        %912 = vmatpush.msra.mxu0 %v835
        %913 = vmatpush.msra.mxu0 %v829
        %914 = vmatpush.msra.mxu0 %v823
        %915 = vmatpush.msra.mxu0 %v817
        %916 = vmatpush.msra.mxu0 %v811
        %917 = vmatpush.msra.mxu0 %v805
        %918 = vmatpush.msra.mxu0 %v799
        %919 = vmatpush.msra.mxu0 %v793
        %920 = vmatpush.msra.mxu0 %v787
        %921 = vmatpush.msra.mxu0 %v781
        %922 = vmatpush.msra.mxu0 %v775
        %923 = vmatmul.f32.gmra.mxu0 %v772
        %v924 = vpop.f32.mrf.mxu0
        %v925 = vadd.f32 %v873, %v924
        %926 = vmatmul.f32.gmra.mxu0 %v773
        %v927 = vpop.f32.mrf.mxu0
        %v928 = vadd.f32 %v873, %v927
        %929 = vdwg.mxu0
        %930 = vmatpush.msra.mxu0 %v866
        %931 = vmatpush.msra.mxu0 %v860
        %932 = vmatpush.msra.mxu0 %v854
        %933 = vmatpush.msra.mxu0 %v848
        %934 = vmatpush.msra.mxu0 %v842
        %935 = vmatpush.msra.mxu0 %v836
        %936 = vmatpush.msra.mxu0 %v830
        %937 = vmatpush.msra.mxu0 %v824
        %938 = vmatpush.msra.mxu0 %v818
        %939 = vmatpush.msra.mxu0 %v812
        %940 = vmatpush.msra.mxu0 %v806
        %941 = vmatpush.msra.mxu0 %v800
        %942 = vmatpush.msra.mxu0 %v794
        %943 = vmatpush.msra.mxu0 %v788
        %944 = vmatpush.msra.mxu0 %v782
        %945 = vmatpush.msra.mxu0 %v776
        %946 = vmatmul.f32.gmra.mxu0 %v772
        %v947 = vpop.f32.mrf.mxu0
        %v948 = vadd.f32 %v874, %v947
        %949 = vmatmul.f32.gmra.mxu0 %v773
        %v950 = vpop.f32.mrf.mxu0
        %v951 = vadd.f32 %v874, %v950
        %952 = vdwg.mxu0
        %953 = vmatpush.msra.mxu0 %v867
        %954 = vmatpush.msra.mxu0 %v861
        %955 = vmatpush.msra.mxu0 %v855
        %956 = vmatpush.msra.mxu0 %v849
        %957 = vmatpush.msra.mxu0 %v843
        %958 = vmatpush.msra.mxu0 %v837
        %959 = vmatpush.msra.mxu0 %v831
        %960 = vmatpush.msra.mxu0 %v825
        %961 = vmatpush.msra.mxu0 %v819
        %962 = vmatpush.msra.mxu0 %v813
        %963 = vmatpush.msra.mxu0 %v807
        %964 = vmatpush.msra.mxu0 %v801
        %965 = vmatpush.msra.mxu0 %v795
        %966 = vmatpush.msra.mxu0 %v789
        %967 = vmatpush.msra.mxu0 %v783
        %968 = vmatpush.msra.mxu0 %v777
        %969 = vmatmul.f32.gmra.mxu0 %v772
        %v970 = vpop.f32.mrf.mxu0
        %v971 = vadd.f32 %v875, %v970
        %972 = vmatmul.f32.gmra.mxu0 %v773
        %v973 = vpop.f32.mrf.mxu0
        %v974 = vadd.f32 %v875, %v973
        %975 = vdwg.mxu0
        %976 = vmatpush.msra.mxu0 %v868
        %977 = vmatpush.msra.mxu0 %v862
        %978 = vmatpush.msra.mxu0 %v856
        %979 = vmatpush.msra.mxu0 %v850
        %980 = vmatpush.msra.mxu0 %v844
        %981 = vmatpush.msra.mxu0 %v838
        %982 = vmatpush.msra.mxu0 %v832
        %983 = vmatpush.msra.mxu0 %v826
        %984 = vmatpush.msra.mxu0 %v820
        %985 = vmatpush.msra.mxu0 %v814
        %986 = vmatpush.msra.mxu0 %v808
        %987 = vmatpush.msra.mxu0 %v802
        %988 = vmatpush.msra.mxu0 %v796
        %989 = vmatpush.msra.mxu0 %v790
        %990 = vmatpush.msra.mxu0 %v784
        %991 = vmatpush.msra.mxu0 %v778
        %992 = vmatmul.f32.gmra.mxu0 %v772
        %v993 = vpop.f32.mrf.mxu0
        %v994 = vadd.f32 %v876, %v993
        %995 = vmatmul.f32.gmra.mxu0 %v773
        %v996 = vpop.f32.mrf.mxu0
        %v997 = vadd.f32 %v876, %v996
        %998 = vdwg.mxu0
        %999 = vmatpush.msra.mxu0 %v869
        %1000 = vmatpush.msra.mxu0 %v863
        %1001 = vmatpush.msra.mxu0 %v857
        %1002 = vmatpush.msra.mxu0 %v851
        %1003 = vmatpush.msra.mxu0 %v845
        %1004 = vmatpush.msra.mxu0 %v839
        %1005 = vmatpush.msra.mxu0 %v833
        %1006 = vmatpush.msra.mxu0 %v827
        %1007 = vmatpush.msra.mxu0 %v821
        %1008 = vmatpush.msra.mxu0 %v815
        %1009 = vmatpush.msra.mxu0 %v809
        %1010 = vmatpush.msra.mxu0 %v803
        %1011 = vmatpush.msra.mxu0 %v797
        %1012 = vmatpush.msra.mxu0 %v791
        %1013 = vmatpush.msra.mxu0 %v785
        %1014 = vmatpush.msra.mxu0 %v779
        %1015 = vmatmul.f32.gmra.mxu0 %v772
        %v1016 = vpop.f32.mrf.mxu0
        %v1017 = vadd.f32 %v877, %v1016
        %1018 = vmatmul.f32.gmra.mxu0 %v773
        %v1019 = vpop.f32.mrf.mxu0
        %v1020 = vadd.f32 %v877, %v1019
        %1021 = vdwg.mxu0
        %v1022 = vld [vmem:[#allocation4] sm:$0xff]
        %v1023 = vld [vmem:[#allocation4 + $0x8] sm:$0xff]
        %v1024 = vld [vmem:[#allocation4 + $0x10] sm:$0xff]
        %v1025 = vld [vmem:[#allocation4 + $0x18] sm:$0xff]
        %v1026 = vld [vmem:[#allocation4 + $0x20] sm:$0xff]
        %v1027 = vld [vmem:[#allocation4 + $0x28] sm:$0xff]
        %v1028 = vld [vmem:[#allocation4 + $0x30] sm:$0xff]
        %v1029 = vld [vmem:[#allocation4 + $0x38] sm:$0xff]
        %v1030 = vld [vmem:[#allocation4 + $0x40] sm:$0xff]
        %v1031 = vld [vmem:[#allocation4 + $0x48] sm:$0xff]
        %v1032 = vld [vmem:[#allocation4 + $0x50] sm:$0xff]
        %v1033 = vld [vmem:[#allocation4 + $0x58] sm:$0xff]
        %v1034 = vld [vmem:[#allocation4 + $0x60] sm:$0xff]
        %v1035 = vld [vmem:[#allocation4 + $0x68] sm:$0xff]
        %v1036 = vld [vmem:[#allocation4 + $0x70] sm:$0xff]
        %v1037 = vld [vmem:[#allocation4 + $0x78] sm:$0xff]
        %v1038 = vld [vmem:[#allocation4 + $0x80] sm:$0xff]
        %v1039 = vld [vmem:[#allocation4 + $0x88] sm:$0xff]
        %v1040 = vld [vmem:[#allocation4 + $0x90] sm:$0xff]
        %v1041 = vld [vmem:[#allocation4 + $0x98] sm:$0xff]
        %v1042 = vld [vmem:[#allocation4 + $0xa0] sm:$0xff]
        %v1043 = vld [vmem:[#allocation4 + $0xa8] sm:$0xff]
        %v1044 = vld [vmem:[#allocation4 + $0xb0] sm:$0xff]
        %v1045 = vld [vmem:[#allocation4 + $0xb8] sm:$0xff]
        %v1046 = vld [vmem:[#allocation4 + $0xc0] sm:$0xff]
        %v1047 = vld [vmem:[#allocation4 + $0xc8] sm:$0xff]
        %v1048 = vld [vmem:[#allocation4 + $0xd0] sm:$0xff]
        %v1049 = vld [vmem:[#allocation4 + $0xd8] sm:$0xff]
        %v1050 = vld [vmem:[#allocation4 + $0xe0] sm:$0xff]
        %v1051 = vld [vmem:[#allocation4 + $0xe8] sm:$0xff]
        %v1052 = vld [vmem:[#allocation4 + $0xf0] sm:$0xff]
        %v1053 = vld [vmem:[#allocation4 + $0xf8] sm:$0xff]
        %v1054 = vmul.f32 %v902, 0.125
        %v1055 = vmul.f32 %v905, 0.125
        %v1058 = vperm.slane %v711, 0
        %v1059 = vperm.slane %v712, 0
        %1062 = vmatpush.xpose.msra.mxu0 0.0
        %1063 = vmatpush.xpose.msra.mxu0 0.0
        %1064 = vmatpush.xpose.msra.mxu0 0.0
        %1065 = vmatpush.xpose.msra.mxu0 0.0
        %1066 = vmatpush.xpose.msra.mxu0 0.0
        %1067 = vmatpush.xpose.msra.mxu0 0.0
        %1068 = vmatpush.xpose.msra.mxu0 0.0
        %1069 = vmatpush.xpose.msra.mxu0 0.0
        %1070 = vmatpush.xpose.msra.mxu0 0.0
        %1071 = vmatpush.xpose.msra.mxu0 0.0
        %1072 = vmatpush.xpose.msra.mxu0 0.0
        %1073 = vmatpush.xpose.msra.mxu0 0.0
        %1074 = vmatpush.xpose.msra.mxu0 0.0
        %1075 = vmatpush.xpose.msra.mxu0 0.0
        %1076 = vmatpush.xpose.msra.mxu0 0.0
        %1077 = vmatpush.xpose.msra.mxu0 %v925
        %1078 = vmatmul.f32.gmra.mxu0 %v1054
        %v1079 = vpop.f32.mrf.mxu0
        %v1080 = vadd.f32 %v1058, %v1079
        %1081 = vdwg.mxu0
        %1082 = vmatpush.xpose.msra.mxu0 0.0
        %1083 = vmatpush.xpose.msra.mxu0 0.0
        %1084 = vmatpush.xpose.msra.mxu0 0.0
        %1085 = vmatpush.xpose.msra.mxu0 0.0
        %1086 = vmatpush.xpose.msra.mxu0 0.0
        %1087 = vmatpush.xpose.msra.mxu0 0.0
        %1088 = vmatpush.xpose.msra.mxu0 0.0
        %1089 = vmatpush.xpose.msra.mxu0 0.0
        %1090 = vmatpush.xpose.msra.mxu0 0.0
        %1091 = vmatpush.xpose.msra.mxu0 0.0
        %1092 = vmatpush.xpose.msra.mxu0 0.0
        %1093 = vmatpush.xpose.msra.mxu0 0.0
        %1094 = vmatpush.xpose.msra.mxu0 0.0
        %1095 = vmatpush.xpose.msra.mxu0 0.0
        %1096 = vmatpush.xpose.msra.mxu0 0.0
        %1097 = vmatpush.xpose.msra.mxu0 %v928
        %1098 = vmatmul.f32.gmra.mxu0 %v1055
        %v1099 = vpop.f32.mrf.mxu0
        %v1100 = vadd.f32 %v1059, %v1099
        %1101 = vdwg.mxu0
        %vm1102 = vcmask 64512
        %v1103 = vsel %vm1102, %v1080, -inf
        %1104 = vmax.xlane.f32.xlu0 %v1103
        %v1105 = vpop.xlane.xlu0 %1104
        %v1106 = vsel %vm1102, %v1100, -inf
        %1107 = vmax.xlane.f32.xlu0 %v1106
        %v1108 = vpop.xlane.xlu0 %1107
        %v1109 = vsub.f32 %v1080, %v1105
        %v1110 = vsub.f32 %v1100, %v1108
        %v1111 = vmul.f32 %v1109, 1.442695
        %v1112 = vpow.pop %v1111
        %v1113 = vmul.f32 %v1110, 1.442695
        %v1114 = vpow.pop %v1113
        %v1115 = vsel %vm1102, %v1112, 0.0
        %1116 = vadd.xlane.f32.xlu0 %v1115
        %v1117 = vpop.xlane.xlu0 %1116
        %v1118 = vsel %vm1102, %v1114, 0.0
        %1119 = vadd.xlane.f32.xlu0 %v1118
        %v1120 = vpop.xlane.xlu0 %1119
        %v1121 = vrcp.pop %v1117
        %v1122 = vmul.f32 %v1117, %v1121
        %v1123 = vsub.f32 1.0, %v1122
        %v1124 = vmul.f32 %v1121, %v1123
        %v1125 = vadd.f32 %v1121, %v1124
        %vm1126 = vweird.f32 %v1117
        %vm1127 = vweird.f32 %v1121
        %vm1128 = vmor %vm1126, %vm1127
        %v1129 = vsel %vm1128, %v1121, %v1125
        %v1130 = vand.u32 2147483647, %v1117
        %vm1131 = vcmp.eq.f32.partialorder %v1130, 8.507059e+37
        %v1132 = vand.u32 %v1117, 2147483648
        %v1133 = vor.u32 1.1754944e-38, %v1132
        %v1134 = vsel %vm1131, %v1133, %v1129
        %v1135 = vmul.f32 %v1112, %v1134
        %v1136 = vrcp.pop %v1120
        %v1137 = vmul.f32 %v1120, %v1136
        %v1138 = vsub.f32 1.0, %v1137
        %v1139 = vmul.f32 %v1136, %v1138
        %v1140 = vadd.f32 %v1136, %v1139
        %vm1141 = vweird.f32 %v1120
        %vm1142 = vweird.f32 %v1136
        %vm1143 = vmor %vm1141, %vm1142
        %v1144 = vsel %vm1143, %v1136, %v1140
        %v1145 = vand.u32 2147483647, %v1120
        %vm1146 = vcmp.eq.f32.partialorder %v1145, 8.507059e+37
        %v1147 = vand.u32 %v1120, 2147483648
        %v1148 = vor.u32 1.1754944e-38, %v1147
        %v1149 = vsel %vm1146, %v1148, %v1144
        %v1150 = vmul.f32 %v1114, %v1149
        %v1152 = vsel %vm1102, %v1135, 0
        %1154 = vmatpush.msra.mxu0 0.0
        %1155 = vmatpush.msra.mxu0 0.0
        %1156 = vmatpush.msra.mxu0 0.0
        %1157 = vmatpush.msra.mxu0 0.0
        %1158 = vmatpush.msra.mxu0 0.0
        %1159 = vmatpush.msra.mxu0 0.0
        %1160 = vmatpush.msra.mxu0 0.0
        %1161 = vmatpush.msra.mxu0 0.0
        %1162 = vmatpush.msra.mxu0 0.0
        %1163 = vmatpush.msra.mxu0 0.0
        %1164 = vmatpush.msra.mxu0 0.0
        %1165 = vmatpush.msra.mxu0 0.0
        %1166 = vmatpush.msra.mxu0 0.0
        %1167 = vmatpush.msra.mxu0 0.0
        %1168 = vmatpush.msra.mxu0 0.0
        %1169 = vmatpush.msra.mxu0 %v948
        %1170 = vmatmul.f32.gmra.mxu0 %v1152
        %v1171 = vpop.f32.mrf.mxu0
        %v1172 = vadd.f32 0.0, %v1171
        %1173 = vdwg.mxu0
        %v1175 = vsel %vm1102, %v1150, 0
        %1177 = vmatpush.msra.mxu0 0.0
        %1178 = vmatpush.msra.mxu0 0.0
        %1179 = vmatpush.msra.mxu0 0.0
        %1180 = vmatpush.msra.mxu0 0.0
        %1181 = vmatpush.msra.mxu0 0.0
        %1182 = vmatpush.msra.mxu0 0.0
        %1183 = vmatpush.msra.mxu0 0.0
        %1184 = vmatpush.msra.mxu0 0.0
        %1185 = vmatpush.msra.mxu0 0.0
        %1186 = vmatpush.msra.mxu0 0.0
        %1187 = vmatpush.msra.mxu0 0.0
        %1188 = vmatpush.msra.mxu0 0.0
        %1189 = vmatpush.msra.mxu0 0.0
        %1190 = vmatpush.msra.mxu0 0.0
        %1191 = vmatpush.msra.mxu0 0.0
        %1192 = vmatpush.msra.mxu0 %v951
        %1193 = vmatmul.f32.gmra.mxu0 %v1175
        %v1194 = vpop.f32.mrf.mxu0
        %v1195 = vadd.f32 0.0, %v1194
        %1196 = vdwg.mxu0
        %v1197 = vmul.f32 %v971, 0.125
        %v1198 = vmul.f32 %v974, 0.125
        %1199 = vmatpush.xpose.msra.mxu0 0.0
        %1200 = vmatpush.xpose.msra.mxu0 0.0
        %1201 = vmatpush.xpose.msra.mxu0 0.0
        %1202 = vmatpush.xpose.msra.mxu0 0.0
        %1203 = vmatpush.xpose.msra.mxu0 0.0
        %1204 = vmatpush.xpose.msra.mxu0 0.0
        %1205 = vmatpush.xpose.msra.mxu0 0.0
        %1206 = vmatpush.xpose.msra.mxu0 0.0
        %1207 = vmatpush.xpose.msra.mxu0 0.0
        %1208 = vmatpush.xpose.msra.mxu0 0.0
        %1209 = vmatpush.xpose.msra.mxu0 0.0
        %1210 = vmatpush.xpose.msra.mxu0 0.0
        %1211 = vmatpush.xpose.msra.mxu0 0.0
        %1212 = vmatpush.xpose.msra.mxu0 0.0
        %1213 = vmatpush.xpose.msra.mxu0 0.0
        %1214 = vmatpush.xpose.msra.mxu0 %v994
        %1215 = vmatmul.f32.gmra.mxu0 %v1197
        %v1216 = vpop.f32.mrf.mxu0
        %v1217 = vadd.f32 %v1058, %v1216
        %1218 = vdwg.mxu0
        %1219 = vmatpush.xpose.msra.mxu0 0.0
        %1220 = vmatpush.xpose.msra.mxu0 0.0
        %1221 = vmatpush.xpose.msra.mxu0 0.0
        %1222 = vmatpush.xpose.msra.mxu0 0.0
        %1223 = vmatpush.xpose.msra.mxu0 0.0
        %1224 = vmatpush.xpose.msra.mxu0 0.0
        %1225 = vmatpush.xpose.msra.mxu0 0.0
        %1226 = vmatpush.xpose.msra.mxu0 0.0
        %1227 = vmatpush.xpose.msra.mxu0 0.0
        %1228 = vmatpush.xpose.msra.mxu0 0.0
        %1229 = vmatpush.xpose.msra.mxu0 0.0
        %1230 = vmatpush.xpose.msra.mxu0 0.0
        %1231 = vmatpush.xpose.msra.mxu0 0.0
        %1232 = vmatpush.xpose.msra.mxu0 0.0
        %1233 = vmatpush.xpose.msra.mxu0 0.0
        %1234 = vmatpush.xpose.msra.mxu0 %v997
        %1235 = vmatmul.f32.gmra.mxu0 %v1198
        %v1236 = vpop.f32.mrf.mxu0
        %v1237 = vadd.f32 %v1059, %v1236
        %1238 = vdwg.mxu0
        %v1239 = vsel %vm1102, %v1217, -inf
        %1240 = vmax.xlane.f32.xlu0 %v1239
        %v1241 = vpop.xlane.xlu0 %1240
        %v1242 = vsel %vm1102, %v1237, -inf
        %1243 = vmax.xlane.f32.xlu0 %v1242
        %v1244 = vpop.xlane.xlu0 %1243
        %v1245 = vsub.f32 %v1217, %v1241
        %v1246 = vsub.f32 %v1237, %v1244
        %v1247 = vmul.f32 %v1245, 1.442695
        %v1248 = vpow.pop %v1247
        %v1249 = vmul.f32 %v1246, 1.442695
        %v1250 = vpow.pop %v1249
        %v1251 = vsel %vm1102, %v1248, 0.0
        %1252 = vadd.xlane.f32.xlu0 %v1251
        %v1253 = vpop.xlane.xlu0 %1252
        %v1254 = vsel %vm1102, %v1250, 0.0
        %1255 = vadd.xlane.f32.xlu0 %v1254
        %v1256 = vpop.xlane.xlu0 %1255
        %v1257 = vrcp.pop %v1253
        %v1258 = vmul.f32 %v1253, %v1257
        %v1259 = vsub.f32 1.0, %v1258
        %v1260 = vmul.f32 %v1257, %v1259
        %v1261 = vadd.f32 %v1257, %v1260
        %vm1262 = vweird.f32 %v1253
        %vm1263 = vweird.f32 %v1257
        %vm1264 = vmor %vm1262, %vm1263
        %v1265 = vsel %vm1264, %v1257, %v1261
        %v1266 = vand.u32 2147483647, %v1253
        %vm1267 = vcmp.eq.f32.partialorder %v1266, 8.507059e+37
        %v1268 = vand.u32 %v1253, 2147483648
        %v1269 = vor.u32 1.1754944e-38, %v1268
        %v1270 = vsel %vm1267, %v1269, %v1265
        %v1271 = vmul.f32 %v1248, %v1270
        %v1272 = vrcp.pop %v1256
        %v1273 = vmul.f32 %v1256, %v1272
        %v1274 = vsub.f32 1.0, %v1273
        %v1275 = vmul.f32 %v1272, %v1274
        %v1276 = vadd.f32 %v1272, %v1275
        %vm1277 = vweird.f32 %v1256
        %vm1278 = vweird.f32 %v1272
        %vm1279 = vmor %vm1277, %vm1278
        %v1280 = vsel %vm1279, %v1272, %v1276
        %v1281 = vand.u32 2147483647, %v1256
        %vm1282 = vcmp.eq.f32.partialorder %v1281, 8.507059e+37
        %v1283 = vand.u32 %v1256, 2147483648
        %v1284 = vor.u32 1.1754944e-38, %v1283
        %v1285 = vsel %vm1282, %v1284, %v1280
        %v1286 = vmul.f32 %v1250, %v1285
        %v1288 = vsel %vm1102, %v1271, 0
        %1290 = vmatpush.msra.mxu0 0.0
        %1291 = vmatpush.msra.mxu0 0.0
        %1292 = vmatpush.msra.mxu0 0.0
        %1293 = vmatpush.msra.mxu0 0.0
        %1294 = vmatpush.msra.mxu0 0.0
        %1295 = vmatpush.msra.mxu0 0.0
        %1296 = vmatpush.msra.mxu0 0.0
        %1297 = vmatpush.msra.mxu0 0.0
        %1298 = vmatpush.msra.mxu0 0.0
        %1299 = vmatpush.msra.mxu0 0.0
        %1300 = vmatpush.msra.mxu0 0.0
        %1301 = vmatpush.msra.mxu0 0.0
        %1302 = vmatpush.msra.mxu0 0.0
        %1303 = vmatpush.msra.mxu0 0.0
        %1304 = vmatpush.msra.mxu0 0.0
        %1305 = vmatpush.msra.mxu0 %v1017
        %1306 = vmatmul.f32.gmra.mxu0 %v1288
        %v1307 = vpop.f32.mrf.mxu0
        %v1308 = vadd.f32 0.0, %v1307
        %1309 = vdwg.mxu0
        %v1311 = vsel %vm1102, %v1286, 0
        %1313 = vmatpush.msra.mxu0 0.0
        %1314 = vmatpush.msra.mxu0 0.0
        %1315 = vmatpush.msra.mxu0 0.0
        %1316 = vmatpush.msra.mxu0 0.0
        %1317 = vmatpush.msra.mxu0 0.0
        %1318 = vmatpush.msra.mxu0 0.0
        %1319 = vmatpush.msra.mxu0 0.0
        %1320 = vmatpush.msra.mxu0 0.0
        %1321 = vmatpush.msra.mxu0 0.0
        %1322 = vmatpush.msra.mxu0 0.0
        %1323 = vmatpush.msra.mxu0 0.0
        %1324 = vmatpush.msra.mxu0 0.0
        %1325 = vmatpush.msra.mxu0 0.0
        %1326 = vmatpush.msra.mxu0 0.0
        %1327 = vmatpush.msra.mxu0 0.0
        %1328 = vmatpush.msra.mxu0 %v1020
        %1329 = vmatmul.f32.gmra.mxu0 %v1311
        %v1330 = vpop.f32.mrf.mxu0
        %v1331 = vadd.f32 0.0, %v1330
        %1332 = vdwg.mxu0
        %1333 = vmatpush.msra.mxu0 %v1053
        %1334 = vmatpush.msra.mxu0 %v1052
        %1335 = vmatpush.msra.mxu0 %v1051
        %1336 = vmatpush.msra.mxu0 %v1050
        %1337 = vmatpush.msra.mxu0 %v1049
        %1338 = vmatpush.msra.mxu0 %v1048
        %1339 = vmatpush.msra.mxu0 %v1047
        %1340 = vmatpush.msra.mxu0 %v1046
        %1341 = vmatpush.msra.mxu0 %v1045
        %1342 = vmatpush.msra.mxu0 %v1044
        %1343 = vmatpush.msra.mxu0 %v1043
        %1344 = vmatpush.msra.mxu0 %v1042
        %1345 = vmatpush.msra.mxu0 %v1041
        %1346 = vmatpush.msra.mxu0 %v1040
        %1347 = vmatpush.msra.mxu0 %v1039
        %1348 = vmatpush.msra.mxu0 %v1038
        %1349 = vmatmul.f32.gmra.mxu0 %v1308
        %v1350 = vpop.f32.mrf.mxu0
        %v1351 = vadd.f32 0.0, %v1350
        %1352 = vmatmul.f32.gmra.mxu0 %v1331
        %v1353 = vpop.f32.mrf.mxu0
        %v1354 = vadd.f32 0.0, %v1353
        %1355 = vdwg.mxu0
        %1356 = vmatpush.msra.mxu0 %v1037
        %1357 = vmatpush.msra.mxu0 %v1036
        %1358 = vmatpush.msra.mxu0 %v1035
        %1359 = vmatpush.msra.mxu0 %v1034
        %1360 = vmatpush.msra.mxu0 %v1033
        %1361 = vmatpush.msra.mxu0 %v1032
        %1362 = vmatpush.msra.mxu0 %v1031
        %1363 = vmatpush.msra.mxu0 %v1030
        %1364 = vmatpush.msra.mxu0 %v1029
        %1365 = vmatpush.msra.mxu0 %v1028
        %1366 = vmatpush.msra.mxu0 %v1027
        %1367 = vmatpush.msra.mxu0 %v1026
        %1368 = vmatpush.msra.mxu0 %v1025
        %1369 = vmatpush.msra.mxu0 %v1024
        %1370 = vmatpush.msra.mxu0 %v1023
        %1371 = vmatpush.msra.mxu0 %v1022
        %1372 = vmatmul.f32.gmra.mxu0 %v1172
        %v1373 = vpop.f32.mrf.mxu0
        %v1374 = vadd.f32 %v1351, %v1373
        %1375 = vmatmul.f32.gmra.mxu0 %v1195
        %v1376 = vpop.f32.mrf.mxu0
        %v1377 = vadd.f32 %v1354, %v1376
        %1378 = vdwg.mxu0
        %v1379 = vld [vmem:[%s7] sm:$0x1]
        %v1381 = vperm.slane %v1379, 0
        %v1383 = vadd.f32 %v1374, %v1381
        %v1384 = vadd.f32 %v1377, %v1381
        %v1385 = vadd.f32 %v1383, %v772
        %v1386 = vadd.f32 %v1384, %v773
        %v1387 = vld [vmem:[%s8] sm:$0x1]
        %v1388 = vld [vmem:[%s9] sm:$0x1]
        %1389 = vadd.xlane.f32.xlu0 %v1385
        %v1390 = vpop.xlane.xlu0 %1389
        %1391 = vadd.xlane.f32.xlu0 %v1386
        %v1392 = vpop.xlane.xlu0 %1391
        %v1393 = vmul.f32 %v1390, %v727
        %v1394 = vmul.f32 %v1392, %v727
        %v1395 = vsub.f32 %v1385, %v1393
        %v1396 = vsub.f32 %v1386, %v1394
        %v1397 = vmul.f32 %v1395, %v1395
        %v1398 = vmul.f32 %v1396, %v1396
        %1399 = vadd.xlane.f32.xlu0 %v1397
        %v1400 = vpop.xlane.xlu0 %1399
        %1401 = vadd.xlane.f32.xlu0 %v1398
        %v1402 = vpop.xlane.xlu0 %1401
        %v1403 = vmul.f32 %v1400, %v727
        %v1404 = vmul.f32 %v1402, %v727
        %v1405 = vadd.f32 %v1403, 1e-12
        %v1406 = vadd.f32 %v1404, 1e-12
        %v1407 = vrsqrt.pop %v1405
        %v1408 = vmul.f32 %v1407, %v1405
        %v1409 = vmul.f32 %v1408, %v1407
        %v1410 = vmul.f32 0.5, %v1409
        %v1411 = vsub.f32 1.5, %v1410
        %v1412 = vmul.f32 %v1407, %v1411
        %vm1413 = vweird.f32 %v1405
        %vm1414 = vweird.f32 %v1407
        %vm1415 = vmor %vm1413, %vm1414
        %v1416 = vsel %vm1415, %v1407, %v1412
        %v1417 = vrsqrt.pop %v1406
        %v1418 = vmul.f32 %v1417, %v1406
        %v1419 = vmul.f32 %v1418, %v1417
        %v1420 = vmul.f32 0.5, %v1419
        %v1421 = vsub.f32 1.5, %v1420
        %v1422 = vmul.f32 %v1417, %v1421
        %vm1423 = vweird.f32 %v1406
        %vm1424 = vweird.f32 %v1417
        %vm1425 = vmor %vm1423, %vm1424
        %v1426 = vsel %vm1425, %v1417, %v1422
        %v1427 = vmul.f32 %v1395, %v1416
        %v1428 = vmul.f32 %v1396, %v1426
        %v1430 = vperm.slane %v1387, 0
        %v1432 = vmul.f32 %v1427, %v1430
        %v1433 = vmul.f32 %v1428, %v1430
        %v1435 = vperm.slane %v1388, 0
        %v1437 = vadd.f32 %v1432, %v1435
        %v1438 = vadd.f32 %v1433, %v1435
        %v1439 = vld [vmem:[#allocation6] sm:$0xff]
        %v1440 = vld [vmem:[#allocation6 + $0x8] sm:$0xff]
        %v1441 = vld [vmem:[#allocation6 + $0x10] sm:$0xff]
        %v1442 = vld [vmem:[#allocation6 + $0x18] sm:$0xff]
        %v1443 = vld [vmem:[#allocation6 + $0x20] sm:$0xff]
        %v1444 = vld [vmem:[#allocation6 + $0x28] sm:$0xff]
        %v1445 = vld [vmem:[#allocation6 + $0x30] sm:$0xff]
        %v1446 = vld [vmem:[#allocation6 + $0x38] sm:$0xff]
        %v1447 = vld [vmem:[#allocation6 + $0x40] sm:$0xff]
        %v1448 = vld [vmem:[#allocation6 + $0x48] sm:$0xff]
        %v1449 = vld [vmem:[#allocation6 + $0x50] sm:$0xff]
        %v1450 = vld [vmem:[#allocation6 + $0x58] sm:$0xff]
        %v1451 = vld [vmem:[#allocation6 + $0x60] sm:$0xff]
        %v1452 = vld [vmem:[#allocation6 + $0x68] sm:$0xff]
        %v1453 = vld [vmem:[#allocation6 + $0x70] sm:$0xff]
        %v1454 = vld [vmem:[#allocation6 + $0x78] sm:$0xff]
        %v1455 = vld [vmem:[#allocation6 + $0x80] sm:$0xff]
        %v1456 = vld [vmem:[#allocation6 + $0x88] sm:$0xff]
        %v1457 = vld [vmem:[#allocation6 + $0x90] sm:$0xff]
        %v1458 = vld [vmem:[#allocation6 + $0x98] sm:$0xff]
        %v1459 = vld [vmem:[#allocation6 + $0xa0] sm:$0xff]
        %v1460 = vld [vmem:[#allocation6 + $0xa8] sm:$0xff]
        %v1461 = vld [vmem:[#allocation6 + $0xb0] sm:$0xff]
        %v1462 = vld [vmem:[#allocation6 + $0xb8] sm:$0xff]
        %v1463 = vld [vmem:[#allocation6 + $0xc0] sm:$0xff]
        %v1464 = vld [vmem:[#allocation6 + $0xc8] sm:$0xff]
        %v1465 = vld [vmem:[#allocation6 + $0xd0] sm:$0xff]
        %v1466 = vld [vmem:[#allocation6 + $0xd8] sm:$0xff]
        %v1467 = vld [vmem:[#allocation6 + $0xe0] sm:$0xff]
        %v1468 = vld [vmem:[#allocation6 + $0xe8] sm:$0xff]
        %v1469 = vld [vmem:[#allocation6 + $0xf0] sm:$0xff]
        %v1470 = vld [vmem:[#allocation6 + $0xf8] sm:$0xff]
        %v1471 = vld [vmem:[%s11] sm:$0x3]
        %v1473 = vperm.slane %v1471, 0
        %v1474 = vperm.slane %v1471, 1
        %1477 = vmatpush.msra.mxu0 %v1469
        %1478 = vmatpush.msra.mxu0 %v1467
        %1479 = vmatpush.msra.mxu0 %v1465
        %1480 = vmatpush.msra.mxu0 %v1463
        %1481 = vmatpush.msra.mxu0 %v1461
        %1482 = vmatpush.msra.mxu0 %v1459
        %1483 = vmatpush.msra.mxu0 %v1457
        %1484 = vmatpush.msra.mxu0 %v1455
        %1485 = vmatpush.msra.mxu0 %v1453
        %1486 = vmatpush.msra.mxu0 %v1451
        %1487 = vmatpush.msra.mxu0 %v1449
        %1488 = vmatpush.msra.mxu0 %v1447
        %1489 = vmatpush.msra.mxu0 %v1445
        %1490 = vmatpush.msra.mxu0 %v1443
        %1491 = vmatpush.msra.mxu0 %v1441
        %1492 = vmatpush.msra.mxu0 %v1439
        %1493 = vmatmul.f32.gmra.mxu0 %v1437
        %v1494 = vpop.f32.mrf.mxu0
        %v1495 = vadd.f32 %v1473, %v1494
        %1496 = vmatmul.f32.gmra.mxu0 %v1438
        %v1497 = vpop.f32.mrf.mxu0
        %v1498 = vadd.f32 %v1473, %v1497
        %1499 = vdwg.mxu0
        %1500 = vmatpush.msra.mxu0 %v1470
        %1501 = vmatpush.msra.mxu0 %v1468
        %1502 = vmatpush.msra.mxu0 %v1466
        %1503 = vmatpush.msra.mxu0 %v1464
        %1504 = vmatpush.msra.mxu0 %v1462
        %1505 = vmatpush.msra.mxu0 %v1460
        %1506 = vmatpush.msra.mxu0 %v1458
        %1507 = vmatpush.msra.mxu0 %v1456
        %1508 = vmatpush.msra.mxu0 %v1454
        %1509 = vmatpush.msra.mxu0 %v1452
        %1510 = vmatpush.msra.mxu0 %v1450
        %1511 = vmatpush.msra.mxu0 %v1448
        %1512 = vmatpush.msra.mxu0 %v1446
        %1513 = vmatpush.msra.mxu0 %v1444
        %1514 = vmatpush.msra.mxu0 %v1442
        %1515 = vmatpush.msra.mxu0 %v1440
        %1516 = vmatmul.f32.gmra.mxu0 %v1437
        %v1517 = vpop.f32.mrf.mxu0
        %v1518 = vadd.f32 %v1474, %v1517
        %1519 = vmatmul.f32.gmra.mxu0 %v1438
        %v1520 = vpop.f32.mrf.mxu0
        %v1521 = vadd.f32 %v1474, %v1520
        %1522 = vdwg.mxu0
        %v1523 = vmul.f32 %v1495, %v1495
        %v1524 = vmul.f32 %v1518, %v1518
        %v1525 = vmul.f32 %v1498, %v1498
        %v1526 = vmul.f32 %v1521, %v1521
        %v1527 = vmul.f32 %v1495, %v1523
        %v1528 = vmul.f32 %v1518, %v1524
        %v1529 = vmul.f32 %v1498, %v1525
        %v1530 = vmul.f32 %v1521, %v1526
        %v1531 = vmul.f32 %v1527, 0.044715
        %v1532 = vmul.f32 %v1528, 0.044715
        %v1533 = vmul.f32 %v1529, 0.044715
        %v1534 = vmul.f32 %v1530, 0.044715
        %v1535 = vadd.f32 %v1495, %v1531
        %v1536 = vadd.f32 %v1518, %v1532
        %v1537 = vadd.f32 %v1498, %v1533
        %v1538 = vadd.f32 %v1521, %v1534
        %v1539 = vmul.f32 %v1535, 0.7978846
        %v1540 = vmul.f32 %v1536, 0.7978846
        %v1541 = vmul.f32 %v1537, 0.7978846
        %v1542 = vmul.f32 %v1538, 0.7978846
        %v1543 = vtanh.pop %v1539
        %v1544 = vtanh.pop %v1540
        %v1545 = vtanh.pop %v1541
        %v1546 = vtanh.pop %v1542
        %v1547 = vadd.f32 %v1543, 1.0
        %v1548 = vadd.f32 %v1544, 1.0
        %v1549 = vadd.f32 %v1545, 1.0
        %v1550 = vadd.f32 %v1546, 1.0
        %v1551 = vmul.f32 %v1547, 0.5
        %v1552 = vmul.f32 %v1548, 0.5
        %v1553 = vmul.f32 %v1549, 0.5
        %v1554 = vmul.f32 %v1550, 0.5
        %v1555 = vmul.f32 %v1495, %v1551
        %v1556 = vmul.f32 %v1518, %v1552
        %v1557 = vmul.f32 %v1498, %v1553
        %v1558 = vmul.f32 %v1521, %v1554
        %v1559 = vld [vmem:[#allocation7] sm:$0xff]
        %v1560 = vld [vmem:[#allocation7 + $0x8] sm:$0xff]
        %v1561 = vld [vmem:[#allocation7 + $0x10] sm:$0xff]
        %v1562 = vld [vmem:[#allocation7 + $0x18] sm:$0xff]
        %v1563 = vld [vmem:[#allocation7 + $0x20] sm:$0xff]
        %v1564 = vld [vmem:[#allocation7 + $0x28] sm:$0xff]
        %v1565 = vld [vmem:[#allocation7 + $0x30] sm:$0xff]
        %v1566 = vld [vmem:[#allocation7 + $0x38] sm:$0xff]
        %v1567 = vld [vmem:[#allocation7 + $0x40] sm:$0xff]
        %v1568 = vld [vmem:[#allocation7 + $0x48] sm:$0xff]
        %v1569 = vld [vmem:[#allocation7 + $0x50] sm:$0xff]
        %v1570 = vld [vmem:[#allocation7 + $0x58] sm:$0xff]
        %v1571 = vld [vmem:[#allocation7 + $0x60] sm:$0xff]
        %v1572 = vld [vmem:[#allocation7 + $0x68] sm:$0xff]
        %v1573 = vld [vmem:[#allocation7 + $0x70] sm:$0xff]
        %v1574 = vld [vmem:[#allocation7 + $0x78] sm:$0xff]
        %v1575 = vld [vmem:[#allocation7 + $0x80] sm:$0xff]
        %v1576 = vld [vmem:[#allocation7 + $0x88] sm:$0xff]
        %v1577 = vld [vmem:[#allocation7 + $0x90] sm:$0xff]
        %v1578 = vld [vmem:[#allocation7 + $0x98] sm:$0xff]
        %v1579 = vld [vmem:[#allocation7 + $0xa0] sm:$0xff]
        %v1580 = vld [vmem:[#allocation7 + $0xa8] sm:$0xff]
        %v1581 = vld [vmem:[#allocation7 + $0xb0] sm:$0xff]
        %v1582 = vld [vmem:[#allocation7 + $0xb8] sm:$0xff]
        %v1583 = vld [vmem:[#allocation7 + $0xc0] sm:$0xff]
        %v1584 = vld [vmem:[#allocation7 + $0xc8] sm:$0xff]
        %v1585 = vld [vmem:[#allocation7 + $0xd0] sm:$0xff]
        %v1586 = vld [vmem:[#allocation7 + $0xd8] sm:$0xff]
        %v1587 = vld [vmem:[#allocation7 + $0xe0] sm:$0xff]
        %v1588 = vld [vmem:[#allocation7 + $0xe8] sm:$0xff]
        %v1589 = vld [vmem:[#allocation7 + $0xf0] sm:$0xff]
        %v1590 = vld [vmem:[#allocation7 + $0xf8] sm:$0xff]
        %v1591 = vld [vmem:[%s13] sm:$0x1]
        %v1593 = vperm.slane %v1591, 0
        %1595 = vmatpush.msra.mxu0 %v1574
        %1596 = vmatpush.msra.mxu0 %v1573
        %1597 = vmatpush.msra.mxu0 %v1572
        %1598 = vmatpush.msra.mxu0 %v1571
        %1599 = vmatpush.msra.mxu0 %v1570
        %1600 = vmatpush.msra.mxu0 %v1569
        %1601 = vmatpush.msra.mxu0 %v1568
        %1602 = vmatpush.msra.mxu0 %v1567
        %1603 = vmatpush.msra.mxu0 %v1566
        %1604 = vmatpush.msra.mxu0 %v1565
        %1605 = vmatpush.msra.mxu0 %v1564
        %1606 = vmatpush.msra.mxu0 %v1563
        %1607 = vmatpush.msra.mxu0 %v1562
        %1608 = vmatpush.msra.mxu0 %v1561
        %1609 = vmatpush.msra.mxu0 %v1560
        %1610 = vmatpush.msra.mxu0 %v1559
        %1611 = vmatmul.f32.gmra.mxu0 %v1555
        %v1612 = vpop.f32.mrf.mxu0
        %v1613 = vadd.f32 %v1593, %v1612
        %1614 = vmatmul.f32.gmra.mxu0 %v1557
        %v1615 = vpop.f32.mrf.mxu0
        %v1616 = vadd.f32 %v1593, %v1615
        %1617 = vdwg.mxu0
        %1618 = vmatpush.msra.mxu0 %v1590
        %1619 = vmatpush.msra.mxu0 %v1589
        %1620 = vmatpush.msra.mxu0 %v1588
        %1621 = vmatpush.msra.mxu0 %v1587
        %1622 = vmatpush.msra.mxu0 %v1586
        %1623 = vmatpush.msra.mxu0 %v1585
        %1624 = vmatpush.msra.mxu0 %v1584
        %1625 = vmatpush.msra.mxu0 %v1583
        %1626 = vmatpush.msra.mxu0 %v1582
        %1627 = vmatpush.msra.mxu0 %v1581
        %1628 = vmatpush.msra.mxu0 %v1580
        %1629 = vmatpush.msra.mxu0 %v1579
        %1630 = vmatpush.msra.mxu0 %v1578
        %1631 = vmatpush.msra.mxu0 %v1577
        %1632 = vmatpush.msra.mxu0 %v1576
        %1633 = vmatpush.msra.mxu0 %v1575
        %1634 = vmatmul.f32.gmra.mxu0 %v1556
        %v1635 = vpop.f32.mrf.mxu0
        %v1636 = vadd.f32 %v1613, %v1635
        %1637 = vmatmul.f32.gmra.mxu0 %v1558
        %v1638 = vpop.f32.mrf.mxu0
        %v1639 = vadd.f32 %v1616, %v1638
        %1640 = vdwg.mxu0
        %v1641 = vadd.f32 %v1636, %v1437
        %v1642 = vadd.f32 %v1639, %v1438
        %v1643 = vld [vmem:[%s14] sm:$0x1]
        %v1644 = vld [vmem:[%s15] sm:$0x1]
        %1645 = vadd.xlane.f32.xlu0 %v1641
        %v1646 = vpop.xlane.xlu0 %1645
        %1647 = vadd.xlane.f32.xlu0 %v1642
        %v1648 = vpop.xlane.xlu0 %1647
        %v1649 = vmul.f32 %v1646, %v727
        %v1650 = vmul.f32 %v1648, %v727
        %v1651 = vsub.f32 %v1641, %v1649
        %v1652 = vsub.f32 %v1642, %v1650
        %v1653 = vmul.f32 %v1651, %v1651
        %v1654 = vmul.f32 %v1652, %v1652
        %1655 = vadd.xlane.f32.xlu0 %v1653
        %v1656 = vpop.xlane.xlu0 %1655
        %1657 = vadd.xlane.f32.xlu0 %v1654
        %v1658 = vpop.xlane.xlu0 %1657
        %v1659 = vmul.f32 %v1656, %v727
        %v1660 = vmul.f32 %v1658, %v727
        %v1661 = vadd.f32 %v1659, 1e-12
        %v1662 = vadd.f32 %v1660, 1e-12
        %v1663 = vrsqrt.pop %v1661
        %v1664 = vmul.f32 %v1663, %v1661
        %v1665 = vmul.f32 %v1664, %v1663
        %v1666 = vmul.f32 0.5, %v1665
        %v1667 = vsub.f32 1.5, %v1666
        %v1668 = vmul.f32 %v1663, %v1667
        %vm1669 = vweird.f32 %v1661
        %vm1670 = vweird.f32 %v1663
        %vm1671 = vmor %vm1669, %vm1670
        %v1672 = vsel %vm1671, %v1663, %v1668
        %v1673 = vrsqrt.pop %v1662
        %v1674 = vmul.f32 %v1673, %v1662
        %v1675 = vmul.f32 %v1674, %v1673
        %v1676 = vmul.f32 0.5, %v1675
        %v1677 = vsub.f32 1.5, %v1676
        %v1678 = vmul.f32 %v1673, %v1677
        %vm1679 = vweird.f32 %v1662
        %vm1680 = vweird.f32 %v1673
        %vm1681 = vmor %vm1679, %vm1680
        %v1682 = vsel %vm1681, %v1673, %v1678
        %v1683 = vmul.f32 %v1651, %v1672
        %v1684 = vmul.f32 %v1652, %v1682
        %v1686 = vperm.slane %v1643, 0
        %v1688 = vmul.f32 %v1683, %v1686
        %v1689 = vmul.f32 %v1684, %v1686
        %v1691 = vperm.slane %v1644, 0
        %v1693 = vadd.f32 %v1688, %v1691
        %v1694 = vadd.f32 %v1689, %v1691
        %s1695 = scalar_lea.vmem [#allocation2], 768
        %v1696 = vld [vmem:[%s1695] sm:$0xff]
        %v1697 = vld [vmem:[%s1695 + $0x8] sm:$0xff]
        %v1698 = vld [vmem:[%s1695 + $0x10] sm:$0xff]
        %v1699 = vld [vmem:[%s1695 + $0x18] sm:$0xff]
        %v1700 = vld [vmem:[%s1695 + $0x20] sm:$0xff]
        %v1701 = vld [vmem:[%s1695 + $0x28] sm:$0xff]
        %v1702 = vld [vmem:[%s1695 + $0x30] sm:$0xff]
        %v1703 = vld [vmem:[%s1695 + $0x38] sm:$0xff]
        %v1704 = vld [vmem:[%s1695 + $0x40] sm:$0xff]
        %v1705 = vld [vmem:[%s1695 + $0x48] sm:$0xff]
        %v1706 = vld [vmem:[%s1695 + $0x50] sm:$0xff]
        %v1707 = vld [vmem:[%s1695 + $0x58] sm:$0xff]
        %v1708 = vld [vmem:[%s1695 + $0x60] sm:$0xff]
        %v1709 = vld [vmem:[%s1695 + $0x68] sm:$0xff]
        %v1710 = vld [vmem:[%s1695 + $0x70] sm:$0xff]
        %v1711 = vld [vmem:[%s1695 + $0x78] sm:$0xff]
        %v1712 = vld [vmem:[%s1695 + $0x80] sm:$0xff]
        %v1713 = vld [vmem:[%s1695 + $0x88] sm:$0xff]
        %v1714 = vld [vmem:[%s1695 + $0x90] sm:$0xff]
        %v1715 = vld [vmem:[%s1695 + $0x98] sm:$0xff]
        %v1716 = vld [vmem:[%s1695 + $0xa0] sm:$0xff]
        %v1717 = vld [vmem:[%s1695 + $0xa8] sm:$0xff]
        %v1718 = vld [vmem:[%s1695 + $0xb0] sm:$0xff]
        %v1719 = vld [vmem:[%s1695 + $0xb8] sm:$0xff]
        %v1720 = vld [vmem:[%s1695 + $0xc0] sm:$0xff]
        %v1721 = vld [vmem:[%s1695 + $0xc8] sm:$0xff]
        %v1722 = vld [vmem:[%s1695 + $0xd0] sm:$0xff]
        %v1723 = vld [vmem:[%s1695 + $0xd8] sm:$0xff]
        %v1724 = vld [vmem:[%s1695 + $0xe0] sm:$0xff]
        %v1725 = vld [vmem:[%s1695 + $0xe8] sm:$0xff]
        %v1726 = vld [vmem:[%s1695 + $0xf0] sm:$0xff]
        %v1727 = vld [vmem:[%s1695 + $0xf8] sm:$0xff]
        %v1728 = vld [vmem:[%s1695 + $0x100] sm:$0xff]
        %v1729 = vld [vmem:[%s1695 + $0x108] sm:$0xff]
        %v1730 = vld [vmem:[%s1695 + $0x110] sm:$0xff]
        %v1731 = vld [vmem:[%s1695 + $0x118] sm:$0xff]
        %v1732 = vld [vmem:[%s1695 + $0x120] sm:$0xff]
        %v1733 = vld [vmem:[%s1695 + $0x128] sm:$0xff]
        %v1734 = vld [vmem:[%s1695 + $0x130] sm:$0xff]
        %v1735 = vld [vmem:[%s1695 + $0x138] sm:$0xff]
        %v1736 = vld [vmem:[%s1695 + $0x140] sm:$0xff]
        %v1737 = vld [vmem:[%s1695 + $0x148] sm:$0xff]
        %v1738 = vld [vmem:[%s1695 + $0x150] sm:$0xff]
        %v1739 = vld [vmem:[%s1695 + $0x158] sm:$0xff]
        %v1740 = vld [vmem:[%s1695 + $0x160] sm:$0xff]
        %v1741 = vld [vmem:[%s1695 + $0x168] sm:$0xff]
        %v1742 = vld [vmem:[%s1695 + $0x170] sm:$0xff]
        %v1743 = vld [vmem:[%s1695 + $0x178] sm:$0xff]
        %v1744 = vld [vmem:[%s1695 + $0x180] sm:$0xff]
        %v1745 = vld [vmem:[%s1695 + $0x188] sm:$0xff]
        %v1746 = vld [vmem:[%s1695 + $0x190] sm:$0xff]
        %v1747 = vld [vmem:[%s1695 + $0x198] sm:$0xff]
        %v1748 = vld [vmem:[%s1695 + $0x1a0] sm:$0xff]
        %v1749 = vld [vmem:[%s1695 + $0x1a8] sm:$0xff]
        %v1750 = vld [vmem:[%s1695 + $0x1b0] sm:$0xff]
        %v1751 = vld [vmem:[%s1695 + $0x1b8] sm:$0xff]
        %v1752 = vld [vmem:[%s1695 + $0x1c0] sm:$0xff]
        %v1753 = vld [vmem:[%s1695 + $0x1c8] sm:$0xff]
        %v1754 = vld [vmem:[%s1695 + $0x1d0] sm:$0xff]
        %v1755 = vld [vmem:[%s1695 + $0x1d8] sm:$0xff]
        %v1756 = vld [vmem:[%s1695 + $0x1e0] sm:$0xff]
        %v1757 = vld [vmem:[%s1695 + $0x1e8] sm:$0xff]
        %v1758 = vld [vmem:[%s1695 + $0x1f0] sm:$0xff]
        %v1759 = vld [vmem:[%s1695 + $0x1f8] sm:$0xff]
        %v1760 = vld [vmem:[%s1695 + $0x200] sm:$0xff]
        %v1761 = vld [vmem:[%s1695 + $0x208] sm:$0xff]
        %v1762 = vld [vmem:[%s1695 + $0x210] sm:$0xff]
        %v1763 = vld [vmem:[%s1695 + $0x218] sm:$0xff]
        %v1764 = vld [vmem:[%s1695 + $0x220] sm:$0xff]
        %v1765 = vld [vmem:[%s1695 + $0x228] sm:$0xff]
        %v1766 = vld [vmem:[%s1695 + $0x230] sm:$0xff]
        %v1767 = vld [vmem:[%s1695 + $0x238] sm:$0xff]
        %v1768 = vld [vmem:[%s1695 + $0x240] sm:$0xff]
        %v1769 = vld [vmem:[%s1695 + $0x248] sm:$0xff]
        %v1770 = vld [vmem:[%s1695 + $0x250] sm:$0xff]
        %v1771 = vld [vmem:[%s1695 + $0x258] sm:$0xff]
        %v1772 = vld [vmem:[%s1695 + $0x260] sm:$0xff]
        %v1773 = vld [vmem:[%s1695 + $0x268] sm:$0xff]
        %v1774 = vld [vmem:[%s1695 + $0x270] sm:$0xff]
        %v1775 = vld [vmem:[%s1695 + $0x278] sm:$0xff]
        %v1776 = vld [vmem:[%s1695 + $0x280] sm:$0xff]
        %v1777 = vld [vmem:[%s1695 + $0x288] sm:$0xff]
        %v1778 = vld [vmem:[%s1695 + $0x290] sm:$0xff]
        %v1779 = vld [vmem:[%s1695 + $0x298] sm:$0xff]
        %v1780 = vld [vmem:[%s1695 + $0x2a0] sm:$0xff]
        %v1781 = vld [vmem:[%s1695 + $0x2a8] sm:$0xff]
        %v1782 = vld [vmem:[%s1695 + $0x2b0] sm:$0xff]
        %v1783 = vld [vmem:[%s1695 + $0x2b8] sm:$0xff]
        %v1784 = vld [vmem:[%s1695 + $0x2c0] sm:$0xff]
        %v1785 = vld [vmem:[%s1695 + $0x2c8] sm:$0xff]
        %v1786 = vld [vmem:[%s1695 + $0x2d0] sm:$0xff]
        %v1787 = vld [vmem:[%s1695 + $0x2d8] sm:$0xff]
        %v1788 = vld [vmem:[%s1695 + $0x2e0] sm:$0xff]
        %v1789 = vld [vmem:[%s1695 + $0x2e8] sm:$0xff]
        %v1790 = vld [vmem:[%s1695 + $0x2f0] sm:$0xff]
        %v1791 = vld [vmem:[%s1695 + $0x2f8] sm:$0xff]
        %s1792 = scalar_lea.vmem %s5, 6
        %v1793 = vld [vmem:[%s1792] sm:$0x3f]
        %v1795 = vperm.slane %v1793, 0
        %v1796 = vperm.slane %v1793, 1
        %v1797 = vperm.slane %v1793, 2
        %v1798 = vperm.slane %v1793, 3
        %v1799 = vperm.slane %v1793, 4
        %v1800 = vperm.slane %v1793, 5
        %1807 = vmatpush.msra.mxu0 %v1786
        %1808 = vmatpush.msra.mxu0 %v1780
        %1809 = vmatpush.msra.mxu0 %v1774
        %1810 = vmatpush.msra.mxu0 %v1768
        %1811 = vmatpush.msra.mxu0 %v1762
        %1812 = vmatpush.msra.mxu0 %v1756
        %1813 = vmatpush.msra.mxu0 %v1750
        %1814 = vmatpush.msra.mxu0 %v1744
        %1815 = vmatpush.msra.mxu0 %v1738
        %1816 = vmatpush.msra.mxu0 %v1732
        %1817 = vmatpush.msra.mxu0 %v1726
        %1818 = vmatpush.msra.mxu0 %v1720
        %1819 = vmatpush.msra.mxu0 %v1714
        %1820 = vmatpush.msra.mxu0 %v1708
        %1821 = vmatpush.msra.mxu0 %v1702
        %1822 = vmatpush.msra.mxu0 %v1696
        %1823 = vmatmul.f32.gmra.mxu0 %v1693
        %v1824 = vpop.f32.mrf.mxu0
        %v1825 = vadd.f32 %v1795, %v1824
        %1826 = vmatmul.f32.gmra.mxu0 %v1694
        %v1827 = vpop.f32.mrf.mxu0
        %v1828 = vadd.f32 %v1795, %v1827
        %1829 = vdwg.mxu0
        %1830 = vmatpush.msra.mxu0 %v1787
        %1831 = vmatpush.msra.mxu0 %v1781
        %1832 = vmatpush.msra.mxu0 %v1775
        %1833 = vmatpush.msra.mxu0 %v1769
        %1834 = vmatpush.msra.mxu0 %v1763
        %1835 = vmatpush.msra.mxu0 %v1757
        %1836 = vmatpush.msra.mxu0 %v1751
        %1837 = vmatpush.msra.mxu0 %v1745
        %1838 = vmatpush.msra.mxu0 %v1739
        %1839 = vmatpush.msra.mxu0 %v1733
        %1840 = vmatpush.msra.mxu0 %v1727
        %1841 = vmatpush.msra.mxu0 %v1721
        %1842 = vmatpush.msra.mxu0 %v1715
        %1843 = vmatpush.msra.mxu0 %v1709
        %1844 = vmatpush.msra.mxu0 %v1703
        %1845 = vmatpush.msra.mxu0 %v1697
        %1846 = vmatmul.f32.gmra.mxu0 %v1693
        %v1847 = vpop.f32.mrf.mxu0
        %v1848 = vadd.f32 %v1796, %v1847
        %1849 = vmatmul.f32.gmra.mxu0 %v1694
        %v1850 = vpop.f32.mrf.mxu0
        %v1851 = vadd.f32 %v1796, %v1850
        %1852 = vdwg.mxu0
        %1853 = vmatpush.msra.mxu0 %v1788
        %1854 = vmatpush.msra.mxu0 %v1782
        %1855 = vmatpush.msra.mxu0 %v1776
        %1856 = vmatpush.msra.mxu0 %v1770
        %1857 = vmatpush.msra.mxu0 %v1764
        %1858 = vmatpush.msra.mxu0 %v1758
        %1859 = vmatpush.msra.mxu0 %v1752
        %1860 = vmatpush.msra.mxu0 %v1746
        %1861 = vmatpush.msra.mxu0 %v1740
        %1862 = vmatpush.msra.mxu0 %v1734
        %1863 = vmatpush.msra.mxu0 %v1728
        %1864 = vmatpush.msra.mxu0 %v1722
        %1865 = vmatpush.msra.mxu0 %v1716
        %1866 = vmatpush.msra.mxu0 %v1710
        %1867 = vmatpush.msra.mxu0 %v1704
        %1868 = vmatpush.msra.mxu0 %v1698
        %1869 = vmatmul.f32.gmra.mxu0 %v1693
        %v1870 = vpop.f32.mrf.mxu0
        %v1871 = vadd.f32 %v1797, %v1870
        %1872 = vmatmul.f32.gmra.mxu0 %v1694
        %v1873 = vpop.f32.mrf.mxu0
        %v1874 = vadd.f32 %v1797, %v1873
        %1875 = vdwg.mxu0
        %1876 = vmatpush.msra.mxu0 %v1789
        %1877 = vmatpush.msra.mxu0 %v1783
        %1878 = vmatpush.msra.mxu0 %v1777
        %1879 = vmatpush.msra.mxu0 %v1771
        %1880 = vmatpush.msra.mxu0 %v1765
        %1881 = vmatpush.msra.mxu0 %v1759
        %1882 = vmatpush.msra.mxu0 %v1753
        %1883 = vmatpush.msra.mxu0 %v1747
        %1884 = vmatpush.msra.mxu0 %v1741
        %1885 = vmatpush.msra.mxu0 %v1735
        %1886 = vmatpush.msra.mxu0 %v1729
        %1887 = vmatpush.msra.mxu0 %v1723
        %1888 = vmatpush.msra.mxu0 %v1717
        %1889 = vmatpush.msra.mxu0 %v1711
        %1890 = vmatpush.msra.mxu0 %v1705
        %1891 = vmatpush.msra.mxu0 %v1699
        %1892 = vmatmul.f32.gmra.mxu0 %v1693
        %v1893 = vpop.f32.mrf.mxu0
        %v1894 = vadd.f32 %v1798, %v1893
        %1895 = vmatmul.f32.gmra.mxu0 %v1694
        %v1896 = vpop.f32.mrf.mxu0
        %v1897 = vadd.f32 %v1798, %v1896
        %1898 = vdwg.mxu0
        %1899 = vmatpush.msra.mxu0 %v1790
        %1900 = vmatpush.msra.mxu0 %v1784
        %1901 = vmatpush.msra.mxu0 %v1778
        %1902 = vmatpush.msra.mxu0 %v1772
        %1903 = vmatpush.msra.mxu0 %v1766
        %1904 = vmatpush.msra.mxu0 %v1760
        %1905 = vmatpush.msra.mxu0 %v1754
        %1906 = vmatpush.msra.mxu0 %v1748
        %1907 = vmatpush.msra.mxu0 %v1742
        %1908 = vmatpush.msra.mxu0 %v1736
        %1909 = vmatpush.msra.mxu0 %v1730
        %1910 = vmatpush.msra.mxu0 %v1724
        %1911 = vmatpush.msra.mxu0 %v1718
        %1912 = vmatpush.msra.mxu0 %v1712
        %1913 = vmatpush.msra.mxu0 %v1706
        %1914 = vmatpush.msra.mxu0 %v1700
        %1915 = vmatmul.f32.gmra.mxu0 %v1693
        %v1916 = vpop.f32.mrf.mxu0
        %v1917 = vadd.f32 %v1799, %v1916
        %1918 = vmatmul.f32.gmra.mxu0 %v1694
        %v1919 = vpop.f32.mrf.mxu0
        %v1920 = vadd.f32 %v1799, %v1919
        %1921 = vdwg.mxu0
        %1922 = vmatpush.msra.mxu0 %v1791
        %1923 = vmatpush.msra.mxu0 %v1785
        %1924 = vmatpush.msra.mxu0 %v1779
        %1925 = vmatpush.msra.mxu0 %v1773
        %1926 = vmatpush.msra.mxu0 %v1767
        %1927 = vmatpush.msra.mxu0 %v1761
        %1928 = vmatpush.msra.mxu0 %v1755
        %1929 = vmatpush.msra.mxu0 %v1749
        %1930 = vmatpush.msra.mxu0 %v1743
        %1931 = vmatpush.msra.mxu0 %v1737
        %1932 = vmatpush.msra.mxu0 %v1731
        %1933 = vmatpush.msra.mxu0 %v1725
        %1934 = vmatpush.msra.mxu0 %v1719
        %1935 = vmatpush.msra.mxu0 %v1713
        %1936 = vmatpush.msra.mxu0 %v1707
        %1937 = vmatpush.msra.mxu0 %v1701
        %1938 = vmatmul.f32.gmra.mxu0 %v1693
        %v1939 = vpop.f32.mrf.mxu0
        %v1940 = vadd.f32 %v1800, %v1939
        %1941 = vmatmul.f32.gmra.mxu0 %v1694
        %v1942 = vpop.f32.mrf.mxu0
        %v1943 = vadd.f32 %v1800, %v1942
        %1944 = vdwg.mxu0
        %s1945 = scalar_lea.vmem [#allocation4], 256
        %v1946 = vld [vmem:[%s1945] sm:$0xff]
        %v1947 = vld [vmem:[%s1945 + $0x8] sm:$0xff]
        %v1948 = vld [vmem:[%s1945 + $0x10] sm:$0xff]
        %v1949 = vld [vmem:[%s1945 + $0x18] sm:$0xff]
        %v1950 = vld [vmem:[%s1945 + $0x20] sm:$0xff]
        %v1951 = vld [vmem:[%s1945 + $0x28] sm:$0xff]
        %v1952 = vld [vmem:[%s1945 + $0x30] sm:$0xff]
        %v1953 = vld [vmem:[%s1945 + $0x38] sm:$0xff]
        %v1954 = vld [vmem:[%s1945 + $0x40] sm:$0xff]
        %v1955 = vld [vmem:[%s1945 + $0x48] sm:$0xff]
        %v1956 = vld [vmem:[%s1945 + $0x50] sm:$0xff]
        %v1957 = vld [vmem:[%s1945 + $0x58] sm:$0xff]
        %v1958 = vld [vmem:[%s1945 + $0x60] sm:$0xff]
        %v1959 = vld [vmem:[%s1945 + $0x68] sm:$0xff]
        %v1960 = vld [vmem:[%s1945 + $0x70] sm:$0xff]
        %v1961 = vld [vmem:[%s1945 + $0x78] sm:$0xff]
        %v1962 = vld [vmem:[%s1945 + $0x80] sm:$0xff]
        %v1963 = vld [vmem:[%s1945 + $0x88] sm:$0xff]
        %v1964 = vld [vmem:[%s1945 + $0x90] sm:$0xff]
        %v1965 = vld [vmem:[%s1945 + $0x98] sm:$0xff]
        %v1966 = vld [vmem:[%s1945 + $0xa0] sm:$0xff]
        %v1967 = vld [vmem:[%s1945 + $0xa8] sm:$0xff]
        %v1968 = vld [vmem:[%s1945 + $0xb0] sm:$0xff]
        %v1969 = vld [vmem:[%s1945 + $0xb8] sm:$0xff]
        %v1970 = vld [vmem:[%s1945 + $0xc0] sm:$0xff]
        %v1971 = vld [vmem:[%s1945 + $0xc8] sm:$0xff]
        %v1972 = vld [vmem:[%s1945 + $0xd0] sm:$0xff]
        %v1973 = vld [vmem:[%s1945 + $0xd8] sm:$0xff]
        %v1974 = vld [vmem:[%s1945 + $0xe0] sm:$0xff]
        %v1975 = vld [vmem:[%s1945 + $0xe8] sm:$0xff]
        %v1976 = vld [vmem:[%s1945 + $0xf0] sm:$0xff]
        %v1977 = vld [vmem:[%s1945 + $0xf8] sm:$0xff]
        %v1978 = vmul.f32 %v1825, 0.125
        %v1979 = vmul.f32 %v1828, 0.125
        %1980 = vmatpush.xpose.msra.mxu0 0.0
        %1981 = vmatpush.xpose.msra.mxu0 0.0
        %1982 = vmatpush.xpose.msra.mxu0 0.0
        %1983 = vmatpush.xpose.msra.mxu0 0.0
        %1984 = vmatpush.xpose.msra.mxu0 0.0
        %1985 = vmatpush.xpose.msra.mxu0 0.0
        %1986 = vmatpush.xpose.msra.mxu0 0.0
        %1987 = vmatpush.xpose.msra.mxu0 0.0
        %1988 = vmatpush.xpose.msra.mxu0 0.0
        %1989 = vmatpush.xpose.msra.mxu0 0.0
        %1990 = vmatpush.xpose.msra.mxu0 0.0
        %1991 = vmatpush.xpose.msra.mxu0 0.0
        %1992 = vmatpush.xpose.msra.mxu0 0.0
        %1993 = vmatpush.xpose.msra.mxu0 0.0
        %1994 = vmatpush.xpose.msra.mxu0 0.0
        %1995 = vmatpush.xpose.msra.mxu0 %v1848
        %1996 = vmatmul.f32.gmra.mxu0 %v1978
        %v1997 = vpop.f32.mrf.mxu0
        %v1998 = vadd.f32 %v1058, %v1997
        %1999 = vdwg.mxu0
        %2000 = vmatpush.xpose.msra.mxu0 0.0
        %2001 = vmatpush.xpose.msra.mxu0 0.0
        %2002 = vmatpush.xpose.msra.mxu0 0.0
        %2003 = vmatpush.xpose.msra.mxu0 0.0
        %2004 = vmatpush.xpose.msra.mxu0 0.0
        %2005 = vmatpush.xpose.msra.mxu0 0.0
        %2006 = vmatpush.xpose.msra.mxu0 0.0
        %2007 = vmatpush.xpose.msra.mxu0 0.0
        %2008 = vmatpush.xpose.msra.mxu0 0.0
        %2009 = vmatpush.xpose.msra.mxu0 0.0
        %2010 = vmatpush.xpose.msra.mxu0 0.0
        %2011 = vmatpush.xpose.msra.mxu0 0.0
        %2012 = vmatpush.xpose.msra.mxu0 0.0
        %2013 = vmatpush.xpose.msra.mxu0 0.0
        %2014 = vmatpush.xpose.msra.mxu0 0.0
        %2015 = vmatpush.xpose.msra.mxu0 %v1851
        %2016 = vmatmul.f32.gmra.mxu0 %v1979
        %v2017 = vpop.f32.mrf.mxu0
        %v2018 = vadd.f32 %v1059, %v2017
        %2019 = vdwg.mxu0
        %v2020 = vsel %vm1102, %v1998, -inf
        %2021 = vmax.xlane.f32.xlu0 %v2020
        %v2022 = vpop.xlane.xlu0 %2021
        %v2023 = vsel %vm1102, %v2018, -inf
        %2024 = vmax.xlane.f32.xlu0 %v2023
        %v2025 = vpop.xlane.xlu0 %2024
        %v2026 = vsub.f32 %v1998, %v2022
        %v2027 = vsub.f32 %v2018, %v2025
        %v2028 = vmul.f32 %v2026, 1.442695
        %v2029 = vpow.pop %v2028
        %v2030 = vmul.f32 %v2027, 1.442695
        %v2031 = vpow.pop %v2030
        %v2032 = vsel %vm1102, %v2029, 0.0
        %2033 = vadd.xlane.f32.xlu0 %v2032
        %v2034 = vpop.xlane.xlu0 %2033
        %v2035 = vsel %vm1102, %v2031, 0.0
        %2036 = vadd.xlane.f32.xlu0 %v2035
        %v2037 = vpop.xlane.xlu0 %2036
        %v2038 = vrcp.pop %v2034
        %v2039 = vmul.f32 %v2034, %v2038
        %v2040 = vsub.f32 1.0, %v2039
        %v2041 = vmul.f32 %v2038, %v2040
        %v2042 = vadd.f32 %v2038, %v2041
        %vm2043 = vweird.f32 %v2034
        %vm2044 = vweird.f32 %v2038
        %vm2045 = vmor %vm2043, %vm2044
        %v2046 = vsel %vm2045, %v2038, %v2042
        %v2047 = vand.u32 2147483647, %v2034
        %vm2048 = vcmp.eq.f32.partialorder %v2047, 8.507059e+37
        %v2049 = vand.u32 %v2034, 2147483648
        %v2050 = vor.u32 1.1754944e-38, %v2049
        %v2051 = vsel %vm2048, %v2050, %v2046
        %v2052 = vmul.f32 %v2029, %v2051
        %v2053 = vrcp.pop %v2037
        %v2054 = vmul.f32 %v2037, %v2053
        %v2055 = vsub.f32 1.0, %v2054
        %v2056 = vmul.f32 %v2053, %v2055
        %v2057 = vadd.f32 %v2053, %v2056
        %vm2058 = vweird.f32 %v2037
        %vm2059 = vweird.f32 %v2053
        %vm2060 = vmor %vm2058, %vm2059
        %v2061 = vsel %vm2060, %v2053, %v2057
        %v2062 = vand.u32 2147483647, %v2037
        %vm2063 = vcmp.eq.f32.partialorder %v2062, 8.507059e+37
        %v2064 = vand.u32 %v2037, 2147483648
        %v2065 = vor.u32 1.1754944e-38, %v2064
        %v2066 = vsel %vm2063, %v2065, %v2061
        %v2067 = vmul.f32 %v2031, %v2066
        %v2069 = vsel %vm1102, %v2052, 0
        %2071 = vmatpush.msra.mxu0 0.0
        %2072 = vmatpush.msra.mxu0 0.0
        %2073 = vmatpush.msra.mxu0 0.0
        %2074 = vmatpush.msra.mxu0 0.0
        %2075 = vmatpush.msra.mxu0 0.0
        %2076 = vmatpush.msra.mxu0 0.0
        %2077 = vmatpush.msra.mxu0 0.0
        %2078 = vmatpush.msra.mxu0 0.0
        %2079 = vmatpush.msra.mxu0 0.0
        %2080 = vmatpush.msra.mxu0 0.0
        %2081 = vmatpush.msra.mxu0 0.0
        %2082 = vmatpush.msra.mxu0 0.0
        %2083 = vmatpush.msra.mxu0 0.0
        %2084 = vmatpush.msra.mxu0 0.0
        %2085 = vmatpush.msra.mxu0 0.0
        %2086 = vmatpush.msra.mxu0 %v1871
        %2087 = vmatmul.f32.gmra.mxu0 %v2069
        %v2088 = vpop.f32.mrf.mxu0
        %v2089 = vadd.f32 0.0, %v2088
        %2090 = vdwg.mxu0
        %v2092 = vsel %vm1102, %v2067, 0
        %2094 = vmatpush.msra.mxu0 0.0
        %2095 = vmatpush.msra.mxu0 0.0
        %2096 = vmatpush.msra.mxu0 0.0
        %2097 = vmatpush.msra.mxu0 0.0
        %2098 = vmatpush.msra.mxu0 0.0
        %2099 = vmatpush.msra.mxu0 0.0
        %2100 = vmatpush.msra.mxu0 0.0
        %2101 = vmatpush.msra.mxu0 0.0
        %2102 = vmatpush.msra.mxu0 0.0
        %2103 = vmatpush.msra.mxu0 0.0
        %2104 = vmatpush.msra.mxu0 0.0
        %2105 = vmatpush.msra.mxu0 0.0
        %2106 = vmatpush.msra.mxu0 0.0
        %2107 = vmatpush.msra.mxu0 0.0
        %2108 = vmatpush.msra.mxu0 0.0
        %2109 = vmatpush.msra.mxu0 %v1874
        %2110 = vmatmul.f32.gmra.mxu0 %v2092
        %v2111 = vpop.f32.mrf.mxu0
        %v2112 = vadd.f32 0.0, %v2111
        %2113 = vdwg.mxu0
        %v2114 = vmul.f32 %v1894, 0.125
        %v2115 = vmul.f32 %v1897, 0.125
        %2116 = vmatpush.xpose.msra.mxu0 0.0
        %2117 = vmatpush.xpose.msra.mxu0 0.0
        %2118 = vmatpush.xpose.msra.mxu0 0.0
        %2119 = vmatpush.xpose.msra.mxu0 0.0
        %2120 = vmatpush.xpose.msra.mxu0 0.0
        %2121 = vmatpush.xpose.msra.mxu0 0.0
        %2122 = vmatpush.xpose.msra.mxu0 0.0
        %2123 = vmatpush.xpose.msra.mxu0 0.0
        %2124 = vmatpush.xpose.msra.mxu0 0.0
        %2125 = vmatpush.xpose.msra.mxu0 0.0
        %2126 = vmatpush.xpose.msra.mxu0 0.0
        %2127 = vmatpush.xpose.msra.mxu0 0.0
        %2128 = vmatpush.xpose.msra.mxu0 0.0
        %2129 = vmatpush.xpose.msra.mxu0 0.0
        %2130 = vmatpush.xpose.msra.mxu0 0.0
        %2131 = vmatpush.xpose.msra.mxu0 %v1917
        %2132 = vmatmul.f32.gmra.mxu0 %v2114
        %v2133 = vpop.f32.mrf.mxu0
        %v2134 = vadd.f32 %v1058, %v2133
        %2135 = vdwg.mxu0
        %2136 = vmatpush.xpose.msra.mxu0 0.0
        %2137 = vmatpush.xpose.msra.mxu0 0.0
        %2138 = vmatpush.xpose.msra.mxu0 0.0
        %2139 = vmatpush.xpose.msra.mxu0 0.0
        %2140 = vmatpush.xpose.msra.mxu0 0.0
        %2141 = vmatpush.xpose.msra.mxu0 0.0
        %2142 = vmatpush.xpose.msra.mxu0 0.0
        %2143 = vmatpush.xpose.msra.mxu0 0.0
        %2144 = vmatpush.xpose.msra.mxu0 0.0
        %2145 = vmatpush.xpose.msra.mxu0 0.0
        %2146 = vmatpush.xpose.msra.mxu0 0.0
        %2147 = vmatpush.xpose.msra.mxu0 0.0
        %2148 = vmatpush.xpose.msra.mxu0 0.0
        %2149 = vmatpush.xpose.msra.mxu0 0.0
        %2150 = vmatpush.xpose.msra.mxu0 0.0
        %2151 = vmatpush.xpose.msra.mxu0 %v1920
        %2152 = vmatmul.f32.gmra.mxu0 %v2115
        %v2153 = vpop.f32.mrf.mxu0
        %v2154 = vadd.f32 %v1059, %v2153
        %2155 = vdwg.mxu0
        %v2156 = vsel %vm1102, %v2134, -inf
        %2157 = vmax.xlane.f32.xlu0 %v2156
        %v2158 = vpop.xlane.xlu0 %2157
        %v2159 = vsel %vm1102, %v2154, -inf
        %2160 = vmax.xlane.f32.xlu0 %v2159
        %v2161 = vpop.xlane.xlu0 %2160
        %v2162 = vsub.f32 %v2134, %v2158
        %v2163 = vsub.f32 %v2154, %v2161
        %v2164 = vmul.f32 %v2162, 1.442695
        %v2165 = vpow.pop %v2164
        %v2166 = vmul.f32 %v2163, 1.442695
        %v2167 = vpow.pop %v2166
        %v2168 = vsel %vm1102, %v2165, 0.0
        %2169 = vadd.xlane.f32.xlu0 %v2168
        %v2170 = vpop.xlane.xlu0 %2169
        %v2171 = vsel %vm1102, %v2167, 0.0
        %2172 = vadd.xlane.f32.xlu0 %v2171
        %v2173 = vpop.xlane.xlu0 %2172
        %v2174 = vrcp.pop %v2170
        %v2175 = vmul.f32 %v2170, %v2174
        %v2176 = vsub.f32 1.0, %v2175
        %v2177 = vmul.f32 %v2174, %v2176
        %v2178 = vadd.f32 %v2174, %v2177
        %vm2179 = vweird.f32 %v2170
        %vm2180 = vweird.f32 %v2174
        %vm2181 = vmor %vm2179, %vm2180
        %v2182 = vsel %vm2181, %v2174, %v2178
        %v2183 = vand.u32 2147483647, %v2170
        %vm2184 = vcmp.eq.f32.partialorder %v2183, 8.507059e+37
        %v2185 = vand.u32 %v2170, 2147483648
        %v2186 = vor.u32 1.1754944e-38, %v2185
        %v2187 = vsel %vm2184, %v2186, %v2182
        %v2188 = vmul.f32 %v2165, %v2187
        %v2189 = vrcp.pop %v2173
        %v2190 = vmul.f32 %v2173, %v2189
        %v2191 = vsub.f32 1.0, %v2190
        %v2192 = vmul.f32 %v2189, %v2191
        %v2193 = vadd.f32 %v2189, %v2192
        %vm2194 = vweird.f32 %v2173
        %vm2195 = vweird.f32 %v2189
        %vm2196 = vmor %vm2194, %vm2195
        %v2197 = vsel %vm2196, %v2189, %v2193
        %v2198 = vand.u32 2147483647, %v2173
        %vm2199 = vcmp.eq.f32.partialorder %v2198, 8.507059e+37
        %v2200 = vand.u32 %v2173, 2147483648
        %v2201 = vor.u32 1.1754944e-38, %v2200
        %v2202 = vsel %vm2199, %v2201, %v2197
        %v2203 = vmul.f32 %v2167, %v2202
        %v2205 = vsel %vm1102, %v2188, 0
        %2207 = vmatpush.msra.mxu0 0.0
        %2208 = vmatpush.msra.mxu0 0.0
        %2209 = vmatpush.msra.mxu0 0.0
        %2210 = vmatpush.msra.mxu0 0.0
        %2211 = vmatpush.msra.mxu0 0.0
        %2212 = vmatpush.msra.mxu0 0.0
        %2213 = vmatpush.msra.mxu0 0.0
        %2214 = vmatpush.msra.mxu0 0.0
        %2215 = vmatpush.msra.mxu0 0.0
        %2216 = vmatpush.msra.mxu0 0.0
        %2217 = vmatpush.msra.mxu0 0.0
        %2218 = vmatpush.msra.mxu0 0.0
        %2219 = vmatpush.msra.mxu0 0.0
        %2220 = vmatpush.msra.mxu0 0.0
        %2221 = vmatpush.msra.mxu0 0.0
        %2222 = vmatpush.msra.mxu0 %v1940
        %2223 = vmatmul.f32.gmra.mxu0 %v2205
        %v2224 = vpop.f32.mrf.mxu0
        %v2225 = vadd.f32 0.0, %v2224
        %2226 = vdwg.mxu0
        %v2228 = vsel %vm1102, %v2203, 0
        %2230 = vmatpush.msra.mxu0 0.0
        %2231 = vmatpush.msra.mxu0 0.0
        %2232 = vmatpush.msra.mxu0 0.0
        %2233 = vmatpush.msra.mxu0 0.0
        %2234 = vmatpush.msra.mxu0 0.0
        %2235 = vmatpush.msra.mxu0 0.0
        %2236 = vmatpush.msra.mxu0 0.0
        %2237 = vmatpush.msra.mxu0 0.0
        %2238 = vmatpush.msra.mxu0 0.0
        %2239 = vmatpush.msra.mxu0 0.0
        %2240 = vmatpush.msra.mxu0 0.0
        %2241 = vmatpush.msra.mxu0 0.0
        %2242 = vmatpush.msra.mxu0 0.0
        %2243 = vmatpush.msra.mxu0 0.0
        %2244 = vmatpush.msra.mxu0 0.0
        %2245 = vmatpush.msra.mxu0 %v1943
        %2246 = vmatmul.f32.gmra.mxu0 %v2228
        %v2247 = vpop.f32.mrf.mxu0
        %v2248 = vadd.f32 0.0, %v2247
        %2249 = vdwg.mxu0
        %2250 = vmatpush.msra.mxu0 %v1977
        %2251 = vmatpush.msra.mxu0 %v1976
        %2252 = vmatpush.msra.mxu0 %v1975
        %2253 = vmatpush.msra.mxu0 %v1974
        %2254 = vmatpush.msra.mxu0 %v1973
        %2255 = vmatpush.msra.mxu0 %v1972
        %2256 = vmatpush.msra.mxu0 %v1971
        %2257 = vmatpush.msra.mxu0 %v1970
        %2258 = vmatpush.msra.mxu0 %v1969
        %2259 = vmatpush.msra.mxu0 %v1968
        %2260 = vmatpush.msra.mxu0 %v1967
        %2261 = vmatpush.msra.mxu0 %v1966
        %2262 = vmatpush.msra.mxu0 %v1965
        %2263 = vmatpush.msra.mxu0 %v1964
        %2264 = vmatpush.msra.mxu0 %v1963
        %2265 = vmatpush.msra.mxu0 %v1962
        %2266 = vmatmul.f32.gmra.mxu0 %v2225
        %v2267 = vpop.f32.mrf.mxu0
        %v2268 = vadd.f32 0.0, %v2267
        %2269 = vmatmul.f32.gmra.mxu0 %v2248
        %v2270 = vpop.f32.mrf.mxu0
        %v2271 = vadd.f32 0.0, %v2270
        %2272 = vdwg.mxu0
        %2273 = vmatpush.msra.mxu0 %v1961
        %2274 = vmatpush.msra.mxu0 %v1960
        %2275 = vmatpush.msra.mxu0 %v1959
        %2276 = vmatpush.msra.mxu0 %v1958
        %2277 = vmatpush.msra.mxu0 %v1957
        %2278 = vmatpush.msra.mxu0 %v1956
        %2279 = vmatpush.msra.mxu0 %v1955
        %2280 = vmatpush.msra.mxu0 %v1954
        %2281 = vmatpush.msra.mxu0 %v1953
        %2282 = vmatpush.msra.mxu0 %v1952
        %2283 = vmatpush.msra.mxu0 %v1951
        %2284 = vmatpush.msra.mxu0 %v1950
        %2285 = vmatpush.msra.mxu0 %v1949
        %2286 = vmatpush.msra.mxu0 %v1948
        %2287 = vmatpush.msra.mxu0 %v1947
        %2288 = vmatpush.msra.mxu0 %v1946
        %2289 = vmatmul.f32.gmra.mxu0 %v2089
        %v2290 = vpop.f32.mrf.mxu0
        %v2291 = vadd.f32 %v2268, %v2290
        %2292 = vmatmul.f32.gmra.mxu0 %v2112
        %v2293 = vpop.f32.mrf.mxu0
        %v2294 = vadd.f32 %v2271, %v2293
        %2295 = vdwg.mxu0
        %s2296 = scalar_lea.vmem %s7, 1
        %v2297 = vld [vmem:[%s2296] sm:$0x1]
        %v2299 = vperm.slane %v2297, 0
        %v2301 = vadd.f32 %v2291, %v2299
        %v2302 = vadd.f32 %v2294, %v2299
        %v2303 = vadd.f32 %v2301, %v1693
        %v2304 = vadd.f32 %v2302, %v1694
        %s2305 = scalar_lea.vmem %s8, 1
        %v2306 = vld [vmem:[%s2305] sm:$0x1]
        %s2307 = scalar_lea.vmem %s9, 1
        %v2308 = vld [vmem:[%s2307] sm:$0x1]
        %2309 = vadd.xlane.f32.xlu0 %v2303
        %v2310 = vpop.xlane.xlu0 %2309
        %2311 = vadd.xlane.f32.xlu0 %v2304
        %v2312 = vpop.xlane.xlu0 %2311
        %v2313 = vmul.f32 %v2310, %v727
        %v2314 = vmul.f32 %v2312, %v727
        %v2315 = vsub.f32 %v2303, %v2313
        %v2316 = vsub.f32 %v2304, %v2314
        %v2317 = vmul.f32 %v2315, %v2315
        %v2318 = vmul.f32 %v2316, %v2316
        %2319 = vadd.xlane.f32.xlu0 %v2317
        %v2320 = vpop.xlane.xlu0 %2319
        %2321 = vadd.xlane.f32.xlu0 %v2318
        %v2322 = vpop.xlane.xlu0 %2321
        %v2323 = vmul.f32 %v2320, %v727
        %v2324 = vmul.f32 %v2322, %v727
        %v2325 = vadd.f32 %v2323, 1e-12
        %v2326 = vadd.f32 %v2324, 1e-12
        %v2327 = vrsqrt.pop %v2325
        %v2328 = vmul.f32 %v2327, %v2325
        %v2329 = vmul.f32 %v2328, %v2327
        %v2330 = vmul.f32 0.5, %v2329
        %v2331 = vsub.f32 1.5, %v2330
        %v2332 = vmul.f32 %v2327, %v2331
        %vm2333 = vweird.f32 %v2325
        %vm2334 = vweird.f32 %v2327
        %vm2335 = vmor %vm2333, %vm2334
        %v2336 = vsel %vm2335, %v2327, %v2332
        %v2337 = vrsqrt.pop %v2326
        %v2338 = vmul.f32 %v2337, %v2326
        %v2339 = vmul.f32 %v2338, %v2337
        %v2340 = vmul.f32 0.5, %v2339
        %v2341 = vsub.f32 1.5, %v2340
        %v2342 = vmul.f32 %v2337, %v2341
        %vm2343 = vweird.f32 %v2326
        %vm2344 = vweird.f32 %v2337
        %vm2345 = vmor %vm2343, %vm2344
        %v2346 = vsel %vm2345, %v2337, %v2342
        %v2347 = vmul.f32 %v2315, %v2336
        %v2348 = vmul.f32 %v2316, %v2346
        %v2350 = vperm.slane %v2306, 0
        %v2352 = vmul.f32 %v2347, %v2350
        %v2353 = vmul.f32 %v2348, %v2350
        %v2355 = vperm.slane %v2308, 0
        %v2357 = vadd.f32 %v2352, %v2355
        %v2358 = vadd.f32 %v2353, %v2355
        %s2359 = scalar_lea.vmem [#allocation6], 256
        %v2360 = vld [vmem:[%s2359] sm:$0xff]
        %v2361 = vld [vmem:[%s2359 + $0x8] sm:$0xff]
        %v2362 = vld [vmem:[%s2359 + $0x10] sm:$0xff]
        %v2363 = vld [vmem:[%s2359 + $0x18] sm:$0xff]
        %v2364 = vld [vmem:[%s2359 + $0x20] sm:$0xff]
        %v2365 = vld [vmem:[%s2359 + $0x28] sm:$0xff]
        %v2366 = vld [vmem:[%s2359 + $0x30] sm:$0xff]
        %v2367 = vld [vmem:[%s2359 + $0x38] sm:$0xff]
        %v2368 = vld [vmem:[%s2359 + $0x40] sm:$0xff]
        %v2369 = vld [vmem:[%s2359 + $0x48] sm:$0xff]
        %v2370 = vld [vmem:[%s2359 + $0x50] sm:$0xff]
        %v2371 = vld [vmem:[%s2359 + $0x58] sm:$0xff]
        %v2372 = vld [vmem:[%s2359 + $0x60] sm:$0xff]
        %v2373 = vld [vmem:[%s2359 + $0x68] sm:$0xff]
        %v2374 = vld [vmem:[%s2359 + $0x70] sm:$0xff]
        %v2375 = vld [vmem:[%s2359 + $0x78] sm:$0xff]
        %v2376 = vld [vmem:[%s2359 + $0x80] sm:$0xff]
        %v2377 = vld [vmem:[%s2359 + $0x88] sm:$0xff]
        %v2378 = vld [vmem:[%s2359 + $0x90] sm:$0xff]
        %v2379 = vld [vmem:[%s2359 + $0x98] sm:$0xff]
        %v2380 = vld [vmem:[%s2359 + $0xa0] sm:$0xff]
        %v2381 = vld [vmem:[%s2359 + $0xa8] sm:$0xff]
        %v2382 = vld [vmem:[%s2359 + $0xb0] sm:$0xff]
        %v2383 = vld [vmem:[%s2359 + $0xb8] sm:$0xff]
        %v2384 = vld [vmem:[%s2359 + $0xc0] sm:$0xff]
        %v2385 = vld [vmem:[%s2359 + $0xc8] sm:$0xff]
        %v2386 = vld [vmem:[%s2359 + $0xd0] sm:$0xff]
        %v2387 = vld [vmem:[%s2359 + $0xd8] sm:$0xff]
        %v2388 = vld [vmem:[%s2359 + $0xe0] sm:$0xff]
        %v2389 = vld [vmem:[%s2359 + $0xe8] sm:$0xff]
        %v2390 = vld [vmem:[%s2359 + $0xf0] sm:$0xff]
        %v2391 = vld [vmem:[%s2359 + $0xf8] sm:$0xff]
        %s2392 = scalar_lea.vmem %s11, 2
        %v2393 = vld [vmem:[%s2392] sm:$0x3]
        %v2395 = vperm.slane %v2393, 0
        %v2396 = vperm.slane %v2393, 1
        %2399 = vmatpush.msra.mxu0 %v2390
        %2400 = vmatpush.msra.mxu0 %v2388
        %2401 = vmatpush.msra.mxu0 %v2386
        %2402 = vmatpush.msra.mxu0 %v2384
        %2403 = vmatpush.msra.mxu0 %v2382
        %2404 = vmatpush.msra.mxu0 %v2380
        %2405 = vmatpush.msra.mxu0 %v2378
        %2406 = vmatpush.msra.mxu0 %v2376
        %2407 = vmatpush.msra.mxu0 %v2374
        %2408 = vmatpush.msra.mxu0 %v2372
        %2409 = vmatpush.msra.mxu0 %v2370
        %2410 = vmatpush.msra.mxu0 %v2368
        %2411 = vmatpush.msra.mxu0 %v2366
        %2412 = vmatpush.msra.mxu0 %v2364
        %2413 = vmatpush.msra.mxu0 %v2362
        %2414 = vmatpush.msra.mxu0 %v2360
        %2415 = vmatmul.f32.gmra.mxu0 %v2357
        %v2416 = vpop.f32.mrf.mxu0
        %v2417 = vadd.f32 %v2395, %v2416
        %2418 = vmatmul.f32.gmra.mxu0 %v2358
        %v2419 = vpop.f32.mrf.mxu0
        %v2420 = vadd.f32 %v2395, %v2419
        %2421 = vdwg.mxu0
        %2422 = vmatpush.msra.mxu0 %v2391
        %2423 = vmatpush.msra.mxu0 %v2389
        %2424 = vmatpush.msra.mxu0 %v2387
        %2425 = vmatpush.msra.mxu0 %v2385
        %2426 = vmatpush.msra.mxu0 %v2383
        %2427 = vmatpush.msra.mxu0 %v2381
        %2428 = vmatpush.msra.mxu0 %v2379
        %2429 = vmatpush.msra.mxu0 %v2377
        %2430 = vmatpush.msra.mxu0 %v2375
        %2431 = vmatpush.msra.mxu0 %v2373
        %2432 = vmatpush.msra.mxu0 %v2371
        %2433 = vmatpush.msra.mxu0 %v2369
        %2434 = vmatpush.msra.mxu0 %v2367
        %2435 = vmatpush.msra.mxu0 %v2365
        %2436 = vmatpush.msra.mxu0 %v2363
        %2437 = vmatpush.msra.mxu0 %v2361
        %2438 = vmatmul.f32.gmra.mxu0 %v2357
        %v2439 = vpop.f32.mrf.mxu0
        %v2440 = vadd.f32 %v2396, %v2439
        %2441 = vmatmul.f32.gmra.mxu0 %v2358
        %v2442 = vpop.f32.mrf.mxu0
        %v2443 = vadd.f32 %v2396, %v2442
        %2444 = vdwg.mxu0
        %v2445 = vmul.f32 %v2417, %v2417
        %v2446 = vmul.f32 %v2440, %v2440
        %v2447 = vmul.f32 %v2420, %v2420
        %v2448 = vmul.f32 %v2443, %v2443
        %v2449 = vmul.f32 %v2417, %v2445
        %v2450 = vmul.f32 %v2440, %v2446
        %v2451 = vmul.f32 %v2420, %v2447
        %v2452 = vmul.f32 %v2443, %v2448
        %v2453 = vmul.f32 %v2449, 0.044715
        %v2454 = vmul.f32 %v2450, 0.044715
        %v2455 = vmul.f32 %v2451, 0.044715
        %v2456 = vmul.f32 %v2452, 0.044715
        %v2457 = vadd.f32 %v2417, %v2453
        %v2458 = vadd.f32 %v2440, %v2454
        %v2459 = vadd.f32 %v2420, %v2455
        %v2460 = vadd.f32 %v2443, %v2456
        %v2461 = vmul.f32 %v2457, 0.7978846
        %v2462 = vmul.f32 %v2458, 0.7978846
        %v2463 = vmul.f32 %v2459, 0.7978846
        %v2464 = vmul.f32 %v2460, 0.7978846
        %v2465 = vtanh.pop %v2461
        %v2466 = vtanh.pop %v2462
        %v2467 = vtanh.pop %v2463
        %v2468 = vtanh.pop %v2464
        %v2469 = vadd.f32 %v2465, 1.0
        %v2470 = vadd.f32 %v2466, 1.0
        %v2471 = vadd.f32 %v2467, 1.0
        %v2472 = vadd.f32 %v2468, 1.0
        %v2473 = vmul.f32 %v2469, 0.5
        %v2474 = vmul.f32 %v2470, 0.5
        %v2475 = vmul.f32 %v2471, 0.5
        %v2476 = vmul.f32 %v2472, 0.5
        %v2477 = vmul.f32 %v2417, %v2473
        %v2478 = vmul.f32 %v2440, %v2474
        %v2479 = vmul.f32 %v2420, %v2475
        %v2480 = vmul.f32 %v2443, %v2476
        %s2481 = scalar_lea.vmem [#allocation7], 256
        %v2482 = vld [vmem:[%s2481] sm:$0xff]
        %v2483 = vld [vmem:[%s2481 + $0x8] sm:$0xff]
        %v2484 = vld [vmem:[%s2481 + $0x10] sm:$0xff]
        %v2485 = vld [vmem:[%s2481 + $0x18] sm:$0xff]
        %v2486 = vld [vmem:[%s2481 + $0x20] sm:$0xff]
        %v2487 = vld [vmem:[%s2481 + $0x28] sm:$0xff]
        %v2488 = vld [vmem:[%s2481 + $0x30] sm:$0xff]
        %v2489 = vld [vmem:[%s2481 + $0x38] sm:$0xff]
        %v2490 = vld [vmem:[%s2481 + $0x40] sm:$0xff]
        %v2491 = vld [vmem:[%s2481 + $0x48] sm:$0xff]
        %v2492 = vld [vmem:[%s2481 + $0x50] sm:$0xff]
        %v2493 = vld [vmem:[%s2481 + $0x58] sm:$0xff]
        %v2494 = vld [vmem:[%s2481 + $0x60] sm:$0xff]
        %v2495 = vld [vmem:[%s2481 + $0x68] sm:$0xff]
        %v2496 = vld [vmem:[%s2481 + $0x70] sm:$0xff]
        %v2497 = vld [vmem:[%s2481 + $0x78] sm:$0xff]
        %v2498 = vld [vmem:[%s2481 + $0x80] sm:$0xff]
        %v2499 = vld [vmem:[%s2481 + $0x88] sm:$0xff]
        %v2500 = vld [vmem:[%s2481 + $0x90] sm:$0xff]
        %v2501 = vld [vmem:[%s2481 + $0x98] sm:$0xff]
        %v2502 = vld [vmem:[%s2481 + $0xa0] sm:$0xff]
        %v2503 = vld [vmem:[%s2481 + $0xa8] sm:$0xff]
        %v2504 = vld [vmem:[%s2481 + $0xb0] sm:$0xff]
        %v2505 = vld [vmem:[%s2481 + $0xb8] sm:$0xff]
        %v2506 = vld [vmem:[%s2481 + $0xc0] sm:$0xff]
        %v2507 = vld [vmem:[%s2481 + $0xc8] sm:$0xff]
        %v2508 = vld [vmem:[%s2481 + $0xd0] sm:$0xff]
        %v2509 = vld [vmem:[%s2481 + $0xd8] sm:$0xff]
        %v2510 = vld [vmem:[%s2481 + $0xe0] sm:$0xff]
        %v2511 = vld [vmem:[%s2481 + $0xe8] sm:$0xff]
        %v2512 = vld [vmem:[%s2481 + $0xf0] sm:$0xff]
        %v2513 = vld [vmem:[%s2481 + $0xf8] sm:$0xff]
        %s2514 = scalar_lea.vmem %s13, 1
        %v2515 = vld [vmem:[%s2514] sm:$0x1]
        %v2517 = vperm.slane %v2515, 0
        %2519 = vmatpush.msra.mxu0 %v2497
        %2520 = vmatpush.msra.mxu0 %v2496
        %2521 = vmatpush.msra.mxu0 %v2495
        %2522 = vmatpush.msra.mxu0 %v2494
        %2523 = vmatpush.msra.mxu0 %v2493
        %2524 = vmatpush.msra.mxu0 %v2492
        %2525 = vmatpush.msra.mxu0 %v2491
        %2526 = vmatpush.msra.mxu0 %v2490
        %2527 = vmatpush.msra.mxu0 %v2489
        %2528 = vmatpush.msra.mxu0 %v2488
        %2529 = vmatpush.msra.mxu0 %v2487
        %2530 = vmatpush.msra.mxu0 %v2486
        %2531 = vmatpush.msra.mxu0 %v2485
        %2532 = vmatpush.msra.mxu0 %v2484
        %2533 = vmatpush.msra.mxu0 %v2483
        %2534 = vmatpush.msra.mxu0 %v2482
        %2535 = vmatmul.f32.gmra.mxu0 %v2477
        %v2536 = vpop.f32.mrf.mxu0
        %v2537 = vadd.f32 %v2517, %v2536
        %2538 = vmatmul.f32.gmra.mxu0 %v2479
        %v2539 = vpop.f32.mrf.mxu0
        %v2540 = vadd.f32 %v2517, %v2539
        %2541 = vdwg.mxu0
        %2542 = vmatpush.msra.mxu0 %v2513
        %2543 = vmatpush.msra.mxu0 %v2512
        %2544 = vmatpush.msra.mxu0 %v2511
        %2545 = vmatpush.msra.mxu0 %v2510
        %2546 = vmatpush.msra.mxu0 %v2509
        %2547 = vmatpush.msra.mxu0 %v2508
        %2548 = vmatpush.msra.mxu0 %v2507
        %2549 = vmatpush.msra.mxu0 %v2506
        %2550 = vmatpush.msra.mxu0 %v2505
        %2551 = vmatpush.msra.mxu0 %v2504
        %2552 = vmatpush.msra.mxu0 %v2503
        %2553 = vmatpush.msra.mxu0 %v2502
        %2554 = vmatpush.msra.mxu0 %v2501
        %2555 = vmatpush.msra.mxu0 %v2500
        %2556 = vmatpush.msra.mxu0 %v2499
        %2557 = vmatpush.msra.mxu0 %v2498
        %2558 = vmatmul.f32.gmra.mxu0 %v2478
        %v2559 = vpop.f32.mrf.mxu0
        %v2560 = vadd.f32 %v2537, %v2559
        %2561 = vmatmul.f32.gmra.mxu0 %v2480
        %v2562 = vpop.f32.mrf.mxu0
        %v2563 = vadd.f32 %v2540, %v2562
        %2564 = vdwg.mxu0
        %v2565 = vadd.f32 %v2560, %v2357
        %v2566 = vadd.f32 %v2563, %v2358
        %s2567 = scalar_lea.vmem %s14, 1
        %v2568 = vld [vmem:[%s2567] sm:$0x1]
        %s2569 = scalar_lea.vmem %s15, 1
        %v2570 = vld [vmem:[%s2569] sm:$0x1]
        %2571 = vadd.xlane.f32.xlu0 %v2565
        %v2572 = vpop.xlane.xlu0 %2571
        %2573 = vadd.xlane.f32.xlu0 %v2566
        %v2574 = vpop.xlane.xlu0 %2573
        %v2575 = vmul.f32 %v2572, %v727
        %v2576 = vmul.f32 %v2574, %v727
        %v2577 = vsub.f32 %v2565, %v2575
        %v2578 = vsub.f32 %v2566, %v2576
        %v2579 = vmul.f32 %v2577, %v2577
        %v2580 = vmul.f32 %v2578, %v2578
        %2581 = vadd.xlane.f32.xlu0 %v2579
        %v2582 = vpop.xlane.xlu0 %2581
        %2583 = vadd.xlane.f32.xlu0 %v2580
        %v2584 = vpop.xlane.xlu0 %2583
        %v2585 = vmul.f32 %v2582, %v727
        %v2586 = vmul.f32 %v2584, %v727
        %v2587 = vadd.f32 %v2585, 1e-12
        %v2588 = vadd.f32 %v2586, 1e-12
        %v2589 = vrsqrt.pop %v2587
        %v2590 = vmul.f32 %v2589, %v2587
        %v2591 = vmul.f32 %v2590, %v2589
        %v2592 = vmul.f32 0.5, %v2591
        %v2593 = vsub.f32 1.5, %v2592
        %v2594 = vmul.f32 %v2589, %v2593
        %vm2595 = vweird.f32 %v2587
        %vm2596 = vweird.f32 %v2589
        %vm2597 = vmor %vm2595, %vm2596
        %v2598 = vsel %vm2597, %v2589, %v2594
        %v2599 = vrsqrt.pop %v2588
        %v2600 = vmul.f32 %v2599, %v2588
        %v2601 = vmul.f32 %v2600, %v2599
        %v2602 = vmul.f32 0.5, %v2601
        %v2603 = vsub.f32 1.5, %v2602
        %v2604 = vmul.f32 %v2599, %v2603
        %vm2605 = vweird.f32 %v2588
        %vm2606 = vweird.f32 %v2599
        %vm2607 = vmor %vm2605, %vm2606
        %v2608 = vsel %vm2607, %v2599, %v2604
        %v2609 = vmul.f32 %v2577, %v2598
        %v2610 = vmul.f32 %v2578, %v2608
        %v2612 = vperm.slane %v2568, 0
        %v2614 = vmul.f32 %v2609, %v2612
        %v2615 = vmul.f32 %v2610, %v2612
        %v2617 = vperm.slane %v2570, 0
        %v2619 = vadd.f32 %v2614, %v2617
        %v2620 = vadd.f32 %v2615, %v2617
        %v2621 = vld [vmem:[%s16] sm:$0xff]
        %v2622 = vld [vmem:[%s16 + $0x8] sm:$0xff]
        %v2623 = vld [vmem:[%s16 + $0x10] sm:$0xff]
        %v2624 = vld [vmem:[%s16 + $0x18] sm:$0xff]
        %v2625 = vld [vmem:[%s16 + $0x20] sm:$0xff]
        %v2626 = vld [vmem:[%s16 + $0x28] sm:$0xff]
        %v2627 = vld [vmem:[%s16 + $0x30] sm:$0xff]
        %v2628 = vld [vmem:[%s16 + $0x38] sm:$0xff]
        %v2629 = vld [vmem:[%s16 + $0x40] sm:$0xff]
        %v2630 = vld [vmem:[%s16 + $0x48] sm:$0xff]
        %v2631 = vld [vmem:[%s16 + $0x50] sm:$0xff]
        %v2632 = vld [vmem:[%s16 + $0x58] sm:$0xff]
        %v2633 = vld [vmem:[%s16 + $0x60] sm:$0xff]
        %v2634 = vld [vmem:[%s16 + $0x68] sm:$0xff]
        %v2635 = vld [vmem:[%s16 + $0x70] sm:$0xff]
        %v2636 = vld [vmem:[%s16 + $0x78] sm:$0xff]
        %v2637 = vld [vmem:[%s17] sm:$0x1]
        %v2639 = vperm.slane %v2637, 0
        %2641 = vmatpush.msra.mxu0 %v2636
        %2642 = vmatpush.msra.mxu0 %v2635
        %2643 = vmatpush.msra.mxu0 %v2634
        %2644 = vmatpush.msra.mxu0 %v2633
        %2645 = vmatpush.msra.mxu0 %v2632
        %2646 = vmatpush.msra.mxu0 %v2631
        %2647 = vmatpush.msra.mxu0 %v2630
        %2648 = vmatpush.msra.mxu0 %v2629
        %2649 = vmatpush.msra.mxu0 %v2628
        %2650 = vmatpush.msra.mxu0 %v2627
        %2651 = vmatpush.msra.mxu0 %v2626
        %2652 = vmatpush.msra.mxu0 %v2625
        %2653 = vmatpush.msra.mxu0 %v2624
        %2654 = vmatpush.msra.mxu0 %v2623
        %2655 = vmatpush.msra.mxu0 %v2622
        %2656 = vmatpush.msra.mxu0 %v2621
        %2657 = vmatmul.f32.gmra.mxu0 %v2619
        %v2658 = vpop.f32.mrf.mxu0
        %v2659 = vadd.f32 %v2639, %v2658
        %2660 = vmatmul.f32.gmra.mxu0 %v2620
        %v2661 = vpop.f32.mrf.mxu0
        %v2662 = vadd.f32 %v2639, %v2661
        %2663 = vdwg.mxu0
        %v2664 = vld [vmem:[%s703] sm:$0x1]
        %v2665 = vld [vmem:[%s703 + $0x1] sm:$0x1]
        %v2668 = vperm.slane %v2664, 0
        %v2669 = vperm.slane %v2665, 0
        %v2672 = vadd.f32 %v2659, %v2668
        %v2673 = vadd.f32 %v2662, %v2669
        %v2674 = vxor.u32 %v2672, 2147483648
        %v2675 = vxor.u32 %v2673, 2147483648
        %v2676 = vmul.f32 %v2674, 1.442695
        %v2677 = vpow.pop %v2676
        %v2678 = vmul.f32 %v2675, 1.442695
        %v2679 = vpow.pop %v2678
        %v2680 = vadd.f32 %v2677, 1.0
        %v2681 = vadd.f32 %v2679, 1.0
        %v2682 = vrcp.pop %v2680
        %v2683 = vmul.f32 %v2680, %v2682
        %v2684 = vsub.f32 1.0, %v2683
        %v2685 = vmul.f32 %v2682, %v2684
        %v2686 = vadd.f32 %v2682, %v2685
        %vm2687 = vweird.f32 %v2680
        %vm2688 = vweird.f32 %v2682
        %vm2689 = vmor %vm2687, %vm2688
        %v2690 = vsel %vm2689, %v2682, %v2686
        %v2691 = vand.u32 2147483647, %v2680
        %vm2692 = vcmp.eq.f32.partialorder %v2691, 8.507059e+37
        %v2693 = vand.u32 %v2680, 2147483648
        %v2694 = vor.u32 1.1754944e-38, %v2693
        %v2695 = vsel %vm2692, %v2694, %v2690
        %v2696 = vmul.f32 1.0, %v2695
        %v2697 = vrcp.pop %v2681
        %v2698 = vmul.f32 %v2681, %v2697
        %v2699 = vsub.f32 1.0, %v2698
        %v2700 = vmul.f32 %v2697, %v2699
        %v2701 = vadd.f32 %v2697, %v2700
        %vm2702 = vweird.f32 %v2681
        %vm2703 = vweird.f32 %v2697
        %vm2704 = vmor %vm2702, %vm2703
        %v2705 = vsel %vm2704, %v2697, %v2701
        %v2706 = vand.u32 2147483647, %v2681
        %vm2707 = vcmp.eq.f32.partialorder %v2706, 8.507059e+37
        %v2708 = vand.u32 %v2681, 2147483648
        %v2709 = vor.u32 1.1754944e-38, %v2708
        %v2710 = vsel %vm2707, %v2709, %v2705
        %v2711 = vmul.f32 1.0, %v2710
        %v2712 = vmul.f32 %v2696, %v2696
        %v2713 = vmul.f32 %v2711, %v2711
        %v2714 = vmul.f32 %v2712, %v2712
        %v2715 = vmul.f32 %v2713, %v2713
        %v2716 = vlaneseq
        %v2717 = vand.u32 %v2716, 127
        %vm2718 = vcmp.lt.s32.totalorder %v2717, 2
        %vm2719 = vcmp.lt.s32.totalorder %v2717, 10
        %v2720 = vsel %vm2719, %v2714, 0.0
        %v2721 = vsel %vm2719, %v2715, 0.0
        %v2722 = vsel %vm2718, %v2696, %v2720
        %v2723 = vsel %vm2718, %v2711, %v2721
        %2724 = vst [vmem:[%s709] sm:$0xff] %v2722
        %2725 = vst [vmem:[%s709 + $0x8] sm:$0xff] %v2723
        %s2726 = smul.u32 2, %s33
        %p2727 = scmp.lt.s32.totalorder %s2726, 3
        %s2728 = scalar_select %p2727, %s2726, 3
        %s2729 = smul.addr %s2728, 8
        %s2730 = scalar_lea.vmem %s19, %s2729
        // Predicated region
        $region113: #{object_model_forward.1} parent=95 // pred_check
          %p2731 = pneg %p465
        $region114: #{object_model_forward.1} parent=95 // pred_check_branch
          %2733 = sbr.rel (%p2731) target = $region116
        $region115: #{object_model_forward.1} parent=95 // pred_region
          %s2734 = smul.u32 2, %s33
        $region116: #{object_model_forward.1} parent=95 // pred_fallthru
          _
      $region96: #{object_model_forward.1} parent=5 // pred_fallthru
        _
      %p2735 = scmp.le.s32.totalorder 2, %s28
      // Predicated region
      $region117: #{object_model_forward.1} parent=5 // pred_check
        %p2736 = pneg %p2735
      $region118: #{object_model_forward.1} parent=5 // pred_check_branch
        %2738 = sbr.rel (%p2736) target = $region120
      $region119: #{object_model_forward.1} parent=5 // pred_region
        %s2739 = ssub.s32 %s28, 2
        // Predicated region
        $region121: #{object_model_forward.1} parent=119 // pred_check
          %p2740 = pneg %p471
        $region122: #{object_model_forward.1} parent=119 // pred_check_branch
          %2742 = sbr.rel (%p2740) target = $region124
        $region123: #{object_model_forward.1} parent=119 // pred_region
          %s2743 = smul.u32 2, %s34
          %p2744 = scmp.lt.s32.totalorder %s2743, 3
          %s2745 = scalar_select %p2744, %s2743, 3
          %s2746 = smul.addr %s2745, 8
          %s2747 = scalar_lea.vmem %s19, %s2746
        $region124: #{object_model_forward.1} parent=119 // pred_fallthru
          _
      $region120: #{object_model_forward.1} parent=5 // pred_fallthru
        _
    $region6: #{object_model_forward.1} parent=1 // loop_footer
      %s32 = sadd.s32 1, %s28
    $region7: #{object_model_forward.1} parent=1 // loop_footer_branch
      %27 = sbr.rel target = $region3
    $region8: #{object_model_forward.1} parent=1 // loop_exit
      _
    %2748 = vsyncpa [#allocation3], 1
    %s2749 = scalar_lea.sflag [#allocation3], 1
    %2750 = vsyncpa %s2749, 1
    %2751 = vsyncpa [#allocation5], 1
    %2752 = vsyncpa [#allocation8], 1

</llo_original>
